<compile_context>
chip_gen: v7x
topology: tpu7x:2x2x1
jax: 0.10.0
libtpu: 0.0.40
codegen_flags: <defaults>
</compile_context>

<pallas_src>
import math

import jax
import jax.numpy as jnp
from jax import lax
from jax.experimental import pallas as pl
from jax.experimental.pallas import tpu as pltpu

N_EMBD = 32
N_HEAD = 4
N_CH = N_EMBD // N_HEAD
N_HIDDEN = 4 * N_EMBD
SCALE = 1.0 / math.sqrt(N_CH)
EPS = 1e-5


# ----------------------------- kernel helpers --------------------------------


def _channel_layernorm(y, w, b):
    # LayerNorm over the channel axis (axis 0 of the (C, T) tile).
    mu = jnp.mean(y, axis=0, keepdims=True)
    r = y - mu
    var = jnp.mean(r * r, axis=0, keepdims=True)
    return (r / jnp.sqrt(var + EPS)) * w + b


def _dwconv3(x, w):
    # Depthwise conv1d, kernel=3, stride=1, zero pad=1 (cross-correlation,
    # matching nn.Conv1d).  x: (C, T), w: (C, 3).
    # TODO(synk): pltpu.roll(+edge mask) would keep the +-1 time shifts on the
    # idle XLU slot; the concatenate form is kept for guaranteed lowering.
    C, _ = x.shape
    z = jnp.zeros((C, 1), x.dtype)
    x_prev = jnp.concatenate([z, x[:, :-1]], axis=1)   # x[:, t-1]
    x_next = jnp.concatenate([x[:, 1:], z], axis=1)    # x[:, t+1]
    return w[:, 0:1] * x_prev + w[:, 1:2] * x + w[:, 2:3] * x_next


def _erf(x):
    # Abramowitz & Stegun 7.1.26 polynomial erf (|abs err| <= 1.5e-7): keeps
    # nn.GELU()'s exact-erf semantics without relying on an erf lowering rule.
    a1, a2, a3, a4, a5 = (0.254829592, -0.284496736, 1.421413741,
                          -1.453152027, 1.061405429)
    p = 0.3275911
    ax = jnp.abs(x)
    t = 1.0 / (1.0 + p * ax)
    poly = ((((a5 * t + a4) * t + a3) * t + a2) * t + a1) * t
    y = 1.0 - poly * jnp.exp(-ax * ax)
    return jnp.where(x >= 0, y, -y)


def _gelu_erf(x):
    return 0.5 * x * (1.0 + _erf(x * (1.0 / math.sqrt(2.0))))


# ----------------------------- fused kernel ----------------------------------


def block_kernel(x_ref, mask_ref,
                 ln1w_ref, ln1b_ref,
                 dww_ref, lnw_ref, lnb_ref, pww_ref, pwb_ref,
                 projw_ref, projb_ref,
                 ln2w_ref, ln2b_ref,
                 fc1w_ref, fc1b_ref, fc2w_ref, fc2b_ref,
                 out_ref):
    """Fused TimeTransformerBlock forward for one (C, T) batch element."""
    x = x_ref[0]          # (C, T)
    m = mask_ref[0]       # (1, T) float time mask

    # ---- ln1_pre ------------------------------------------------------------
    xn = _channel_layernorm(x, ln1w_ref[...], ln1b_ref[...])

    # ---- TimeMaskedMHCA -----------------------------------------------------
    def qkv_branch(i):
        h = _dwconv3(xn, dww_ref[i]) * m                       # MaskedConv1D (dw, k=3)
        h = _channel_layernorm(h, lnw_ref[i], lnb_ref[i])      # query/key/value norm
        return jnp.dot(pww_ref[i], h,
                       preferred_element_type=jnp.float32) + pwb_ref[i]  # 1x1 conv

    q = qkv_branch(0) * SCALE       # (C, T)   scale folded into q once
    k = qkv_branch(1)               # (C, T)
    v = qkv_branch(2) * m           # (C, T)   v * kv_mask

    # One transpose to time-major for the attention lhs; keeps every
    # contraction in MXU-native A@B / A@B^T form (no transposed-lhs matmuls).
    q_t = jnp.transpose(q)          # (T, C)

    head_outs = []
    for hd in range(N_HEAD):
        sl = slice(hd * N_CH, (hd + 1) * N_CH)
        # att[t, s] = sum_c q[c, t] * k[c, s]                  -> (T, T)
        att = jnp.dot(q_t[:, sl], k[sl, :],
                      preferred_element_type=jnp.float32)
        att = att - jnp.max(att, axis=-1, keepdims=True)
        att = jnp.exp(att)
        att = att * pl.reciprocal(jnp.sum(att, axis=-1, keepdims=True))
        # out[c, t] = sum_s v[c, s] * att[t, s]                -> (nc, T)
        head_outs.append(
            lax.dot_general(v[sl, :], att,
                            dimension_numbers=(((1,), (1,)), ((), ())),
                            preferred_element_type=jnp.float32))
    attn = jnp.concatenate(head_outs, axis=0)                  # (C, T)
    attn = jnp.dot(projw_ref[...], attn,
                   preferred_element_type=jnp.float32) + projb_ref[...]
    attn = attn * m                                            # * qx_mask

    # ---- residual 1 (pool_skip_pre == Identity for stride 1) ----------------
    out1 = x * m + attn

    # ---- MLP branch: ln2_pre -> 1x1 (C->4C) -> GELU -> 1x1 (4C->C) ----------
    yn = _channel_layernorm(out1, ln2w_ref[...], ln2b_ref[...])
    h1 = jnp.dot(fc1w_ref[...], yn,
                 preferred_element_type=jnp.float32) + fc1b_ref[...]
    h1 = _gelu_erf(h1)
    h2 = jnp.dot(fc2w_ref[...], h1,
                 preferred_element_type=jnp.float32) + fc2b_ref[...]

    out_ref[0] = (out1 + h2 * m).astype(out_ref.dtype)


# ----------------------------- wrapper ----------------------------------------


def time_transformer_block(x, mask_bool, params):
    """Forward pass of TimeTransformerBlock (n_ds_strides=(1,1), dropouts=0)."""
    B, C, T = x.shape
    assert C == N_EMBD
    mask_f = mask_bool.astype(x.dtype)                                  # (B, 1, T)

    dww = jnp.stack([params["q_dw"], params["k_dw"], params["v_dw"]])   # (3, C, 3)
    lnw = jnp.stack([params["qn_w"], params["kn_w"], params["vn_w"]])   # (3, C, 1)
    lnb = jnp.stack([params["qn_b"], params["kn_b"], params["vn_b"]])   # (3, C, 1)
    pww = jnp.stack([params["q_w"], params["k_w"], params["v_w"]])      # (3, C, C)
    pwb = jnp.stack([params["q_b"], params["k_b"], params["v_b"]])      # (3, C, 1)

    def full(shape):
        # Weight/bias blocks: full array, grid-invariant (stay resident).
        return pl.BlockSpec(shape, lambda b: (0,) * len(shape))

    flops = B * (8 * C * C * T                      # q/k/v/proj 1x1 convs
                 + 4 * N_HEAD * N_CH * T * T        # q.k^T and att@v
                 + 4 * N_HIDDEN * C * T             # MLP fc1 + fc2
                 + 40 * C * T)                      # LN / dwconv / elementwise
    transcendentals = B * (N_HEAD * T * T + N_HIDDEN * T)
    bytes_accessed = 4 * (2 * B * C * T + B * T
                          + 3 * C * (3 + 2 + C + 1) + C * C + 5 * C
                          + 2 * N_HIDDEN * C + N_HIDDEN)

    out = pl.pallas_call(
        block_kernel,
        out_shape=jax.ShapeDtypeStruct((B, C, T), x.dtype),
        grid=(B,),
        in_specs=[
            pl.BlockSpec((1, C, T), lambda b: (b, 0, 0)),    # x
            pl.BlockSpec((1, 1, T), lambda b: (b, 0, 0)),    # time mask
            full((C, 1)), full((C, 1)),                      # ln1_pre w, b
            full((3, C, 3)),                                 # q/k/v depthwise w
            full((3, C, 1)), full((3, C, 1)),                # q/k/v norm w, b
            full((3, C, C)), full((3, C, 1)),                # q/k/v 1x1 w, b
            full((C, C)), full((C, 1)),                      # proj w, b
            full((C, 1)), full((C, 1)),                      # ln2_pre w, b
            full((N_HIDDEN, C)), full((N_HIDDEN, 1)),        # mlp fc1 w, b
            full((C, N_HIDDEN)), full((C, 1)),               # mlp fc2 w, b
        ],
        out_specs=pl.BlockSpec((1, C, T), lambda b: (b, 0, 0)),
        compiler_params=pltpu.CompilerParams(
            dimension_semantics=("parallel",)),
        cost_estimate=pl.CostEstimate(
            flops=flops, transcendentals=transcendentals,
            bytes_accessed=bytes_accessed),
    )(x, mask_f,
      params["ln1_w"], params["ln1_b"],
      dww, lnw, lnb, pww, pwb,
      params["proj_w"], params["proj_b"],
      params["ln2_w"], params["ln2_b"],
      params["fc1_w"], params["fc1_b"], params["fc2_w"], params["fc2_b"])

    # attn/proj dropout and AffineDropPath (p=0.0) are identities; stride-1
    # MaskedConv1D keeps out_mask == mask.
    return out, mask_bool


# ----------------------------- pure-JAX reference -----------------------------


def ref_forward(x, mask_bool, params):
    B, C, T = x.shape
    m = mask_bool.astype(x.dtype)
    hp = lax.Precision.HIGHEST

    def ln(y, w, b):
        mu = jnp.mean(y, axis=1, keepdims=True)
        r = y - mu
        var = jnp.mean(r * r, axis=1, keepdims=True)
        return (r / jnp.sqrt(var + EPS)) * w[None] + b[None]

    def dwconv(xx, w):
        xp = jnp.pad(xx, ((0, 0), (0, 0), (1, 1)))
        return (w[None, :, 0:1] * xp[:, :, :-2]
                + w[None, :, 1:2] * xp[:, :, 1:-1]
                + w[None, :, 2:3] * xp[:, :, 2:])

    def pw(y, w, b):
        return jnp.einsum("oc,bct->bot", w, y, precision=hp) + b[None]

    xn = ln(x, params["ln1_w"], params["ln1_b"])

    q = pw(ln(dwconv(xn, params["q_dw"]) * m, params["qn_w"], params["qn_b"]),
           params["q_w"], params["q_b"])
    k = pw(ln(dwconv(xn, params["k_dw"]) * m, params["kn_w"], params["kn_b"]),
           params["k_w"], params["k_b"])
    v = pw(ln(dwconv(xn, params["v_dw"]) * m, params["vn_w"], params["vn_b"]),
           params["v_w"], params["v_b"])

    # view(B, H, nc, T).transpose(2, 3) -> (B, H, T, nc)
    qh = q.reshape(B, N_HEAD, N_CH, T).transpose(0, 1, 3, 2)
    kh = k.reshape(B, N_HEAD, N_CH, T).transpose(0, 1, 3, 2)
    vh = v.reshape(B, N_HEAD, N_CH, T).transpose(0, 1, 3, 2)

    att = jax.nn.softmax(
        jnp.einsum("bhtc,bhsc->bhts", qh * SCALE, kh, precision=hp), axis=-1)
    o = jnp.einsum("bhts,bhsc->bhtc", att, vh * m[:, :, :, None], precision=hp)
    o = o.transpose(0, 1, 3, 2).reshape(B, C, T)
    attn_out = (jnp.einsum("oc,bct->bot", params["proj_w"], o, precision=hp)
                + params["proj_b"][None]) * m

    out1 = x * m + attn_out  # pool_skip_pre = Identity, drop_path = Identity

    y = ln(out1, params["ln2_w"], params["ln2_b"])
    h1 = jax.nn.gelu(
        jnp.einsum("hc,bct->bht", params["fc1_w"], y, precision=hp)
        + params["fc1_b"][None], approximate=False)
    h2 = (jnp.einsum("ch,bht->bct", params["fc2_w"], h1, precision=hp)
          + params["fc2_b"][None])
    out = out1 + h2 * m
    return out, mask_bool


# ----------------------------- main -------------------------------------------


if __name__ == "__main__":
    B, C, T = 2, N_EMBD, 128
    key = jax.random.PRNGKey(0)
    keys = jax.random.split(key, 32)

    x = jax.random.normal(keys[0], (B, C, T), jnp.float32)
    lengths = jnp.array([T, 93])
    mask_bool = jnp.arange(T)[None, None, :] < lengths[:, None, None]  # (B, 1, T)

    def nrm(k, shape, scale=0.1):
        return scale * jax.random.normal(k, shape, jnp.float32)

    params = dict(
        # block LayerNorms (ln1_pre / ln2_pre); affine params perturbed from the
        # ones/zeros init so the affine path is actually exercised.
        ln1_w=1.0 + nrm(keys[1], (C, 1)), ln1_b=nrm(keys[2], (C, 1)),
        ln2_w=1.0 + nrm(keys[3], (C, 1)), ln2_b=nrm(keys[4], (C, 1)),
        # MHCA depthwise convs (Conv1d weight (C,1,3) squeezed to (C,3)), bias=False
        q_dw=nrm(keys[5], (C, 3)), k_dw=nrm(keys[6], (C, 3)), v_dw=nrm(keys[7], (C, 3)),
        # query/key/value channel-LayerNorms
        qn_w=1.0 + nrm(keys[8], (C, 1)), qn_b=nrm(keys[9], (C, 1)),
        kn_w=1.0 + nrm(keys[10], (C, 1)), kn_b=nrm(keys[11], (C, 1)),
        vn_w=1.0 + nrm(keys[12], (C, 1)), vn_b=nrm(keys[13], (C, 1)),
        # 1x1 conv (pointwise) weights (C,C) and biases (C,1)
        q_w=nrm(keys[14], (C, C)), q_b=nrm(keys[15], (C, 1)),
        k_w=nrm(keys[16], (C, C)), k_b=nrm(keys[17], (C, 1)),
        v_w=nrm(keys[18], (C, C)), v_b=nrm(keys[19], (C, 1)),
        proj_w=nrm(keys[20], (C, C)), proj_b=nrm(keys[21], (C, 1)),
        # MLP: Conv1d(C, 4C, 1) -> GELU -> Conv1d(4C, C, 1)
        fc1_w=nrm(keys[22], (N_HIDDEN, C)), fc1_b=nrm(keys[23], (N_HIDDEN, 1)),
        fc2_w=nrm(keys[24], (C, N_HIDDEN)), fc2_b=nrm(keys[25], (C, 1)),
    )

    out, out_mask = time_transformer_block(x, mask_bool, params)
    out = jax.block_until_ready(out)

    ref_out, ref_mask = ref_forward(x, mask_bool, params)
    max_err = float(jnp.max(jnp.abs(out - ref_out)))

    assert out.shape == (B, C, T) and out_mask.shape == (B, 1, T)
    assert out_mask.dtype == jnp.bool_
    assert bool(jnp.all(out_mask == ref_mask))
    assert jnp.allclose(out, ref_out, atol=1e-3, rtol=1e-3), max_err

    print("KERNEL_OK")
</pallas_src>

<mosaic_0001>
module attributes {stable_mosaic.version = 11 : i64} {
  func.func @block_kernel(%arg0: i32, %arg1: memref<1x32x128xf32, #tpu.memory_space<vmem>>, %arg2: memref<1x1x128xf32, #tpu.memory_space<vmem>>, %arg3: memref<32x1xf32, #tpu.memory_space<vmem>>, %arg4: memref<32x1xf32, #tpu.memory_space<vmem>>, %arg5: memref<3x32x3xf32, #tpu.memory_space<vmem>>, %arg6: memref<3x32x1xf32, #tpu.memory_space<vmem>>, %arg7: memref<3x32x1xf32, #tpu.memory_space<vmem>>, %arg8: memref<3x32x32xf32, #tpu.memory_space<vmem>>, %arg9: memref<3x32x1xf32, #tpu.memory_space<vmem>>, %arg10: memref<32x32xf32, #tpu.memory_space<vmem>>, %arg11: memref<32x1xf32, #tpu.memory_space<vmem>>, %arg12: memref<32x1xf32, #tpu.memory_space<vmem>>, %arg13: memref<32x1xf32, #tpu.memory_space<vmem>>, %arg14: memref<128x32xf32, #tpu.memory_space<vmem>>, %arg15: memref<128x1xf32, #tpu.memory_space<vmem>>, %arg16: memref<32x128xf32, #tpu.memory_space<vmem>>, %arg17: memref<32x1xf32, #tpu.memory_space<vmem>>, %arg18: memref<1x32x128xf32, #tpu.memory_space<vmem>>) attributes {dimension_semantics = [#tpu.dimension_semantics<parallel>], iteration_bounds = array<i64: 2>, scalar_prefetch = 0 : i64, scratch_operands = 0 : i64, tpu.core_type = #tpu.core_type<tc>, window_params = [{transform_indices = @transform_0, window_bounds = array<i64: 1, 32, 128>}, {transform_indices = @transform_1, window_bounds = array<i64: 1, 1, 128>}, {pipeline_mode = #tpu.pipeline_mode<synchronous>, transform_indices = @transform_2, window_bounds = array<i64: 32, 1>}, {pipeline_mode = #tpu.pipeline_mode<synchronous>, transform_indices = @transform_3, window_bounds = array<i64: 32, 1>}, {pipeline_mode = #tpu.pipeline_mode<synchronous>, transform_indices = @transform_4, window_bounds = array<i64: 3, 32, 3>}, {pipeline_mode = #tpu.pipeline_mode<synchronous>, transform_indices = @transform_5, window_bounds = array<i64: 3, 32, 1>}, {pipeline_mode = #tpu.pipeline_mode<synchronous>, transform_indices = @transform_6, window_bounds = array<i64: 3, 32, 1>}, {pipeline_mode = #tpu.pipeline_mode<synchronous>, transform_indices = @transform_7, window_bounds = array<i64: 3, 32, 32>}, {pipeline_mode = #tpu.pipeline_mode<synchronous>, transform_indices = @transform_8, window_bounds = array<i64: 3, 32, 1>}, {pipeline_mode = #tpu.pipeline_mode<synchronous>, transform_indices = @transform_9, window_bounds = array<i64: 32, 32>}, {pipeline_mode = #tpu.pipeline_mode<synchronous>, transform_indices = @transform_10, window_bounds = array<i64: 32, 1>}, {pipeline_mode = #tpu.pipeline_mode<synchronous>, transform_indices = @transform_11, window_bounds = array<i64: 32, 1>}, {pipeline_mode = #tpu.pipeline_mode<synchronous>, transform_indices = @transform_12, window_bounds = array<i64: 32, 1>}, {pipeline_mode = #tpu.pipeline_mode<synchronous>, transform_indices = @transform_13, window_bounds = array<i64: 128, 32>}, {pipeline_mode = #tpu.pipeline_mode<synchronous>, transform_indices = @transform_14, window_bounds = array<i64: 128, 1>}, {pipeline_mode = #tpu.pipeline_mode<synchronous>, transform_indices = @transform_15, window_bounds = array<i64: 32, 128>}, {pipeline_mode = #tpu.pipeline_mode<synchronous>, transform_indices = @transform_16, window_bounds = array<i64: 32, 1>}, {transform_indices = @transform_17, window_bounds = array<i64: 1, 32, 128>}]} {
    %c0 = arith.constant 0 : index
    %c0_0 = arith.constant 0 : index
    %c0_1 = arith.constant 0 : index
    %0 = vector.load %arg1[%c0, %c0_0, %c0_1] : memref<1x32x128xf32, #tpu.memory_space<vmem>>, vector<1x32x128xf32>
    %1 = vector.shape_cast %0 : vector<1x32x128xf32> to vector<32x128xf32>
    %c0_2 = arith.constant 0 : index
    %c0_3 = arith.constant 0 : index
    %c0_4 = arith.constant 0 : index
    %2 = vector.load %arg2[%c0_2, %c0_3, %c0_4] : memref<1x1x128xf32, #tpu.memory_space<vmem>>, vector<1x1x128xf32>
    %3 = vector.shape_cast %2 : vector<1x1x128xf32> to vector<1x128xf32>
    %c0_5 = arith.constant 0 : index
    %c0_6 = arith.constant 0 : index
    %4 = vector.load %arg3[%c0_5, %c0_6] : memref<32x1xf32, #tpu.memory_space<vmem>>, vector<32x1xf32>
    %c0_7 = arith.constant 0 : index
    %c0_8 = arith.constant 0 : index
    %5 = vector.load %arg4[%c0_7, %c0_8] : memref<32x1xf32, #tpu.memory_space<vmem>>, vector<32x1xf32>
    %cst = arith.constant dense<0.000000e+00> : vector<128xf32>
    %6 = vector.multi_reduction <add>, %1, %cst [0] : vector<32x128xf32> to vector<128xf32>
    %7 = vector.shape_cast %6 : vector<128xf32> to vector<1x128xf32>
    %cst_9 = arith.constant 3.200000e+01 : f32
    %8 = vector.broadcast %cst_9 : f32 to vector<1x128xf32>
    %9 = arith.divf %7, %8 : vector<1x128xf32>
    %10 = vector.broadcast %9 : vector<1x128xf32> to vector<32x128xf32>
    %11 = arith.subf %1, %10 : vector<32x128xf32>
    %12 = arith.mulf %11, %11 : vector<32x128xf32>
    %cst_10 = arith.constant dense<0.000000e+00> : vector<128xf32>
    %13 = vector.multi_reduction <add>, %12, %cst_10 [0] : vector<32x128xf32> to vector<128xf32>
    %14 = vector.shape_cast %13 : vector<128xf32> to vector<1x128xf32>
    %cst_11 = arith.constant 3.200000e+01 : f32
    %15 = vector.broadcast %cst_11 : f32 to vector<1x128xf32>
    %16 = arith.divf %14, %15 : vector<1x128xf32>
    %cst_12 = arith.constant 9.99999974E-6 : f32
    %17 = vector.broadcast %cst_12 : f32 to vector<1x128xf32>
    %18 = arith.addf %16, %17 : vector<1x128xf32>
    %19 = math.sqrt %18 : vector<1x128xf32>
    %20 = vector.broadcast %19 : vector<1x128xf32> to vector<32x128xf32>
    %21 = arith.divf %11, %20 : vector<32x128xf32>
    %22 = vector.broadcast %4 : vector<32x1xf32> to vector<32x128xf32>
    %23 = arith.mulf %21, %22 : vector<32x128xf32>
    %24 = vector.broadcast %5 : vector<32x1xf32> to vector<32x128xf32>
    %25 = arith.addf %23, %24 : vector<32x128xf32>
    %c0_13 = arith.constant 0 : index
    %c0_14 = arith.constant 0 : index
    %c0_15 = arith.constant 0 : index
    %26 = vector.load %arg5[%c0_13, %c0_14, %c0_15] : memref<3x32x3xf32, #tpu.memory_space<vmem>>, vector<1x32x3xf32>
    %27 = vector.shape_cast %26 : vector<1x32x3xf32> to vector<32x3xf32>
    %cst_16 = arith.constant 0.000000e+00 : f32
    %28 = vector.broadcast %cst_16 : f32 to vector<32x1xf32>
    %29 = vector.extract_strided_slice %25 {offsets = [0, 0], sizes = [32, 127], strides = [1, 1]} : vector<32x128xf32> to vector<32x127xf32>
    %30 = tpu.concatenate %28, %29 in 1 : vector<32x1xf32>, vector<32x127xf32> -> vector<32x128xf32>
    %31 = vector.extract_strided_slice %25 {offsets = [0, 1], sizes = [32, 127], strides = [1, 1]} : vector<32x128xf32> to vector<32x127xf32>
    %32 = tpu.concatenate %31, %28 in 1 : vector<32x127xf32>, vector<32x1xf32> -> vector<32x128xf32>
    %33 = vector.extract_strided_slice %27 {offsets = [0, 0], sizes = [32, 1], strides = [1, 1]} : vector<32x3xf32> to vector<32x1xf32>
    %34 = vector.broadcast %33 : vector<32x1xf32> to vector<32x128xf32>
    %35 = arith.mulf %34, %30 : vector<32x128xf32>
    %36 = vector.extract_strided_slice %27 {offsets = [0, 1], sizes = [32, 1], strides = [1, 1]} : vector<32x3xf32> to vector<32x1xf32>
    %37 = vector.broadcast %36 : vector<32x1xf32> to vector<32x128xf32>
    %38 = arith.mulf %37, %25 : vector<32x128xf32>
    %39 = arith.addf %35, %38 : vector<32x128xf32>
    %40 = vector.extract_strided_slice %27 {offsets = [0, 2], sizes = [32, 1], strides = [1, 1]} : vector<32x3xf32> to vector<32x1xf32>
    %41 = vector.broadcast %40 : vector<32x1xf32> to vector<32x128xf32>
    %42 = arith.mulf %41, %32 : vector<32x128xf32>
    %43 = arith.addf %39, %42 : vector<32x128xf32>
    %44 = vector.broadcast %3 : vector<1x128xf32> to vector<32x128xf32>
    %45 = arith.mulf %43, %44 : vector<32x128xf32>
    %c0_17 = arith.constant 0 : index
    %c0_18 = arith.constant 0 : index
    %c0_19 = arith.constant 0 : index
    %46 = vector.load %arg6[%c0_17, %c0_18, %c0_19] : memref<3x32x1xf32, #tpu.memory_space<vmem>>, vector<1x32x1xf32>
    %47 = vector.shape_cast %46 : vector<1x32x1xf32> to vector<32x1xf32>
    %c0_20 = arith.constant 0 : index
    %c0_21 = arith.constant 0 : index
    %c0_22 = arith.constant 0 : index
    %48 = vector.load %arg7[%c0_20, %c0_21, %c0_22] : memref<3x32x1xf32, #tpu.memory_space<vmem>>, vector<1x32x1xf32>
    %49 = vector.shape_cast %48 : vector<1x32x1xf32> to vector<32x1xf32>
    %cst_23 = arith.constant dense<0.000000e+00> : vector<128xf32>
    %50 = vector.multi_reduction <add>, %45, %cst_23 [0] : vector<32x128xf32> to vector<128xf32>
    %51 = vector.shape_cast %50 : vector<128xf32> to vector<1x128xf32>
    %cst_24 = arith.constant 3.200000e+01 : f32
    %52 = vector.broadcast %cst_24 : f32 to vector<1x128xf32>
    %53 = arith.divf %51, %52 : vector<1x128xf32>
    %54 = vector.broadcast %53 : vector<1x128xf32> to vector<32x128xf32>
    %55 = arith.subf %45, %54 : vector<32x128xf32>
    %56 = arith.mulf %55, %55 : vector<32x128xf32>
    %cst_25 = arith.constant dense<0.000000e+00> : vector<128xf32>
    %57 = vector.multi_reduction <add>, %56, %cst_25 [0] : vector<32x128xf32> to vector<128xf32>
    %58 = vector.shape_cast %57 : vector<128xf32> to vector<1x128xf32>
    %cst_26 = arith.constant 3.200000e+01 : f32
    %59 = vector.broadcast %cst_26 : f32 to vector<1x128xf32>
    %60 = arith.divf %58, %59 : vector<1x128xf32>
    %cst_27 = arith.constant 9.99999974E-6 : f32
    %61 = vector.broadcast %cst_27 : f32 to vector<1x128xf32>
    %62 = arith.addf %60, %61 : vector<1x128xf32>
    %63 = math.sqrt %62 : vector<1x128xf32>
    %64 = vector.broadcast %63 : vector<1x128xf32> to vector<32x128xf32>
    %65 = arith.divf %55, %64 : vector<32x128xf32>
    %66 = vector.broadcast %47 : vector<32x1xf32> to vector<32x128xf32>
    %67 = arith.mulf %65, %66 : vector<32x128xf32>
    %68 = vector.broadcast %49 : vector<32x1xf32> to vector<32x128xf32>
    %69 = arith.addf %67, %68 : vector<32x128xf32>
    %c0_28 = arith.constant 0 : index
    %c0_29 = arith.constant 0 : index
    %c0_30 = arith.constant 0 : index
    %70 = vector.load %arg8[%c0_28, %c0_29, %c0_30] : memref<3x32x32xf32, #tpu.memory_space<vmem>>, vector<1x32x32xf32>
    %71 = vector.shape_cast %70 : vector<1x32x32xf32> to vector<32x32xf32>
    %cst_31 = arith.constant dense<0.000000e+00> : vector<32x128xf32>
    %72 = tpu.matmul %71, %69, %cst_31 {dimension_numbers = #tpu.dot_dimension_numbers<[1], [0], [0], [1], [0, 0, 1, 1], [], []>} : vector<32x32xf32>, vector<32x128xf32>, vector<32x128xf32> -> vector<32x128xf32>
    %c0_32 = arith.constant 0 : index
    %c0_33 = arith.constant 0 : index
    %c0_34 = arith.constant 0 : index
    %73 = vector.load %arg9[%c0_32, %c0_33, %c0_34] : memref<3x32x1xf32, #tpu.memory_space<vmem>>, vector<1x32x1xf32>
    %74 = vector.shape_cast %73 : vector<1x32x1xf32> to vector<32x1xf32>
    %75 = vector.broadcast %74 : vector<32x1xf32> to vector<32x128xf32>
    %76 = arith.addf %72, %75 : vector<32x128xf32>
    %cst_35 = arith.constant 0.353553385 : f32
    %77 = vector.broadcast %cst_35 : f32 to vector<32x128xf32>
    %78 = arith.mulf %76, %77 : vector<32x128xf32>
    %c1 = arith.constant 1 : index
    %c0_36 = arith.constant 0 : index
    %c0_37 = arith.constant 0 : index
    %79 = vector.load %arg5[%c1, %c0_36, %c0_37] : memref<3x32x3xf32, #tpu.memory_space<vmem>>, vector<1x32x3xf32>
    %80 = vector.shape_cast %79 : vector<1x32x3xf32> to vector<32x3xf32>
    %cst_38 = arith.constant 0.000000e+00 : f32
    %81 = vector.broadcast %cst_38 : f32 to vector<32x1xf32>
    %82 = vector.extract_strided_slice %25 {offsets = [0, 0], sizes = [32, 127], strides = [1, 1]} : vector<32x128xf32> to vector<32x127xf32>
    %83 = tpu.concatenate %81, %82 in 1 : vector<32x1xf32>, vector<32x127xf32> -> vector<32x128xf32>
    %84 = vector.extract_strided_slice %25 {offsets = [0, 1], sizes = [32, 127], strides = [1, 1]} : vector<32x128xf32> to vector<32x127xf32>
    %85 = tpu.concatenate %84, %81 in 1 : vector<32x127xf32>, vector<32x1xf32> -> vector<32x128xf32>
    %86 = vector.extract_strided_slice %80 {offsets = [0, 0], sizes = [32, 1], strides = [1, 1]} : vector<32x3xf32> to vector<32x1xf32>
    %87 = vector.broadcast %86 : vector<32x1xf32> to vector<32x128xf32>
    %88 = arith.mulf %87, %83 : vector<32x128xf32>
    %89 = vector.extract_strided_slice %80 {offsets = [0, 1], sizes = [32, 1], strides = [1, 1]} : vector<32x3xf32> to vector<32x1xf32>
    %90 = vector.broadcast %89 : vector<32x1xf32> to vector<32x128xf32>
    %91 = arith.mulf %90, %25 : vector<32x128xf32>
    %92 = arith.addf %88, %91 : vector<32x128xf32>
    %93 = vector.extract_strided_slice %80 {offsets = [0, 2], sizes = [32, 1], strides = [1, 1]} : vector<32x3xf32> to vector<32x1xf32>
    %94 = vector.broadcast %93 : vector<32x1xf32> to vector<32x128xf32>
    %95 = arith.mulf %94, %85 : vector<32x128xf32>
    %96 = arith.addf %92, %95 : vector<32x128xf32>
    %97 = vector.broadcast %3 : vector<1x128xf32> to vector<32x128xf32>
    %98 = arith.mulf %96, %97 : vector<32x128xf32>
    %c1_39 = arith.constant 1 : index
    %c0_40 = arith.constant 0 : index
    %c0_41 = arith.constant 0 : index
    %99 = vector.load %arg6[%c1_39, %c0_40, %c0_41] : memref<3x32x1xf32, #tpu.memory_space<vmem>>, vector<1x32x1xf32>
    %100 = vector.shape_cast %99 : vector<1x32x1xf32> to vector<32x1xf32>
    %c1_42 = arith.constant 1 : index
    %c0_43 = arith.constant 0 : index
    %c0_44 = arith.constant 0 : index
    %101 = vector.load %arg7[%c1_42, %c0_43, %c0_44] : memref<3x32x1xf32, #tpu.memory_space<vmem>>, vector<1x32x1xf32>
    %102 = vector.shape_cast %101 : vector<1x32x1xf32> to vector<32x1xf32>
    %cst_45 = arith.constant dense<0.000000e+00> : vector<128xf32>
    %103 = vector.multi_reduction <add>, %98, %cst_45 [0] : vector<32x128xf32> to vector<128xf32>
    %104 = vector.shape_cast %103 : vector<128xf32> to vector<1x128xf32>
    %cst_46 = arith.constant 3.200000e+01 : f32
    %105 = vector.broadcast %cst_46 : f32 to vector<1x128xf32>
    %106 = arith.divf %104, %105 : vector<1x128xf32>
    %107 = vector.broadcast %106 : vector<1x128xf32> to vector<32x128xf32>
    %108 = arith.subf %98, %107 : vector<32x128xf32>
    %109 = arith.mulf %108, %108 : vector<32x128xf32>
    %cst_47 = arith.constant dense<0.000000e+00> : vector<128xf32>
    %110 = vector.multi_reduction <add>, %109, %cst_47 [0] : vector<32x128xf32> to vector<128xf32>
    %111 = vector.shape_cast %110 : vector<128xf32> to vector<1x128xf32>
    %cst_48 = arith.constant 3.200000e+01 : f32
    %112 = vector.broadcast %cst_48 : f32 to vector<1x128xf32>
    %113 = arith.divf %111, %112 : vector<1x128xf32>
    %cst_49 = arith.constant 9.99999974E-6 : f32
    %114 = vector.broadcast %cst_49 : f32 to vector<1x128xf32>
    %115 = arith.addf %113, %114 : vector<1x128xf32>
    %116 = math.sqrt %115 : vector<1x128xf32>
    %117 = vector.broadcast %116 : vector<1x128xf32> to vector<32x128xf32>
    %118 = arith.divf %108, %117 : vector<32x128xf32>
    %119 = vector.broadcast %100 : vector<32x1xf32> to vector<32x128xf32>
    %120 = arith.mulf %118, %119 : vector<32x128xf32>
    %121 = vector.broadcast %102 : vector<32x1xf32> to vector<32x128xf32>
    %122 = arith.addf %120, %121 : vector<32x128xf32>
    %c1_50 = arith.constant 1 : index
    %c0_51 = arith.constant 0 : index
    %c0_52 = arith.constant 0 : index
    %123 = vector.load %arg8[%c1_50, %c0_51, %c0_52] : memref<3x32x32xf32, #tpu.memory_space<vmem>>, vector<1x32x32xf32>
    %124 = vector.shape_cast %123 : vector<1x32x32xf32> to vector<32x32xf32>
    %cst_53 = arith.constant dense<0.000000e+00> : vector<32x128xf32>
    %125 = tpu.matmul %124, %122, %cst_53 {dimension_numbers = #tpu.dot_dimension_numbers<[1], [0], [0], [1], [0, 0, 1, 1], [], []>} : vector<32x32xf32>, vector<32x128xf32>, vector<32x128xf32> -> vector<32x128xf32>
    %c1_54 = arith.constant 1 : index
    %c0_55 = arith.constant 0 : index
    %c0_56 = arith.constant 0 : index
    %126 = vector.load %arg9[%c1_54, %c0_55, %c0_56] : memref<3x32x1xf32, #tpu.memory_space<vmem>>, vector<1x32x1xf32>
    %127 = vector.shape_cast %126 : vector<1x32x1xf32> to vector<32x1xf32>
    %128 = vector.broadcast %127 : vector<32x1xf32> to vector<32x128xf32>
    %129 = arith.addf %125, %128 : vector<32x128xf32>
    %c2 = arith.constant 2 : index
    %c0_57 = arith.constant 0 : index
    %c0_58 = arith.constant 0 : index
    %130 = vector.load %arg5[%c2, %c0_57, %c0_58] : memref<3x32x3xf32, #tpu.memory_space<vmem>>, vector<1x32x3xf32>
    %131 = vector.shape_cast %130 : vector<1x32x3xf32> to vector<32x3xf32>
    %cst_59 = arith.constant 0.000000e+00 : f32
    %132 = vector.broadcast %cst_59 : f32 to vector<32x1xf32>
    %133 = vector.extract_strided_slice %25 {offsets = [0, 0], sizes = [32, 127], strides = [1, 1]} : vector<32x128xf32> to vector<32x127xf32>
    %134 = tpu.concatenate %132, %133 in 1 : vector<32x1xf32>, vector<32x127xf32> -> vector<32x128xf32>
    %135 = vector.extract_strided_slice %25 {offsets = [0, 1], sizes = [32, 127], strides = [1, 1]} : vector<32x128xf32> to vector<32x127xf32>
    %136 = tpu.concatenate %135, %132 in 1 : vector<32x127xf32>, vector<32x1xf32> -> vector<32x128xf32>
    %137 = vector.extract_strided_slice %131 {offsets = [0, 0], sizes = [32, 1], strides = [1, 1]} : vector<32x3xf32> to vector<32x1xf32>
    %138 = vector.broadcast %137 : vector<32x1xf32> to vector<32x128xf32>
    %139 = arith.mulf %138, %134 : vector<32x128xf32>
    %140 = vector.extract_strided_slice %131 {offsets = [0, 1], sizes = [32, 1], strides = [1, 1]} : vector<32x3xf32> to vector<32x1xf32>
    %141 = vector.broadcast %140 : vector<32x1xf32> to vector<32x128xf32>
    %142 = arith.mulf %141, %25 : vector<32x128xf32>
    %143 = arith.addf %139, %142 : vector<32x128xf32>
    %144 = vector.extract_strided_slice %131 {offsets = [0, 2], sizes = [32, 1], strides = [1, 1]} : vector<32x3xf32> to vector<32x1xf32>
    %145 = vector.broadcast %144 : vector<32x1xf32> to vector<32x128xf32>
    %146 = arith.mulf %145, %136 : vector<32x128xf32>
    %147 = arith.addf %143, %146 : vector<32x128xf32>
    %148 = vector.broadcast %3 : vector<1x128xf32> to vector<32x128xf32>
    %149 = arith.mulf %147, %148 : vector<32x128xf32>
    %c2_60 = arith.constant 2 : index
    %c0_61 = arith.constant 0 : index
    %c0_62 = arith.constant 0 : index
    %150 = vector.load %arg6[%c2_60, %c0_61, %c0_62] : memref<3x32x1xf32, #tpu.memory_space<vmem>>, vector<1x32x1xf32>
    %151 = vector.shape_cast %150 : vector<1x32x1xf32> to vector<32x1xf32>
    %c2_63 = arith.constant 2 : index
    %c0_64 = arith.constant 0 : index
    %c0_65 = arith.constant 0 : index
    %152 = vector.load %arg7[%c2_63, %c0_64, %c0_65] : memref<3x32x1xf32, #tpu.memory_space<vmem>>, vector<1x32x1xf32>
    %153 = vector.shape_cast %152 : vector<1x32x1xf32> to vector<32x1xf32>
    %cst_66 = arith.constant dense<0.000000e+00> : vector<128xf32>
    %154 = vector.multi_reduction <add>, %149, %cst_66 [0] : vector<32x128xf32> to vector<128xf32>
    %155 = vector.shape_cast %154 : vector<128xf32> to vector<1x128xf32>
    %cst_67 = arith.constant 3.200000e+01 : f32
    %156 = vector.broadcast %cst_67 : f32 to vector<1x128xf32>
    %157 = arith.divf %155, %156 : vector<1x128xf32>
    %158 = vector.broadcast %157 : vector<1x128xf32> to vector<32x128xf32>
    %159 = arith.subf %149, %158 : vector<32x128xf32>
    %160 = arith.mulf %159, %159 : vector<32x128xf32>
    %cst_68 = arith.constant dense<0.000000e+00> : vector<128xf32>
    %161 = vector.multi_reduction <add>, %160, %cst_68 [0] : vector<32x128xf32> to vector<128xf32>
    %162 = vector.shape_cast %161 : vector<128xf32> to vector<1x128xf32>
    %cst_69 = arith.constant 3.200000e+01 : f32
    %163 = vector.broadcast %cst_69 : f32 to vector<1x128xf32>
    %164 = arith.divf %162, %163 : vector<1x128xf32>
    %cst_70 = arith.constant 9.99999974E-6 : f32
    %165 = vector.broadcast %cst_70 : f32 to vector<1x128xf32>
    %166 = arith.addf %164, %165 : vector<1x128xf32>
    %167 = math.sqrt %166 : vector<1x128xf32>
    %168 = vector.broadcast %167 : vector<1x128xf32> to vector<32x128xf32>
    %169 = arith.divf %159, %168 : vector<32x128xf32>
    %170 = vector.broadcast %151 : vector<32x1xf32> to vector<32x128xf32>
    %171 = arith.mulf %169, %170 : vector<32x128xf32>
    %172 = vector.broadcast %153 : vector<32x1xf32> to vector<32x128xf32>
    %173 = arith.addf %171, %172 : vector<32x128xf32>
    %c2_71 = arith.constant 2 : index
    %c0_72 = arith.constant 0 : index
    %c0_73 = arith.constant 0 : index
    %174 = vector.load %arg8[%c2_71, %c0_72, %c0_73] : memref<3x32x32xf32, #tpu.memory_space<vmem>>, vector<1x32x32xf32>
    %175 = vector.shape_cast %174 : vector<1x32x32xf32> to vector<32x32xf32>
    %cst_74 = arith.constant dense<0.000000e+00> : vector<32x128xf32>
    %176 = tpu.matmul %175, %173, %cst_74 {dimension_numbers = #tpu.dot_dimension_numbers<[1], [0], [0], [1], [0, 0, 1, 1], [], []>} : vector<32x32xf32>, vector<32x128xf32>, vector<32x128xf32> -> vector<32x128xf32>
    %c2_75 = arith.constant 2 : index
    %c0_76 = arith.constant 0 : index
    %c0_77 = arith.constant 0 : index
    %177 = vector.load %arg9[%c2_75, %c0_76, %c0_77] : memref<3x32x1xf32, #tpu.memory_space<vmem>>, vector<1x32x1xf32>
    %178 = vector.shape_cast %177 : vector<1x32x1xf32> to vector<32x1xf32>
    %179 = vector.broadcast %178 : vector<32x1xf32> to vector<32x128xf32>
    %180 = arith.addf %176, %179 : vector<32x128xf32>
    %181 = vector.broadcast %3 : vector<1x128xf32> to vector<32x128xf32>
    %182 = arith.mulf %180, %181 : vector<32x128xf32>
    %183 = tpu.transpose %78, [1, 0] : vector<32x128xf32> -> vector<128x32xf32>
    %184 = vector.extract_strided_slice %183 {offsets = [0, 0], sizes = [128, 8], strides = [1, 1]} : vector<128x32xf32> to vector<128x8xf32>
    %185 = vector.extract_strided_slice %129 {offsets = [0, 0], sizes = [8, 128], strides = [1, 1]} : vector<32x128xf32> to vector<8x128xf32>
    %cst_78 = arith.constant dense<0.000000e+00> : vector<128x128xf32>
    %186 = tpu.matmul %184, %185, %cst_78 {dimension_numbers = #tpu.dot_dimension_numbers<[1], [0], [0], [1], [0, 0, 1, 1], [], []>} : vector<128x8xf32>, vector<8x128xf32>, vector<128x128xf32> -> vector<128x128xf32>
    %cst_79 = arith.constant dense<0xFF800000> : vector<128xf32>
    %187 = vector.multi_reduction <maximumf>, %186, %cst_79 [1] : vector<128x128xf32> to vector<128xf32>
    %188 = vector.shape_cast %187 : vector<128xf32> to vector<128x1xf32>
    %189 = vector.broadcast %188 : vector<128x1xf32> to vector<128x128xf32>
    %190 = arith.subf %186, %189 : vector<128x128xf32>
    %191 = math.exp %190 : vector<128x128xf32>
    %cst_80 = arith.constant dense<0.000000e+00> : vector<128xf32>
    %192 = vector.multi_reduction <add>, %191, %cst_80 [1] : vector<128x128xf32> to vector<128xf32>
    %193 = vector.shape_cast %192 : vector<128xf32> to vector<128x1xf32>
    %194 = tpu.reciprocal %193 : vector<128x1xf32> -> vector<128x1xf32>
    %195 = vector.broadcast %194 : vector<128x1xf32> to vector<128x128xf32>
    %196 = arith.mulf %191, %195 : vector<128x128xf32>
    %197 = vector.extract_strided_slice %182 {offsets = [0, 0], sizes = [8, 128], strides = [1, 1]} : vector<32x128xf32> to vector<8x128xf32>
    %cst_81 = arith.constant dense<0.000000e+00> : vector<8x128xf32>
    %198 = tpu.matmul %197, %196, %cst_81 {dimension_numbers = #tpu.dot_dimension_numbers<[1], [1], [0], [0], [0, 0, 1, 0], [], []>} : vector<8x128xf32>, vector<128x128xf32>, vector<8x128xf32> -> vector<8x128xf32>
    %199 = vector.extract_strided_slice %183 {offsets = [0, 8], sizes = [128, 8], strides = [1, 1]} : vector<128x32xf32> to vector<128x8xf32>
    %200 = vector.extract_strided_slice %129 {offsets = [8, 0], sizes = [8, 128], strides = [1, 1]} : vector<32x128xf32> to vector<8x128xf32>
    %cst_82 = arith.constant dense<0.000000e+00> : vector<128x128xf32>
    %201 = tpu.matmul %199, %200, %cst_82 {dimension_numbers = #tpu.dot_dimension_numbers<[1], [0], [0], [1], [0, 0, 1, 1], [], []>} : vector<128x8xf32>, vector<8x128xf32>, vector<128x128xf32> -> vector<128x128xf32>
    %cst_83 = arith.constant dense<0xFF800000> : vector<128xf32>
    %202 = vector.multi_reduction <maximumf>, %201, %cst_83 [1] : vector<128x128xf32> to vector<128xf32>
    %203 = vector.shape_cast %202 : vector<128xf32> to vector<128x1xf32>
    %204 = vector.broadcast %203 : vector<128x1xf32> to vector<128x128xf32>
    %205 = arith.subf %201, %204 : vector<128x128xf32>
    %206 = math.exp %205 : vector<128x128xf32>
    %cst_84 = arith.constant dense<0.000000e+00> : vector<128xf32>
    %207 = vector.multi_reduction <add>, %206, %cst_84 [1] : vector<128x128xf32> to vector<128xf32>
    %208 = vector.shape_cast %207 : vector<128xf32> to vector<128x1xf32>
    %209 = tpu.reciprocal %208 : vector<128x1xf32> -> vector<128x1xf32>
    %210 = vector.broadcast %209 : vector<128x1xf32> to vector<128x128xf32>
    %211 = arith.mulf %206, %210 : vector<128x128xf32>
    %212 = vector.extract_strided_slice %182 {offsets = [8, 0], sizes = [8, 128], strides = [1, 1]} : vector<32x128xf32> to vector<8x128xf32>
    %cst_85 = arith.constant dense<0.000000e+00> : vector<8x128xf32>
    %213 = tpu.matmul %212, %211, %cst_85 {dimension_numbers = #tpu.dot_dimension_numbers<[1], [1], [0], [0], [0, 0, 1, 0], [], []>} : vector<8x128xf32>, vector<128x128xf32>, vector<8x128xf32> -> vector<8x128xf32>
    %214 = vector.extract_strided_slice %183 {offsets = [0, 16], sizes = [128, 8], strides = [1, 1]} : vector<128x32xf32> to vector<128x8xf32>
    %215 = vector.extract_strided_slice %129 {offsets = [16, 0], sizes = [8, 128], strides = [1, 1]} : vector<32x128xf32> to vector<8x128xf32>
    %cst_86 = arith.constant dense<0.000000e+00> : vector<128x128xf32>
    %216 = tpu.matmul %214, %215, %cst_86 {dimension_numbers = #tpu.dot_dimension_numbers<[1], [0], [0], [1], [0, 0, 1, 1], [], []>} : vector<128x8xf32>, vector<8x128xf32>, vector<128x128xf32> -> vector<128x128xf32>
    %cst_87 = arith.constant dense<0xFF800000> : vector<128xf32>
    %217 = vector.multi_reduction <maximumf>, %216, %cst_87 [1] : vector<128x128xf32> to vector<128xf32>
    %218 = vector.shape_cast %217 : vector<128xf32> to vector<128x1xf32>
    %219 = vector.broadcast %218 : vector<128x1xf32> to vector<128x128xf32>
    %220 = arith.subf %216, %219 : vector<128x128xf32>
    %221 = math.exp %220 : vector<128x128xf32>
    %cst_88 = arith.constant dense<0.000000e+00> : vector<128xf32>
    %222 = vector.multi_reduction <add>, %221, %cst_88 [1] : vector<128x128xf32> to vector<128xf32>
    %223 = vector.shape_cast %222 : vector<128xf32> to vector<128x1xf32>
    %224 = tpu.reciprocal %223 : vector<128x1xf32> -> vector<128x1xf32>
    %225 = vector.broadcast %224 : vector<128x1xf32> to vector<128x128xf32>
    %226 = arith.mulf %221, %225 : vector<128x128xf32>
    %227 = vector.extract_strided_slice %182 {offsets = [16, 0], sizes = [8, 128], strides = [1, 1]} : vector<32x128xf32> to vector<8x128xf32>
    %cst_89 = arith.constant dense<0.000000e+00> : vector<8x128xf32>
    %228 = tpu.matmul %227, %226, %cst_89 {dimension_numbers = #tpu.dot_dimension_numbers<[1], [1], [0], [0], [0, 0, 1, 0], [], []>} : vector<8x128xf32>, vector<128x128xf32>, vector<8x128xf32> -> vector<8x128xf32>
    %229 = vector.extract_strided_slice %183 {offsets = [0, 24], sizes = [128, 8], strides = [1, 1]} : vector<128x32xf32> to vector<128x8xf32>
    %230 = vector.extract_strided_slice %129 {offsets = [24, 0], sizes = [8, 128], strides = [1, 1]} : vector<32x128xf32> to vector<8x128xf32>
    %cst_90 = arith.constant dense<0.000000e+00> : vector<128x128xf32>
    %231 = tpu.matmul %229, %230, %cst_90 {dimension_numbers = #tpu.dot_dimension_numbers<[1], [0], [0], [1], [0, 0, 1, 1], [], []>} : vector<128x8xf32>, vector<8x128xf32>, vector<128x128xf32> -> vector<128x128xf32>
    %cst_91 = arith.constant dense<0xFF800000> : vector<128xf32>
    %232 = vector.multi_reduction <maximumf>, %231, %cst_91 [1] : vector<128x128xf32> to vector<128xf32>
    %233 = vector.shape_cast %232 : vector<128xf32> to vector<128x1xf32>
    %234 = vector.broadcast %233 : vector<128x1xf32> to vector<128x128xf32>
    %235 = arith.subf %231, %234 : vector<128x128xf32>
    %236 = math.exp %235 : vector<128x128xf32>
    %cst_92 = arith.constant dense<0.000000e+00> : vector<128xf32>
    %237 = vector.multi_reduction <add>, %236, %cst_92 [1] : vector<128x128xf32> to vector<128xf32>
    %238 = vector.shape_cast %237 : vector<128xf32> to vector<128x1xf32>
    %239 = tpu.reciprocal %238 : vector<128x1xf32> -> vector<128x1xf32>
    %240 = vector.broadcast %239 : vector<128x1xf32> to vector<128x128xf32>
    %241 = arith.mulf %236, %240 : vector<128x128xf32>
    %242 = vector.extract_strided_slice %182 {offsets = [24, 0], sizes = [8, 128], strides = [1, 1]} : vector<32x128xf32> to vector<8x128xf32>
    %cst_93 = arith.constant dense<0.000000e+00> : vector<8x128xf32>
    %243 = tpu.matmul %242, %241, %cst_93 {dimension_numbers = #tpu.dot_dimension_numbers<[1], [1], [0], [0], [0, 0, 1, 0], [], []>} : vector<8x128xf32>, vector<128x128xf32>, vector<8x128xf32> -> vector<8x128xf32>
    %244 = tpu.concatenate %198, %213, %228, %243 in 0 : vector<8x128xf32>, vector<8x128xf32>, vector<8x128xf32>, vector<8x128xf32> -> vector<32x128xf32>
    %c0_94 = arith.constant 0 : index
    %c0_95 = arith.constant 0 : index
    %245 = vector.load %arg10[%c0_94, %c0_95] : memref<32x32xf32, #tpu.memory_space<vmem>>, vector<32x32xf32>
    %cst_96 = arith.constant dense<0.000000e+00> : vector<32x128xf32>
    %246 = tpu.matmul %245, %244, %cst_96 {dimension_numbers = #tpu.dot_dimension_numbers<[1], [0], [0], [1], [0, 0, 1, 1], [], []>} : vector<32x32xf32>, vector<32x128xf32>, vector<32x128xf32> -> vector<32x128xf32>
    %c0_97 = arith.constant 0 : index
    %c0_98 = arith.constant 0 : index
    %247 = vector.load %arg11[%c0_97, %c0_98] : memref<32x1xf32, #tpu.memory_space<vmem>>, vector<32x1xf32>
    %248 = vector.broadcast %247 : vector<32x1xf32> to vector<32x128xf32>
    %249 = arith.addf %246, %248 : vector<32x128xf32>
    %250 = vector.broadcast %3 : vector<1x128xf32> to vector<32x128xf32>
    %251 = arith.mulf %249, %250 : vector<32x128xf32>
    %252 = vector.broadcast %3 : vector<1x128xf32> to vector<32x128xf32>
    %253 = arith.mulf %1, %252 : vector<32x128xf32>
    %254 = arith.addf %253, %251 : vector<32x128xf32>
    %c0_99 = arith.constant 0 : index
    %c0_100 = arith.constant 0 : index
    %255 = vector.load %arg12[%c0_99, %c0_100] : memref<32x1xf32, #tpu.memory_space<vmem>>, vector<32x1xf32>
    %c0_101 = arith.constant 0 : index
    %c0_102 = arith.constant 0 : index
    %256 = vector.load %arg13[%c0_101, %c0_102] : memref<32x1xf32, #tpu.memory_space<vmem>>, vector<32x1xf32>
    %cst_103 = arith.constant dense<0.000000e+00> : vector<128xf32>
    %257 = vector.multi_reduction <add>, %254, %cst_103 [0] : vector<32x128xf32> to vector<128xf32>
    %258 = vector.shape_cast %257 : vector<128xf32> to vector<1x128xf32>
    %cst_104 = arith.constant 3.200000e+01 : f32
    %259 = vector.broadcast %cst_104 : f32 to vector<1x128xf32>
    %260 = arith.divf %258, %259 : vector<1x128xf32>
    %261 = vector.broadcast %260 : vector<1x128xf32> to vector<32x128xf32>
    %262 = arith.subf %254, %261 : vector<32x128xf32>
    %263 = arith.mulf %262, %262 : vector<32x128xf32>
    %cst_105 = arith.constant dense<0.000000e+00> : vector<128xf32>
    %264 = vector.multi_reduction <add>, %263, %cst_105 [0] : vector<32x128xf32> to vector<128xf32>
    %265 = vector.shape_cast %264 : vector<128xf32> to vector<1x128xf32>
    %cst_106 = arith.constant 3.200000e+01 : f32
    %266 = vector.broadcast %cst_106 : f32 to vector<1x128xf32>
    %267 = arith.divf %265, %266 : vector<1x128xf32>
    %cst_107 = arith.constant 9.99999974E-6 : f32
    %268 = vector.broadcast %cst_107 : f32 to vector<1x128xf32>
    %269 = arith.addf %267, %268 : vector<1x128xf32>
    %270 = math.sqrt %269 : vector<1x128xf32>
    %271 = vector.broadcast %270 : vector<1x128xf32> to vector<32x128xf32>
    %272 = arith.divf %262, %271 : vector<32x128xf32>
    %273 = vector.broadcast %255 : vector<32x1xf32> to vector<32x128xf32>
    %274 = arith.mulf %272, %273 : vector<32x128xf32>
    %275 = vector.broadcast %256 : vector<32x1xf32> to vector<32x128xf32>
    %276 = arith.addf %274, %275 : vector<32x128xf32>
    %c0_108 = arith.constant 0 : index
    %c0_109 = arith.constant 0 : index
    %277 = vector.load %arg14[%c0_108, %c0_109] : memref<128x32xf32, #tpu.memory_space<vmem>>, vector<128x32xf32>
    %cst_110 = arith.constant dense<0.000000e+00> : vector<128x128xf32>
    %278 = tpu.matmul %277, %276, %cst_110 {dimension_numbers = #tpu.dot_dimension_numbers<[1], [0], [0], [1], [0, 0, 1, 1], [], []>} : vector<128x32xf32>, vector<32x128xf32>, vector<128x128xf32> -> vector<128x128xf32>
    %c0_111 = arith.constant 0 : index
    %c0_112 = arith.constant 0 : index
    %279 = vector.load %arg15[%c0_111, %c0_112] : memref<128x1xf32, #tpu.memory_space<vmem>>, vector<128x1xf32>
    %280 = vector.broadcast %279 : vector<128x1xf32> to vector<128x128xf32>
    %281 = arith.addf %278, %280 : vector<128x128xf32>
    %cst_113 = arith.constant 5.000000e-01 : f32
    %282 = vector.broadcast %cst_113 : f32 to vector<128x128xf32>
    %283 = arith.mulf %282, %281 : vector<128x128xf32>
    %cst_114 = arith.constant 0.707106769 : f32
    %284 = vector.broadcast %cst_114 : f32 to vector<128x128xf32>
    %285 = arith.mulf %281, %284 : vector<128x128xf32>
    %286 = math.absf %285 : vector<128x128xf32>
    %cst_115 = arith.constant 0.327591091 : f32
    %287 = vector.broadcast %cst_115 : f32 to vector<128x128xf32>
    %288 = arith.mulf %287, %286 : vector<128x128xf32>
    %cst_116 = arith.constant 1.000000e+00 : f32
    %289 = vector.broadcast %cst_116 : f32 to vector<128x128xf32>
    %290 = arith.addf %289, %288 : vector<128x128xf32>
    %cst_117 = arith.constant 1.000000e+00 : f32
    %291 = vector.broadcast %cst_117 : f32 to vector<128x128xf32>
    %292 = arith.divf %291, %290 : vector<128x128xf32>
    %cst_118 = arith.constant 1.06140542 : f32
    %293 = vector.broadcast %cst_118 : f32 to vector<128x128xf32>
    %294 = arith.mulf %293, %292 : vector<128x128xf32>
    %cst_119 = arith.constant -1.45315206 : f32
    %295 = vector.broadcast %cst_119 : f32 to vector<128x128xf32>
    %296 = arith.addf %294, %295 : vector<128x128xf32>
    %297 = arith.mulf %296, %292 : vector<128x128xf32>
    %cst_120 = arith.constant 1.42141378 : f32
    %298 = vector.broadcast %cst_120 : f32 to vector<128x128xf32>
    %299 = arith.addf %297, %298 : vector<128x128xf32>
    %300 = arith.mulf %299, %292 : vector<128x128xf32>
    %cst_121 = arith.constant -0.284496725 : f32
    %301 = vector.broadcast %cst_121 : f32 to vector<128x128xf32>
    %302 = arith.addf %300, %301 : vector<128x128xf32>
    %303 = arith.mulf %302, %292 : vector<128x128xf32>
    %cst_122 = arith.constant 0.254829586 : f32
    %304 = vector.broadcast %cst_122 : f32 to vector<128x128xf32>
    %305 = arith.addf %303, %304 : vector<128x128xf32>
    %306 = arith.mulf %305, %292 : vector<128x128xf32>
    %cst_123 = arith.constant 0.000000e+00 : f32
    %307 = vector.broadcast %cst_123 : f32 to vector<128x128xf32>
    %308 = arith.subf %307, %286 : vector<128x128xf32>
    %309 = arith.mulf %308, %286 : vector<128x128xf32>
    %310 = math.exp %309 : vector<128x128xf32>
    %311 = arith.mulf %306, %310 : vector<128x128xf32>
    %cst_124 = arith.constant 1.000000e+00 : f32
    %312 = vector.broadcast %cst_124 : f32 to vector<128x128xf32>
    %313 = arith.subf %312, %311 : vector<128x128xf32>
    %cst_125 = arith.constant 0.000000e+00 : f32
    %314 = vector.broadcast %cst_125 : f32 to vector<128x128xf32>
    %315 = arith.cmpf oge, %285, %314 : vector<128x128xf32>
    %cst_126 = arith.constant 0.000000e+00 : f32
    %316 = vector.broadcast %cst_126 : f32 to vector<128x128xf32>
    %317 = arith.subf %316, %313 : vector<128x128xf32>
    %318 = arith.select %315, %313, %317 : vector<128x128xi1>, vector<128x128xf32>
    %cst_127 = arith.constant 1.000000e+00 : f32
    %319 = vector.broadcast %cst_127 : f32 to vector<128x128xf32>
    %320 = arith.addf %319, %318 : vector<128x128xf32>
    %321 = arith.mulf %283, %320 : vector<128x128xf32>
    %c0_128 = arith.constant 0 : index
    %c0_129 = arith.constant 0 : index
    %322 = vector.load %arg16[%c0_128, %c0_129] : memref<32x128xf32, #tpu.memory_space<vmem>>, vector<32x128xf32>
    %cst_130 = arith.constant dense<0.000000e+00> : vector<32x128xf32>
    %323 = tpu.matmul %322, %321, %cst_130 {dimension_numbers = #tpu.dot_dimension_numbers<[1], [0], [0], [1], [0, 0, 1, 1], [], []>} : vector<32x128xf32>, vector<128x128xf32>, vector<32x128xf32> -> vector<32x128xf32>
    %c0_131 = arith.constant 0 : index
    %c0_132 = arith.constant 0 : index
    %324 = vector.load %arg17[%c0_131, %c0_132] : memref<32x1xf32, #tpu.memory_space<vmem>>, vector<32x1xf32>
    %325 = vector.broadcast %324 : vector<32x1xf32> to vector<32x128xf32>
    %326 = arith.addf %323, %325 : vector<32x128xf32>
    %327 = vector.broadcast %3 : vector<1x128xf32> to vector<32x128xf32>
    %328 = arith.mulf %326, %327 : vector<32x128xf32>
    %329 = arith.addf %254, %328 : vector<32x128xf32>
    %c0_133 = arith.constant 0 : index
    %c0_134 = arith.constant 0 : index
    %c0_135 = arith.constant 0 : index
    %330 = vector.load %arg18[%c0_133, %c0_134, %c0_135] : memref<1x32x128xf32, #tpu.memory_space<vmem>>, vector<1x32x128xf32>
    %331 = vector.shape_cast %330 : vector<1x32x128xf32> to vector<32x128xf32>
    %332 = vector.shape_cast %329 : vector<32x128xf32> to vector<1x32x128xf32>
    tpu.vector_store %arg18[%c0_133, %c0_134, %c0_135], %332 {strides = array<i32>} : memref<1x32x128xf32, #tpu.memory_space<vmem>>, vector<1x32x128xf32>,
    return
  }
  func.func @transform_0(%arg0: i32) -> (i32, i32, i32) {
    %c0_i32 = arith.constant 0 : i32
    %c0_i32_0 = arith.constant 0 : i32
    %c0_i32_1 = arith.constant 0 : i32
    return %arg0, %c0_i32, %c0_i32_0 : i32, i32, i32
  }
  func.func @transform_1(%arg0: i32) -> (i32, i32, i32) {
    %c0_i32 = arith.constant 0 : i32
    %c0_i32_0 = arith.constant 0 : i32
    %c0_i32_1 = arith.constant 0 : i32
    return %arg0, %c0_i32, %c0_i32_0 : i32, i32, i32
  }
  func.func @transform_2(%arg0: i32) -> (i32, i32) {
    %c0_i32 = arith.constant 0 : i32
    %c0_i32_0 = arith.constant 0 : i32
    %c0_i32_1 = arith.constant 0 : i32
    return %c0_i32, %c0_i32_0 : i32, i32
  }
  func.func @transform_3(%arg0: i32) -> (i32, i32) {
    %c0_i32 = arith.constant 0 : i32
    %c0_i32_0 = arith.constant 0 : i32
    %c0_i32_1 = arith.constant 0 : i32
    return %c0_i32, %c0_i32_0 : i32, i32
  }
  func.func @transform_4(%arg0: i32) -> (i32, i32, i32) {
    %c0_i32 = arith.constant 0 : i32
    %c0_i32_0 = arith.constant 0 : i32
    %c0_i32_1 = arith.constant 0 : i32
    %c0_i32_2 = arith.constant 0 : i32
    return %c0_i32, %c0_i32_0, %c0_i32_1 : i32, i32, i32
  }
  func.func @transform_5(%arg0: i32) -> (i32, i32, i32) {
    %c0_i32 = arith.constant 0 : i32
    %c0_i32_0 = arith.constant 0 : i32
    %c0_i32_1 = arith.constant 0 : i32
    %c0_i32_2 = arith.constant 0 : i32
    return %c0_i32, %c0_i32_0, %c0_i32_1 : i32, i32, i32
  }
  func.func @transform_6(%arg0: i32) -> (i32, i32, i32) {
    %c0_i32 = arith.constant 0 : i32
    %c0_i32_0 = arith.constant 0 : i32
    %c0_i32_1 = arith.constant 0 : i32
    %c0_i32_2 = arith.constant 0 : i32
    return %c0_i32, %c0_i32_0, %c0_i32_1 : i32, i32, i32
  }
  func.func @transform_7(%arg0: i32) -> (i32, i32, i32) {
    %c0_i32 = arith.constant 0 : i32
    %c0_i32_0 = arith.constant 0 : i32
    %c0_i32_1 = arith.constant 0 : i32
    %c0_i32_2 = arith.constant 0 : i32
    return %c0_i32, %c0_i32_0, %c0_i32_1 : i32, i32, i32
  }
  func.func @transform_8(%arg0: i32) -> (i32, i32, i32) {
    %c0_i32 = arith.constant 0 : i32
    %c0_i32_0 = arith.constant 0 : i32
    %c0_i32_1 = arith.constant 0 : i32
    %c0_i32_2 = arith.constant 0 : i32
    return %c0_i32, %c0_i32_0, %c0_i32_1 : i32, i32, i32
  }
  func.func @transform_9(%arg0: i32) -> (i32, i32) {
    %c0_i32 = arith.constant 0 : i32
    %c0_i32_0 = arith.constant 0 : i32
    %c0_i32_1 = arith.constant 0 : i32
    return %c0_i32, %c0_i32_0 : i32, i32
  }
  func.func @transform_10(%arg0: i32) -> (i32, i32) {
    %c0_i32 = arith.constant 0 : i32
    %c0_i32_0 = arith.constant 0 : i32
    %c0_i32_1 = arith.constant 0 : i32
    return %c0_i32, %c0_i32_0 : i32, i32
  }
  func.func @transform_11(%arg0: i32) -> (i32, i32) {
    %c0_i32 = arith.constant 0 : i32
    %c0_i32_0 = arith.constant 0 : i32
    %c0_i32_1 = arith.constant 0 : i32
    return %c0_i32, %c0_i32_0 : i32, i32
  }
  func.func @transform_12(%arg0: i32) -> (i32, i32) {
    %c0_i32 = arith.constant 0 : i32
    %c0_i32_0 = arith.constant 0 : i32
    %c0_i32_1 = arith.constant 0 : i32
    return %c0_i32, %c0_i32_0 : i32, i32
  }
  func.func @transform_13(%arg0: i32) -> (i32, i32) {
    %c0_i32 = arith.constant 0 : i32
    %c0_i32_0 = arith.constant 0 : i32
    %c0_i32_1 = arith.constant 0 : i32
    return %c0_i32, %c0_i32_0 : i32, i32
  }
  func.func @transform_14(%arg0: i32) -> (i32, i32) {
    %c0_i32 = arith.constant 0 : i32
    %c0_i32_0 = arith.constant 0 : i32
    %c0_i32_1 = arith.constant 0 : i32
    return %c0_i32, %c0_i32_0 : i32, i32
  }
  func.func @transform_15(%arg0: i32) -> (i32, i32) {
    %c0_i32 = arith.constant 0 : i32
    %c0_i32_0 = arith.constant 0 : i32
    %c0_i32_1 = arith.constant 0 : i32
    return %c0_i32, %c0_i32_0 : i32, i32
  }
  func.func @transform_16(%arg0: i32) -> (i32, i32) {
    %c0_i32 = arith.constant 0 : i32
    %c0_i32_0 = arith.constant 0 : i32
    %c0_i32_1 = arith.constant 0 : i32
    return %c0_i32, %c0_i32_0 : i32, i32
  }
  func.func @transform_17(%arg0: i32) -> (i32, i32, i32) {
    %c0_i32 = arith.constant 0 : i32
    %c0_i32_0 = arith.constant 0 : i32
    %c0_i32_1 = arith.constant 0 : i32
    return %arg0, %c0_i32, %c0_i32_0 : i32, i32, i32
  }
}

</mosaic_0001>

<llo_original>
// kernel: tpu_custom_call.1
$region0: #{tpu_custom_call.1}
  #allocation0 [shape = 'u32[]', space=smem, size = 0x4, offset = 0x4, fixed_abs, tag = 'smem constant byte address 0x4 - core index']
  #allocation1 [shape = 'u32[144,128]{1,0:T(1,128)}', space=vmem, size = 0x12000, scoped, tag = 'internal scratch']
  %s0 = inlined_call_operand.vmem [shape: f32[2,32,128], index: 0, kind: input, shape index: {}]
  %s1 = inlined_call_operand.vmem [shape: f32[2,1,128], index: 1, kind: input, shape index: {}]
  %s2 = inlined_call_operand.vmem [shape: f32[32,1], index: 2, kind: input, shape index: {}]
  %s3 = inlined_call_operand.vmem [shape: f32[32,1], index: 3, kind: input, shape index: {}]
  %s4 = inlined_call_operand.vmem [shape: f32[3,32,3], index: 4, kind: input, shape index: {}]
  %s5 = inlined_call_operand.vmem [shape: f32[3,32,1], index: 5, kind: input, shape index: {}]
  %s6 = inlined_call_operand.vmem [shape: f32[3,32,1], index: 6, kind: input, shape index: {}]
  %s7 = inlined_call_operand.vmem [shape: f32[3,32,32], index: 7, kind: input, shape index: {}]
  %s8 = inlined_call_operand.vmem [shape: f32[3,32,1], index: 8, kind: input, shape index: {}]
  %s9 = inlined_call_operand.vmem [shape: f32[32,32], index: 9, kind: input, shape index: {}]
  %s10 = inlined_call_operand.vmem [shape: f32[32,1], index: 10, kind: input, shape index: {}]
  %s11 = inlined_call_operand.vmem [shape: f32[32,1], index: 11, kind: input, shape index: {}]
  %s12 = inlined_call_operand.vmem [shape: f32[32,1], index: 12, kind: input, shape index: {}]
  %s13 = inlined_call_operand.vmem [shape: f32[128,32], index: 13, kind: input, shape index: {}]
  %s14 = inlined_call_operand.vmem [shape: f32[128,1], index: 14, kind: input, shape index: {}]
  %s15 = inlined_call_operand.vmem [shape: f32[32,128], index: 15, kind: input, shape index: {}]
  %s16 = inlined_call_operand.vmem [shape: f32[32,1], index: 16, kind: input, shape index: {}]
  %s17 = inlined_call_operand.hbm [shape: f32[2,32,128], index: 17, kind: output, shape index: {}]
  %s18 = sld [smem:[#allocation0]]
  $region101: #{tpu_custom_call.1} parent=0
    _
  %s20 = ssub.s32 1, %s18
  %s21 = scalar_select 0, %s20, %s18
  $region1: #{tpu_custom_call.1} parent=0
    #allocation2 [shape = 'u8[32768]{0}', space=vmem, size = 0x8000, scoped, tag = 'output window, operand 0']
    #allocation3 [shape = 's32[2]{0}', space=sflag, size = 0x8, scoped, tag = 'scoped memory for tpu_custom_call.1']
    %22 = vsyncpa [#allocation3], 0
    %s23 = scalar_lea.sflag [#allocation3], 1
    %24 = vsyncpa %s23, 0
    loop: start=0, step=1, limit=4
    $region2: #{tpu_custom_call.1} parent=1 // loop_pre_header
      _
    $region3: #{tpu_custom_call.1} parent=1 // loop_header
      %s26 = sphi 0, %s30
      %p27 = scmp.ge.s32.totalorder %s26, 4
      %s36 = sphi 0, %s38
      %s39 = sphi 0, %s36
      %s40 = sphi 0, %s39
      %s56 = sphi 0, %s40
      %s62 = sphi 0, %s64
      %s65 = sphi 0, %s62
      %s66 = sphi 0, %s65
      %s82 = sphi 0, %s66
      %s86 = sphi 0, %s86
      %s88 = sphi 0, %s86
      %s89 = sphi 0, %s88
      %s103 = sphi 0, %s89
      %s107 = sphi 0, %s107
      %s109 = sphi 0, %s107
      %s110 = sphi 0, %s109
      %s124 = sphi 0, %s110
      %s128 = sphi 0, %s128
      %s130 = sphi 0, %s128
      %s131 = sphi 0, %s130
      %s145 = sphi 0, %s131
      %s149 = sphi 0, %s149
      %s151 = sphi 0, %s149
      %s152 = sphi 0, %s151
      %s166 = sphi 0, %s152
      %s170 = sphi 0, %s170
      %s172 = sphi 0, %s170
      %s173 = sphi 0, %s172
      %s187 = sphi 0, %s173
      %s191 = sphi 0, %s191
      %s193 = sphi 0, %s191
      %s194 = sphi 0, %s193
      %s208 = sphi 0, %s194
      %s212 = sphi 0, %s212
      %s214 = sphi 0, %s212
      %s215 = sphi 0, %s214
      %s229 = sphi 0, %s215
      %s233 = sphi 0, %s233
      %s235 = sphi 0, %s233
      %s236 = sphi 0, %s235
      %s250 = sphi 0, %s236
      %s254 = sphi 0, %s254
      %s256 = sphi 0, %s254
      %s257 = sphi 0, %s256
      %s271 = sphi 0, %s257
      %s275 = sphi 0, %s275
      %s277 = sphi 0, %s275
      %s278 = sphi 0, %s277
      %s292 = sphi 0, %s278
      %s296 = sphi 0, %s296
      %s298 = sphi 0, %s296
      %s299 = sphi 0, %s298
      %s313 = sphi 0, %s299
      %s317 = sphi 0, %s317
      %s319 = sphi 0, %s317
      %s320 = sphi 0, %s319
      %s334 = sphi 0, %s320
      %s338 = sphi 0, %s338
      %s340 = sphi 0, %s338
      %s341 = sphi 0, %s340
      %s355 = sphi 0, %s341
      %s359 = sphi 0, %s359
      %s361 = sphi 0, %s359
      %s362 = sphi 0, %s361
      %s376 = sphi 0, %s362
      %s380 = sphi 0, %s380
      %s382 = sphi 0, %s380
      %s383 = sphi 0, %s382
      %s397 = sphi 0, %s383
      %s403 = sphi 0, %s405
      %s406 = sphi 0, %s403
      %s407 = sphi 0, %s406
      %s423 = sphi 0, %s407
    $region4: #{tpu_custom_call.1} parent=1 // loop_header_branch
      %29 = sbr.rel (%p27) target = $region8
    $region5: #{tpu_custom_call.1} parent=1 // loop_body
      %s31 = ssub.s32 %s26, 1
      %s32 = ssub.s32 %s26, 2
      %s33 = sadd.s32 %s26, 1
      %s34 = ssub.s32 %s26, %s33
      %p35 = scmp.eq.s32.totalorder %s34, 0
      %s37 = sadd.s32 %s36, 1
      %s38 = scalar_select %p35, %s36, %s37
      %p41 = pneg %p35
      %p42 = scmp.eq.s32.totalorder %s26, 1
      %p43 = por %p41, %p42
      %p44 = scmp.ne.s32.totalorder %s36, %s39
      %p45 = scmp.eq.s32.totalorder %s26, 0
      %p46 = por %p44, %p45
      %p47 = scmp.ne.s32.totalorder %s36, %s39
      %p48 = scmp.eq.s32.totalorder %s31, 1
      %p49 = por %p47, %p48
      %p50 = scmp.ne.s32.totalorder %s39, %s40
      %p51 = scmp.eq.s32.totalorder %s31, 0
      %p52 = por %p50, %p51
      %p53 = scmp.ne.s32.totalorder %s39, %s40
      %p54 = scmp.eq.s32.totalorder %s32, 1
      %p55 = por %p53, %p54
      %p57 = scmp.ne.s32.totalorder %s40, %s56
      %p58 = scmp.eq.s32.totalorder %s32, 0
      %p59 = por %p57, %p58
      %s60 = ssub.s32 %s26, %s33
      %p61 = scmp.eq.s32.totalorder %s60, 0
      %s63 = sadd.s32 %s62, 1
      %s64 = scalar_select %p61, %s62, %s63
      %p67 = pneg %p61
      %p68 = scmp.eq.s32.totalorder %s26, 1
      %p69 = por %p67, %p68
      %p70 = scmp.ne.s32.totalorder %s62, %s65
      %p71 = scmp.eq.s32.totalorder %s26, 0
      %p72 = por %p70, %p71
      %p73 = scmp.ne.s32.totalorder %s62, %s65
      %p74 = scmp.eq.s32.totalorder %s31, 1
      %p75 = por %p73, %p74
      %p76 = scmp.ne.s32.totalorder %s65, %s66
      %p77 = scmp.eq.s32.totalorder %s31, 0
      %p78 = por %p76, %p77
      %p79 = scmp.ne.s32.totalorder %s65, %s66
      %p80 = scmp.eq.s32.totalorder %s32, 1
      %p81 = por %p79, %p80
      %p83 = scmp.ne.s32.totalorder %s66, %s82
      %p84 = scmp.eq.s32.totalorder %s32, 0
      %p85 = por %p83, %p84
      %s87 = sadd.s32 %s86, 1
      %p90 = scmp.eq.s32.totalorder %s26, 1
      %p91 = scmp.ne.s32.totalorder %s86, %s88
      %p92 = scmp.eq.s32.totalorder %s26, 0
      %p93 = por %p91, %p92
      %p94 = scmp.ne.s32.totalorder %s86, %s88
      %p95 = scmp.eq.s32.totalorder %s31, 1
      %p96 = por %p94, %p95
      %p97 = scmp.ne.s32.totalorder %s88, %s89
      %p98 = scmp.eq.s32.totalorder %s31, 0
      %p99 = por %p97, %p98
      %p100 = scmp.ne.s32.totalorder %s88, %s89
      %p101 = scmp.eq.s32.totalorder %s32, 1
      %p102 = por %p100, %p101
      %p104 = scmp.ne.s32.totalorder %s89, %s103
      %p105 = scmp.eq.s32.totalorder %s32, 0
      %p106 = por %p104, %p105
      %s108 = sadd.s32 %s107, 1
      %p111 = scmp.eq.s32.totalorder %s26, 1
      %p112 = scmp.ne.s32.totalorder %s107, %s109
      %p113 = scmp.eq.s32.totalorder %s26, 0
      %p114 = por %p112, %p113
      %p115 = scmp.ne.s32.totalorder %s107, %s109
      %p116 = scmp.eq.s32.totalorder %s31, 1
      %p117 = por %p115, %p116
      %p118 = scmp.ne.s32.totalorder %s109, %s110
      %p119 = scmp.eq.s32.totalorder %s31, 0
      %p120 = por %p118, %p119
      %p121 = scmp.ne.s32.totalorder %s109, %s110
      %p122 = scmp.eq.s32.totalorder %s32, 1
      %p123 = por %p121, %p122
      %p125 = scmp.ne.s32.totalorder %s110, %s124
      %p126 = scmp.eq.s32.totalorder %s32, 0
      %p127 = por %p125, %p126
      %s129 = sadd.s32 %s128, 1
      %p132 = scmp.eq.s32.totalorder %s26, 1
      %p133 = scmp.ne.s32.totalorder %s128, %s130
      %p134 = scmp.eq.s32.totalorder %s26, 0
      %p135 = por %p133, %p134
      %p136 = scmp.ne.s32.totalorder %s128, %s130
      %p137 = scmp.eq.s32.totalorder %s31, 1
      %p138 = por %p136, %p137
      %p139 = scmp.ne.s32.totalorder %s130, %s131
      %p140 = scmp.eq.s32.totalorder %s31, 0
      %p141 = por %p139, %p140
      %p142 = scmp.ne.s32.totalorder %s130, %s131
      %p143 = scmp.eq.s32.totalorder %s32, 1
      %p144 = por %p142, %p143
      %p146 = scmp.ne.s32.totalorder %s131, %s145
      %p147 = scmp.eq.s32.totalorder %s32, 0
      %p148 = por %p146, %p147
      %s150 = sadd.s32 %s149, 1
      %p153 = scmp.eq.s32.totalorder %s26, 1
      %p154 = scmp.ne.s32.totalorder %s149, %s151
      %p155 = scmp.eq.s32.totalorder %s26, 0
      %p156 = por %p154, %p155
      %p157 = scmp.ne.s32.totalorder %s149, %s151
      %p158 = scmp.eq.s32.totalorder %s31, 1
      %p159 = por %p157, %p158
      %p160 = scmp.ne.s32.totalorder %s151, %s152
      %p161 = scmp.eq.s32.totalorder %s31, 0
      %p162 = por %p160, %p161
      %p163 = scmp.ne.s32.totalorder %s151, %s152
      %p164 = scmp.eq.s32.totalorder %s32, 1
      %p165 = por %p163, %p164
      %p167 = scmp.ne.s32.totalorder %s152, %s166
      %p168 = scmp.eq.s32.totalorder %s32, 0
      %p169 = por %p167, %p168
      %s171 = sadd.s32 %s170, 1
      %p174 = scmp.eq.s32.totalorder %s26, 1
      %p175 = scmp.ne.s32.totalorder %s170, %s172
      %p176 = scmp.eq.s32.totalorder %s26, 0
      %p177 = por %p175, %p176
      %p178 = scmp.ne.s32.totalorder %s170, %s172
      %p179 = scmp.eq.s32.totalorder %s31, 1
      %p180 = por %p178, %p179
      %p181 = scmp.ne.s32.totalorder %s172, %s173
      %p182 = scmp.eq.s32.totalorder %s31, 0
      %p183 = por %p181, %p182
      %p184 = scmp.ne.s32.totalorder %s172, %s173
      %p185 = scmp.eq.s32.totalorder %s32, 1
      %p186 = por %p184, %p185
      %p188 = scmp.ne.s32.totalorder %s173, %s187
      %p189 = scmp.eq.s32.totalorder %s32, 0
      %p190 = por %p188, %p189
      %s192 = sadd.s32 %s191, 1
      %p195 = scmp.eq.s32.totalorder %s26, 1
      %p196 = scmp.ne.s32.totalorder %s191, %s193
      %p197 = scmp.eq.s32.totalorder %s26, 0
      %p198 = por %p196, %p197
      %p199 = scmp.ne.s32.totalorder %s191, %s193
      %p200 = scmp.eq.s32.totalorder %s31, 1
      %p201 = por %p199, %p200
      %p202 = scmp.ne.s32.totalorder %s193, %s194
      %p203 = scmp.eq.s32.totalorder %s31, 0
      %p204 = por %p202, %p203
      %p205 = scmp.ne.s32.totalorder %s193, %s194
      %p206 = scmp.eq.s32.totalorder %s32, 1
      %p207 = por %p205, %p206
      %p209 = scmp.ne.s32.totalorder %s194, %s208
      %p210 = scmp.eq.s32.totalorder %s32, 0
      %p211 = por %p209, %p210
      %s213 = sadd.s32 %s212, 1
      %p216 = scmp.eq.s32.totalorder %s26, 1
      %p217 = scmp.ne.s32.totalorder %s212, %s214
      %p218 = scmp.eq.s32.totalorder %s26, 0
      %p219 = por %p217, %p218
      %p220 = scmp.ne.s32.totalorder %s212, %s214
      %p221 = scmp.eq.s32.totalorder %s31, 1
      %p222 = por %p220, %p221
      %p223 = scmp.ne.s32.totalorder %s214, %s215
      %p224 = scmp.eq.s32.totalorder %s31, 0
      %p225 = por %p223, %p224
      %p226 = scmp.ne.s32.totalorder %s214, %s215
      %p227 = scmp.eq.s32.totalorder %s32, 1
      %p228 = por %p226, %p227
      %p230 = scmp.ne.s32.totalorder %s215, %s229
      %p231 = scmp.eq.s32.totalorder %s32, 0
      %p232 = por %p230, %p231
      %s234 = sadd.s32 %s233, 1
      %p237 = scmp.eq.s32.totalorder %s26, 1
      %p238 = scmp.ne.s32.totalorder %s233, %s235
      %p239 = scmp.eq.s32.totalorder %s26, 0
      %p240 = por %p238, %p239
      %p241 = scmp.ne.s32.totalorder %s233, %s235
      %p242 = scmp.eq.s32.totalorder %s31, 1
      %p243 = por %p241, %p242
      %p244 = scmp.ne.s32.totalorder %s235, %s236
      %p245 = scmp.eq.s32.totalorder %s31, 0
      %p246 = por %p244, %p245
      %p247 = scmp.ne.s32.totalorder %s235, %s236
      %p248 = scmp.eq.s32.totalorder %s32, 1
      %p249 = por %p247, %p248
      %p251 = scmp.ne.s32.totalorder %s236, %s250
      %p252 = scmp.eq.s32.totalorder %s32, 0
      %p253 = por %p251, %p252
      %s255 = sadd.s32 %s254, 1
      %p258 = scmp.eq.s32.totalorder %s26, 1
      %p259 = scmp.ne.s32.totalorder %s254, %s256
      %p260 = scmp.eq.s32.totalorder %s26, 0
      %p261 = por %p259, %p260
      %p262 = scmp.ne.s32.totalorder %s254, %s256
      %p263 = scmp.eq.s32.totalorder %s31, 1
      %p264 = por %p262, %p263
      %p265 = scmp.ne.s32.totalorder %s256, %s257
      %p266 = scmp.eq.s32.totalorder %s31, 0
      %p267 = por %p265, %p266
      %p268 = scmp.ne.s32.totalorder %s256, %s257
      %p269 = scmp.eq.s32.totalorder %s32, 1
      %p270 = por %p268, %p269
      %p272 = scmp.ne.s32.totalorder %s257, %s271
      %p273 = scmp.eq.s32.totalorder %s32, 0
      %p274 = por %p272, %p273
      %s276 = sadd.s32 %s275, 1
      %p279 = scmp.eq.s32.totalorder %s26, 1
      %p280 = scmp.ne.s32.totalorder %s275, %s277
      %p281 = scmp.eq.s32.totalorder %s26, 0
      %p282 = por %p280, %p281
      %p283 = scmp.ne.s32.totalorder %s275, %s277
      %p284 = scmp.eq.s32.totalorder %s31, 1
      %p285 = por %p283, %p284
      %p286 = scmp.ne.s32.totalorder %s277, %s278
      %p287 = scmp.eq.s32.totalorder %s31, 0
      %p288 = por %p286, %p287
      %p289 = scmp.ne.s32.totalorder %s277, %s278
      %p290 = scmp.eq.s32.totalorder %s32, 1
      %p291 = por %p289, %p290
      %p293 = scmp.ne.s32.totalorder %s278, %s292
      %p294 = scmp.eq.s32.totalorder %s32, 0
      %p295 = por %p293, %p294
      %s297 = sadd.s32 %s296, 1
      %p300 = scmp.eq.s32.totalorder %s26, 1
      %p301 = scmp.ne.s32.totalorder %s296, %s298
      %p302 = scmp.eq.s32.totalorder %s26, 0
      %p303 = por %p301, %p302
      %p304 = scmp.ne.s32.totalorder %s296, %s298
      %p305 = scmp.eq.s32.totalorder %s31, 1
      %p306 = por %p304, %p305
      %p307 = scmp.ne.s32.totalorder %s298, %s299
      %p308 = scmp.eq.s32.totalorder %s31, 0
      %p309 = por %p307, %p308
      %p310 = scmp.ne.s32.totalorder %s298, %s299
      %p311 = scmp.eq.s32.totalorder %s32, 1
      %p312 = por %p310, %p311
      %p314 = scmp.ne.s32.totalorder %s299, %s313
      %p315 = scmp.eq.s32.totalorder %s32, 0
      %p316 = por %p314, %p315
      %s318 = sadd.s32 %s317, 1
      %p321 = scmp.eq.s32.totalorder %s26, 1
      %p322 = scmp.ne.s32.totalorder %s317, %s319
      %p323 = scmp.eq.s32.totalorder %s26, 0
      %p324 = por %p322, %p323
      %p325 = scmp.ne.s32.totalorder %s317, %s319
      %p326 = scmp.eq.s32.totalorder %s31, 1
      %p327 = por %p325, %p326
      %p328 = scmp.ne.s32.totalorder %s319, %s320
      %p329 = scmp.eq.s32.totalorder %s31, 0
      %p330 = por %p328, %p329
      %p331 = scmp.ne.s32.totalorder %s319, %s320
      %p332 = scmp.eq.s32.totalorder %s32, 1
      %p333 = por %p331, %p332
      %p335 = scmp.ne.s32.totalorder %s320, %s334
      %p336 = scmp.eq.s32.totalorder %s32, 0
      %p337 = por %p335, %p336
      %s339 = sadd.s32 %s338, 1
      %p342 = scmp.eq.s32.totalorder %s26, 1
      %p343 = scmp.ne.s32.totalorder %s338, %s340
      %p344 = scmp.eq.s32.totalorder %s26, 0
      %p345 = por %p343, %p344
      %p346 = scmp.ne.s32.totalorder %s338, %s340
      %p347 = scmp.eq.s32.totalorder %s31, 1
      %p348 = por %p346, %p347
      %p349 = scmp.ne.s32.totalorder %s340, %s341
      %p350 = scmp.eq.s32.totalorder %s31, 0
      %p351 = por %p349, %p350
      %p352 = scmp.ne.s32.totalorder %s340, %s341
      %p353 = scmp.eq.s32.totalorder %s32, 1
      %p354 = por %p352, %p353
      %p356 = scmp.ne.s32.totalorder %s341, %s355
      %p357 = scmp.eq.s32.totalorder %s32, 0
      %p358 = por %p356, %p357
      %s360 = sadd.s32 %s359, 1
      %p363 = scmp.eq.s32.totalorder %s26, 1
      %p364 = scmp.ne.s32.totalorder %s359, %s361
      %p365 = scmp.eq.s32.totalorder %s26, 0
      %p366 = por %p364, %p365
      %p367 = scmp.ne.s32.totalorder %s359, %s361
      %p368 = scmp.eq.s32.totalorder %s31, 1
      %p369 = por %p367, %p368
      %p370 = scmp.ne.s32.totalorder %s361, %s362
      %p371 = scmp.eq.s32.totalorder %s31, 0
      %p372 = por %p370, %p371
      %p373 = scmp.ne.s32.totalorder %s361, %s362
      %p374 = scmp.eq.s32.totalorder %s32, 1
      %p375 = por %p373, %p374
      %p377 = scmp.ne.s32.totalorder %s362, %s376
      %p378 = scmp.eq.s32.totalorder %s32, 0
      %p379 = por %p377, %p378
      %s381 = sadd.s32 %s380, 1
      %p384 = scmp.eq.s32.totalorder %s26, 1
      %p385 = scmp.ne.s32.totalorder %s380, %s382
      %p386 = scmp.eq.s32.totalorder %s26, 0
      %p387 = por %p385, %p386
      %p388 = scmp.ne.s32.totalorder %s380, %s382
      %p389 = scmp.eq.s32.totalorder %s31, 1
      %p390 = por %p388, %p389
      %p391 = scmp.ne.s32.totalorder %s382, %s383
      %p392 = scmp.eq.s32.totalorder %s31, 0
      %p393 = por %p391, %p392
      %p394 = scmp.ne.s32.totalorder %s382, %s383
      %p395 = scmp.eq.s32.totalorder %s32, 1
      %p396 = por %p394, %p395
      %p398 = scmp.ne.s32.totalorder %s383, %s397
      %p399 = scmp.eq.s32.totalorder %s32, 0
      %p400 = por %p398, %p399
      %s401 = ssub.s32 %s26, %s33
      %p402 = scmp.eq.s32.totalorder %s401, 0
      %s404 = sadd.s32 %s403, 1
      %s405 = scalar_select %p402, %s403, %s404
      %p408 = pneg %p402
      %p409 = scmp.eq.s32.totalorder %s26, 1
      %p410 = por %p408, %p409
      %p411 = scmp.ne.s32.totalorder %s403, %s406
      %p412 = scmp.eq.s32.totalorder %s26, 0
      %p413 = por %p411, %p412
      %p414 = scmp.ne.s32.totalorder %s403, %s406
      %p415 = scmp.eq.s32.totalorder %s31, 1
      %p416 = por %p414, %p415
      %p417 = scmp.ne.s32.totalorder %s406, %s407
      %p418 = scmp.eq.s32.totalorder %s31, 0
      %p419 = por %p417, %p418
      %p420 = scmp.ne.s32.totalorder %s406, %s407
      %p421 = scmp.eq.s32.totalorder %s32, 1
      %p422 = por %p420, %p421
      %p424 = scmp.ne.s32.totalorder %s407, %s423
      %p425 = scmp.eq.s32.totalorder %s32, 0
      %p426 = por %p424, %p425
      %p427 = scmp.le.s32.totalorder 1, %s26
      %p428 = scmp.lt.s32.totalorder %s26, 3
      %p429 = pnand %p427, %p428
      %p430 = pneg %p429
      // Predicated region
      $region9: #{tpu_custom_call.1} parent=5 // pred_check
        _
      $region10: #{tpu_custom_call.1} parent=5 // pred_check_branch
        %432 = sbr.rel (%p429) target = $region12
      $region11: #{tpu_custom_call.1} parent=5 // pred_region
        %s433 = ssub.s32 %s26, 1
        // Predicated region
        $region13: #{tpu_custom_call.1} parent=11 // pred_check
          %p434 = pneg %p99
        $region14: #{tpu_custom_call.1} parent=11 // pred_check_branch
          %436 = sbr.rel (%p434) target = $region16
        $region15: #{tpu_custom_call.1} parent=11 // pred_region
          _
        $region16: #{tpu_custom_call.1} parent=11 // pred_fallthru
          _
        // Predicated region
        $region17: #{tpu_custom_call.1} parent=11 // pred_check
          %p437 = pneg %p120
        $region18: #{tpu_custom_call.1} parent=11 // pred_check_branch
          %439 = sbr.rel (%p437) target = $region20
        $region19: #{tpu_custom_call.1} parent=11 // pred_region
          _
        $region20: #{tpu_custom_call.1} parent=11 // pred_fallthru
          _
        // Predicated region
        $region21: #{tpu_custom_call.1} parent=11 // pred_check
          %p440 = pneg %p141
        $region22: #{tpu_custom_call.1} parent=11 // pred_check_branch
          %442 = sbr.rel (%p440) target = $region24
        $region23: #{tpu_custom_call.1} parent=11 // pred_region
          _
        $region24: #{tpu_custom_call.1} parent=11 // pred_fallthru
          _
        // Predicated region
        $region25: #{tpu_custom_call.1} parent=11 // pred_check
          %p443 = pneg %p162
        $region26: #{tpu_custom_call.1} parent=11 // pred_check_branch
          %445 = sbr.rel (%p443) target = $region28
        $region27: #{tpu_custom_call.1} parent=11 // pred_region
          _
        $region28: #{tpu_custom_call.1} parent=11 // pred_fallthru
          _
        // Predicated region
        $region29: #{tpu_custom_call.1} parent=11 // pred_check
          %p446 = pneg %p183
        $region30: #{tpu_custom_call.1} parent=11 // pred_check_branch
          %448 = sbr.rel (%p446) target = $region32
        $region31: #{tpu_custom_call.1} parent=11 // pred_region
          _
        $region32: #{tpu_custom_call.1} parent=11 // pred_fallthru
          _
        // Predicated region
        $region33: #{tpu_custom_call.1} parent=11 // pred_check
          %p449 = pneg %p204
        $region34: #{tpu_custom_call.1} parent=11 // pred_check_branch
          %451 = sbr.rel (%p449) target = $region36
        $region35: #{tpu_custom_call.1} parent=11 // pred_region
          _
        $region36: #{tpu_custom_call.1} parent=11 // pred_fallthru
          _
        // Predicated region
        $region37: #{tpu_custom_call.1} parent=11 // pred_check
          %p452 = pneg %p225
        $region38: #{tpu_custom_call.1} parent=11 // pred_check_branch
          %454 = sbr.rel (%p452) target = $region40
        $region39: #{tpu_custom_call.1} parent=11 // pred_region
          _
        $region40: #{tpu_custom_call.1} parent=11 // pred_fallthru
          _
        // Predicated region
        $region41: #{tpu_custom_call.1} parent=11 // pred_check
          %p455 = pneg %p246
        $region42: #{tpu_custom_call.1} parent=11 // pred_check_branch
          %457 = sbr.rel (%p455) target = $region44
        $region43: #{tpu_custom_call.1} parent=11 // pred_region
          _
        $region44: #{tpu_custom_call.1} parent=11 // pred_fallthru
          _
        // Predicated region
        $region45: #{tpu_custom_call.1} parent=11 // pred_check
          %p458 = pneg %p267
        $region46: #{tpu_custom_call.1} parent=11 // pred_check_branch
          %460 = sbr.rel (%p458) target = $region48
        $region47: #{tpu_custom_call.1} parent=11 // pred_region
          _
        $region48: #{tpu_custom_call.1} parent=11 // pred_fallthru
          _
        // Predicated region
        $region49: #{tpu_custom_call.1} parent=11 // pred_check
          %p461 = pneg %p288
        $region50: #{tpu_custom_call.1} parent=11 // pred_check_branch
          %463 = sbr.rel (%p461) target = $region52
        $region51: #{tpu_custom_call.1} parent=11 // pred_region
          _
        $region52: #{tpu_custom_call.1} parent=11 // pred_fallthru
          _
        // Predicated region
        $region53: #{tpu_custom_call.1} parent=11 // pred_check
          %p464 = pneg %p309
        $region54: #{tpu_custom_call.1} parent=11 // pred_check_branch
          %466 = sbr.rel (%p464) target = $region56
        $region55: #{tpu_custom_call.1} parent=11 // pred_region
          _
        $region56: #{tpu_custom_call.1} parent=11 // pred_fallthru
          _
        // Predicated region
        $region57: #{tpu_custom_call.1} parent=11 // pred_check
          %p467 = pneg %p330
        $region58: #{tpu_custom_call.1} parent=11 // pred_check_branch
          %469 = sbr.rel (%p467) target = $region60
        $region59: #{tpu_custom_call.1} parent=11 // pred_region
          _
        $region60: #{tpu_custom_call.1} parent=11 // pred_fallthru
          _
        // Predicated region
        $region61: #{tpu_custom_call.1} parent=11 // pred_check
          %p470 = pneg %p351
        $region62: #{tpu_custom_call.1} parent=11 // pred_check_branch
          %472 = sbr.rel (%p470) target = $region64
        $region63: #{tpu_custom_call.1} parent=11 // pred_region
          _
        $region64: #{tpu_custom_call.1} parent=11 // pred_fallthru
          _
        // Predicated region
        $region65: #{tpu_custom_call.1} parent=11 // pred_check
          %p473 = pneg %p372
        $region66: #{tpu_custom_call.1} parent=11 // pred_check_branch
          %475 = sbr.rel (%p473) target = $region68
        $region67: #{tpu_custom_call.1} parent=11 // pred_region
          _
        $region68: #{tpu_custom_call.1} parent=11 // pred_fallthru
          _
        // Predicated region
        $region69: #{tpu_custom_call.1} parent=11 // pred_check
          %p476 = pneg %p393
        $region70: #{tpu_custom_call.1} parent=11 // pred_check_branch
          %478 = sbr.rel (%p476) target = $region72
        $region71: #{tpu_custom_call.1} parent=11 // pred_region
          _
        $region72: #{tpu_custom_call.1} parent=11 // pred_fallthru
          _
      $region12: #{tpu_custom_call.1} parent=5 // pred_fallthru
        _
      %p479 = scmp.lt.s32.totalorder %s26, 2
      // Predicated region
      $region73: #{tpu_custom_call.1} parent=5 // pred_check
        %p480 = pneg %p479
      $region74: #{tpu_custom_call.1} parent=5 // pred_check_branch
        %482 = sbr.rel (%p480) target = $region76
      $region75: #{tpu_custom_call.1} parent=5 // pred_region
        // Predicated region
        $region77: #{tpu_custom_call.1} parent=75 // pred_check
          %p483 = pneg %p46
        $region78: #{tpu_custom_call.1} parent=75 // pred_check_branch
          %485 = sbr.rel (%p483) target = $region80
        $region79: #{tpu_custom_call.1} parent=75 // pred_region
          %p486 = scmp.lt.s32.totalorder %s26, 1
          %s487 = scalar_select %p486, %s26, 1
          %s488 = smul.addr %s487, 4
          %s489 = smul.addr %s488, 8
          %s490 = scalar_lea.vmem %s0, %s489
        $region80: #{tpu_custom_call.1} parent=75 // pred_fallthru
          _
        // Predicated region
        $region81: #{tpu_custom_call.1} parent=75 // pred_check
          %p491 = pneg %p72
        $region82: #{tpu_custom_call.1} parent=75 // pred_check_branch
          %493 = sbr.rel (%p491) target = $region84
        $region83: #{tpu_custom_call.1} parent=75 // pred_region
          %p494 = scmp.lt.s32.totalorder %s26, 1
          %s495 = scalar_select %p494, %s26, 1
          %s496 = scalar_lea.vmem %s1, %s495
        $region84: #{tpu_custom_call.1} parent=75 // pred_fallthru
          _
      $region76: #{tpu_custom_call.1} parent=5 // pred_fallthru
        _
      %p497 = scmp.le.s32.totalorder 1, %s26
      %p498 = scmp.lt.s32.totalorder %s26, 3
      %p499 = pnand %p497, %p498
      %p500 = pneg %p499
      // Predicated region
      $region85: #{tpu_custom_call.1} parent=5 // pred_check
        _
      $region86: #{tpu_custom_call.1} parent=5 // pred_check_branch
        %502 = sbr.rel (%p499) target = $region88
      $region87: #{tpu_custom_call.1} parent=5 // pred_region
        %s503 = ssub.s32 %s26, 1
        %p504 = scmp.lt.s32.totalorder %s31, 1
        %s505 = scalar_select %p504, %s31, 1
        %s506 = smul.addr %s505, 4
        %s507 = smul.addr %s506, 8
        %s508 = scalar_lea.vmem %s0, %s507
        %p509 = pneg %p52
        %p510 = pneg %p49
        %p511 = scmp.lt.s32.totalorder %s31, 1
        %s512 = scalar_select %p511, %s31, 1
        %s513 = scalar_lea.vmem %s1, %s512
        %p514 = pneg %p78
        %p515 = pneg %p75
        %p516 = pneg %p99
        %p517 = pneg %p96
        %p518 = pneg %p120
        %p519 = pneg %p117
        %p520 = pneg %p141
        %p521 = pneg %p138
        %p522 = pneg %p162
        %p523 = pneg %p159
        %p524 = pneg %p183
        %p525 = pneg %p180
        %p526 = pneg %p204
        %p527 = pneg %p201
        %p528 = pneg %p225
        %p529 = pneg %p222
        %p530 = pneg %p246
        %p531 = pneg %p243
        %p532 = pneg %p267
        %p533 = pneg %p264
        %p534 = pneg %p288
        %p535 = pneg %p285
        %p536 = pneg %p309
        %p537 = pneg %p306
        %p538 = pneg %p330
        %p539 = pneg %p327
        %p540 = pneg %p351
        %p541 = pneg %p348
        %p542 = pneg %p372
        %p543 = pneg %p369
        %p544 = pneg %p393
        %p545 = pneg %p390
        %p546 = pneg %p419
        %p547 = pneg %p416
        %s548 = sand.u32 %s406, 1
        %s549 = scalar_lea.sflag [#allocation3], %s548
        %s550 = sand.u32 %s406, 1
        %s551 = smul.addr %s550, 32
        %s552 = scalar_lea.vmem [#allocation2], %s551
        %p553 = scmp.lt.s32.totalorder %s31, 1
        %s554 = scalar_select %p553, %s31, 1
        %s555 = smul.addr %s554, 4
        %s556 = smul.addr %s555, 8
        %s557 = scalar_lea.vmem %s0, %s556
        %p558 = scmp.lt.s32.totalorder %s31, 1
        %s559 = scalar_select %p558, %s31, 1
        %s560 = scalar_lea.vmem %s1, %s559
        %v561 = vld [vmem:[%s557] sm:$0xff]
        %v562 = vld [vmem:[%s557 + $0x8] sm:$0xff]
        %v563 = vld [vmem:[%s557 + $0x10] sm:$0xff]
        %v564 = vld [vmem:[%s557 + $0x18] sm:$0xff]
        %v565 = vld [vmem:[%s560] sm:$0x1]
        %v566 = vld [vmem:[%s2] sm:$0xff]
        %v567 = vld [vmem:[%s2 + $0x8] sm:$0xff]
        %v568 = vld [vmem:[%s2 + $0x10] sm:$0xff]
        %v569 = vld [vmem:[%s2 + $0x18] sm:$0xff]
        %v570 = vld [vmem:[%s3] sm:$0xff]
        %v571 = vld [vmem:[%s3 + $0x8] sm:$0xff]
        %v572 = vld [vmem:[%s3 + $0x10] sm:$0xff]
        %v573 = vld [vmem:[%s3 + $0x18] sm:$0xff]
        %v574 = vadd.f32 %v561, %v562
        %v575 = vadd.f32 %v574, %v563
        %v576 = vadd.f32 %v575, %v564
        %v577 = vrot.slane %v576, 4
        %v578 = vadd.f32 %v576, %v577
        %v579 = vrot.slane %v578, 2
        %v580 = vadd.f32 %v578, %v579
        %v581 = vrot.slane %v580, 1
        %v582 = vadd.f32 %v580, %v581
        %v583 = vrcp.pop 32.0
        %v584 = vmul.f32 %v582, %v583
        %v585 = vsub.f32 %v561, %v584
        %v586 = vsub.f32 %v562, %v584
        %v587 = vsub.f32 %v563, %v584
        %v588 = vsub.f32 %v564, %v584
        %v589 = vmul.f32 %v585, %v585
        %v590 = vmul.f32 %v586, %v586
        %v591 = vmul.f32 %v587, %v587
        %v592 = vmul.f32 %v588, %v588
        %v593 = vadd.f32 %v589, %v590
        %v594 = vadd.f32 %v593, %v591
        %v595 = vadd.f32 %v594, %v592
        %v596 = vrot.slane %v595, 4
        %v597 = vadd.f32 %v595, %v596
        %v598 = vrot.slane %v597, 2
        %v599 = vadd.f32 %v597, %v598
        %v600 = vrot.slane %v599, 1
        %v601 = vadd.f32 %v599, %v600
        %v602 = vmul.f32 %v601, %v583
        %v603 = vadd.f32 %v602, 1e-05
        %v604 = vrsqrt.pop %v603
        %v605 = vmul.f32 %v603, %v604
        %vm606 = vcmp.eq.f32.partialorder %v603, inf
        %v607 = vsel %vm606, %v603, %v605
        %vm608 = vcmp.eq.f32.partialorder %v603, 0.0
        %v609 = vand.u32 %v603, 2147483648
        %v610 = vsel %vm608, %v609, %v607
        %v611 = vrcp.pop %v610
        %v612 = vmul.f32 %v585, %v611
        %v613 = vmul.f32 %v586, %v611
        %v614 = vmul.f32 %v587, %v611
        %v615 = vmul.f32 %v588, %v611
        %617 = vset.pattern.permute.xlu0 0
        %618 = vperm.xlu0 %617, %v566
        %v619 = vpop.permute.xlu0 %618
        %622 = vset.pattern.permute.xlu0 0
        %623 = vperm.xlu0 %622, %v567
        %v624 = vpop.permute.xlu0 %623
        %627 = vset.pattern.permute.xlu0 0
        %628 = vperm.xlu0 %627, %v568
        %v629 = vpop.permute.xlu0 %628
        %632 = vset.pattern.permute.xlu0 0
        %633 = vperm.xlu0 %632, %v569
        %v634 = vpop.permute.xlu0 %633
        %v636 = vmul.f32 %v612, %v619
        %v637 = vmul.f32 %v613, %v624
        %v638 = vmul.f32 %v614, %v629
        %v639 = vmul.f32 %v615, %v634
        %641 = vset.pattern.permute.xlu0 0
        %642 = vperm.xlu0 %641, %v570
        %v643 = vpop.permute.xlu0 %642
        %646 = vset.pattern.permute.xlu0 0
        %647 = vperm.xlu0 %646, %v571
        %v648 = vpop.permute.xlu0 %647
        %651 = vset.pattern.permute.xlu0 0
        %652 = vperm.xlu0 %651, %v572
        %v653 = vpop.permute.xlu0 %652
        %656 = vset.pattern.permute.xlu0 0
        %657 = vperm.xlu0 %656, %v573
        %v658 = vpop.permute.xlu0 %657
        %v660 = vadd.f32 %v636, %v643
        %v661 = vadd.f32 %v637, %v648
        %v662 = vadd.f32 %v638, %v653
        %v663 = vadd.f32 %v639, %v658
        %v664 = vld [vmem:[%s4] sm:$0xff]
        %v665 = vld [vmem:[%s4 + $0x8] sm:$0xff]
        %v666 = vld [vmem:[%s4 + $0x10] sm:$0xff]
        %v667 = vld [vmem:[%s4 + $0x18] sm:$0xff]
        %672 = vrot.lane.b32.xlu0 %v660, 1
        %v673 = vpop.permute.xlu0 %672
        %674 = vrot.lane.b32.xlu0 %v661, 1
        %v675 = vpop.permute.xlu0 %674
        %676 = vrot.lane.b32.xlu0 %v662, 1
        %v677 = vpop.permute.xlu0 %676
        %678 = vrot.lane.b32.xlu0 %v663, 1
        %v679 = vpop.permute.xlu0 %678
        %vm684 = vcmask 7168
        %v685 = vsel %vm684, 0.0, %v673
        %v686 = vsel %vm684, 0.0, %v675
        %v687 = vsel %vm684, 0.0, %v677
        %v688 = vsel %vm684, 0.0, %v679
        %689 = vrot.lane.b32.xlu0 %v660, 127
        %v690 = vpop.permute.xlu0 %689
        %691 = vrot.lane.b32.xlu0 %v661, 127
        %v692 = vpop.permute.xlu0 %691
        %693 = vrot.lane.b32.xlu0 %v662, 127
        %v694 = vpop.permute.xlu0 %693
        %695 = vrot.lane.b32.xlu0 %v663, 127
        %v696 = vpop.permute.xlu0 %695
        %vm701 = vcmask 1039360
        %v702 = vsel %vm701, %v690, 0.0
        %v703 = vsel %vm701, %v692, 0.0
        %v704 = vsel %vm701, %v694, 0.0
        %v705 = vsel %vm701, %v696, 0.0
        %707 = vset.pattern.permute.xlu0 0
        %708 = vperm.xlu0 %707, %v664
        %v709 = vpop.permute.xlu0 %708
        %712 = vset.pattern.permute.xlu0 0
        %713 = vperm.xlu0 %712, %v665
        %v714 = vpop.permute.xlu0 %713
        %717 = vset.pattern.permute.xlu0 0
        %718 = vperm.xlu0 %717, %v666
        %v719 = vpop.permute.xlu0 %718
        %722 = vset.pattern.permute.xlu0 0
        %723 = vperm.xlu0 %722, %v667
        %v724 = vpop.permute.xlu0 %723
        %v726 = vmul.f32 %v709, %v685
        %v727 = vmul.f32 %v714, %v686
        %v728 = vmul.f32 %v719, %v687
        %v729 = vmul.f32 %v724, %v688
        %730 = vset.pattern.permute.xlu0 1
        %731 = vperm.xlu0 %730, %v664
        %v732 = vpop.permute.xlu0 %731
        %734 = vset.pattern.permute.xlu0 1
        %735 = vperm.xlu0 %734, %v665
        %v736 = vpop.permute.xlu0 %735
        %738 = vset.pattern.permute.xlu0 1
        %739 = vperm.xlu0 %738, %v666
        %v740 = vpop.permute.xlu0 %739
        %742 = vset.pattern.permute.xlu0 1
        %743 = vperm.xlu0 %742, %v667
        %v744 = vpop.permute.xlu0 %743
        %v746 = vmul.f32 %v732, %v660
        %v747 = vmul.f32 %v736, %v661
        %v748 = vmul.f32 %v740, %v662
        %v749 = vmul.f32 %v744, %v663
        %v750 = vadd.f32 %v726, %v746
        %v751 = vadd.f32 %v727, %v747
        %v752 = vadd.f32 %v728, %v748
        %v753 = vadd.f32 %v729, %v749
        %754 = vset.pattern.permute.xlu0 2
        %755 = vperm.xlu0 %754, %v664
        %v756 = vpop.permute.xlu0 %755
        %758 = vset.pattern.permute.xlu0 2
        %759 = vperm.xlu0 %758, %v665
        %v760 = vpop.permute.xlu0 %759
        %762 = vset.pattern.permute.xlu0 2
        %763 = vperm.xlu0 %762, %v666
        %v764 = vpop.permute.xlu0 %763
        %766 = vset.pattern.permute.xlu0 2
        %767 = vperm.xlu0 %766, %v667
        %v768 = vpop.permute.xlu0 %767
        %v770 = vmul.f32 %v756, %v702
        %v771 = vmul.f32 %v760, %v703
        %v772 = vmul.f32 %v764, %v704
        %v773 = vmul.f32 %v768, %v705
        %v774 = vadd.f32 %v750, %v770
        %v775 = vadd.f32 %v751, %v771
        %v776 = vadd.f32 %v752, %v772
        %v777 = vadd.f32 %v753, %v773
        %v779 = vlaneseq
        %v780 = vshrl.u32 %v779, 7
        %v781 = vsub.s32 0, %v780
        %v782 = vrot.slane %v565, %v781
        %v784 = vmul.f32 %v774, %v782
        %v785 = vmul.f32 %v775, %v782
        %v786 = vmul.f32 %v776, %v782
        %v787 = vmul.f32 %v777, %v782
        %v788 = vld [vmem:[%s5] sm:$0xff]
        %v789 = vld [vmem:[%s5 + $0x8] sm:$0xff]
        %v790 = vld [vmem:[%s5 + $0x10] sm:$0xff]
        %v791 = vld [vmem:[%s5 + $0x18] sm:$0xff]
        %v792 = vld [vmem:[%s6] sm:$0xff]
        %v793 = vld [vmem:[%s6 + $0x8] sm:$0xff]
        %v794 = vld [vmem:[%s6 + $0x10] sm:$0xff]
        %v795 = vld [vmem:[%s6 + $0x18] sm:$0xff]
        %v796 = vadd.f32 %v784, %v785
        %v797 = vadd.f32 %v796, %v786
        %v798 = vadd.f32 %v797, %v787
        %v799 = vrot.slane %v798, 4
        %v800 = vadd.f32 %v798, %v799
        %v801 = vrot.slane %v800, 2
        %v802 = vadd.f32 %v800, %v801
        %v803 = vrot.slane %v802, 1
        %v804 = vadd.f32 %v802, %v803
        %v805 = vmul.f32 %v804, %v583
        %v806 = vsub.f32 %v784, %v805
        %v807 = vsub.f32 %v785, %v805
        %v808 = vsub.f32 %v786, %v805
        %v809 = vsub.f32 %v787, %v805
        %v810 = vmul.f32 %v806, %v806
        %v811 = vmul.f32 %v807, %v807
        %v812 = vmul.f32 %v808, %v808
        %v813 = vmul.f32 %v809, %v809
        %v814 = vadd.f32 %v810, %v811
        %v815 = vadd.f32 %v814, %v812
        %v816 = vadd.f32 %v815, %v813
        %v817 = vrot.slane %v816, 4
        %v818 = vadd.f32 %v816, %v817
        %v819 = vrot.slane %v818, 2
        %v820 = vadd.f32 %v818, %v819
        %v821 = vrot.slane %v820, 1
        %v822 = vadd.f32 %v820, %v821
        %v823 = vmul.f32 %v822, %v583
        %v824 = vadd.f32 %v823, 1e-05
        %v825 = vrsqrt.pop %v824
        %v826 = vmul.f32 %v824, %v825
        %vm827 = vcmp.eq.f32.partialorder %v824, inf
        %v828 = vsel %vm827, %v824, %v826
        %vm829 = vcmp.eq.f32.partialorder %v824, 0.0
        %v830 = vand.u32 %v824, 2147483648
        %v831 = vsel %vm829, %v830, %v828
        %v832 = vrcp.pop %v831
        %v833 = vmul.f32 %v806, %v832
        %v834 = vmul.f32 %v807, %v832
        %v835 = vmul.f32 %v808, %v832
        %v836 = vmul.f32 %v809, %v832
        %838 = vset.pattern.permute.xlu0 0
        %839 = vperm.xlu0 %838, %v788
        %v840 = vpop.permute.xlu0 %839
        %843 = vset.pattern.permute.xlu0 0
        %844 = vperm.xlu0 %843, %v789
        %v845 = vpop.permute.xlu0 %844
        %848 = vset.pattern.permute.xlu0 0
        %849 = vperm.xlu0 %848, %v790
        %v850 = vpop.permute.xlu0 %849
        %853 = vset.pattern.permute.xlu0 0
        %854 = vperm.xlu0 %853, %v791
        %v855 = vpop.permute.xlu0 %854
        %v857 = vmul.f32 %v833, %v840
        %v858 = vmul.f32 %v834, %v845
        %v859 = vmul.f32 %v835, %v850
        %v860 = vmul.f32 %v836, %v855
        %862 = vset.pattern.permute.xlu0 0
        %863 = vperm.xlu0 %862, %v792
        %v864 = vpop.permute.xlu0 %863
        %867 = vset.pattern.permute.xlu0 0
        %868 = vperm.xlu0 %867, %v793
        %v869 = vpop.permute.xlu0 %868
        %872 = vset.pattern.permute.xlu0 0
        %873 = vperm.xlu0 %872, %v794
        %v874 = vpop.permute.xlu0 %873
        %877 = vset.pattern.permute.xlu0 0
        %878 = vperm.xlu0 %877, %v795
        %v879 = vpop.permute.xlu0 %878
        %v881 = vadd.f32 %v857, %v864
        %v882 = vadd.f32 %v858, %v869
        %v883 = vadd.f32 %v859, %v874
        %v884 = vadd.f32 %v860, %v879
        %v885 = vld [vmem:[%s7] sm:$0xff]
        %v886 = vld [vmem:[%s7 + $0x8] sm:$0xff]
        %v887 = vld [vmem:[%s7 + $0x10] sm:$0xff]
        %v888 = vld [vmem:[%s7 + $0x18] sm:$0xff]
        %v889 = vld [vmem:[%s8] sm:$0xff]
        %v890 = vld [vmem:[%s8 + $0x8] sm:$0xff]
        %v891 = vld [vmem:[%s8 + $0x10] sm:$0xff]
        %v892 = vld [vmem:[%s8 + $0x18] sm:$0xff]
        %894 = vset.pattern.permute.xlu0 0
        %895 = vperm.xlu0 %894, %v889
        %v896 = vpop.permute.xlu0 %895
        %899 = vset.pattern.permute.xlu0 0
        %900 = vperm.xlu0 %899, %v890
        %v901 = vpop.permute.xlu0 %900
        %904 = vset.pattern.permute.xlu0 0
        %905 = vperm.xlu0 %904, %v891
        %v906 = vpop.permute.xlu0 %905
        %909 = vset.pattern.permute.xlu0 0
        %910 = vperm.xlu0 %909, %v892
        %v911 = vpop.permute.xlu0 %910
        %vm913 = vcmask 261120
        %v915 = vsel %vm913, %v885, 0
        %v918 = vsel %vm913, %v886, 0
        %v921 = vsel %vm913, %v887, 0
        %v924 = vsel %vm913, %v888, 0
        %926 = vmatprep.subr.mxu0 0.0
        %927 = vmatpush1.msra.mxu0 %v881
        %928 = vmatprep.subr.mxu0 0.0
        %929 = vmatpush1.msra.mxu0 %v882
        %930 = vmatprep.subr.mxu0 0.0
        %931 = vmatpush1.msra.mxu0 %v883
        %932 = vmatprep.subr.mxu0 0.0
        %933 = vmatpush1.msra.mxu0 %v884
        %934 = vmatprep.subr.mxu0 0.0
        %935 = vmatpush1.msra.mxu0 0.0
        %936 = vmatprep.subr.mxu0 0.0
        %937 = vmatpush1.msra.mxu0 0.0
        %938 = vmatprep.subr.mxu0 0.0
        %939 = vmatpush1.msra.mxu0 0.0
        %940 = vmatprep.subr.mxu0 0.0
        %941 = vmatpush1.msra.mxu0 0.0
        %942 = vmatprep.subr.mxu0 0.0
        %943 = vmatpush1.msra.mxu0 0.0
        %944 = vmatprep.subr.mxu0 0.0
        %945 = vmatpush1.msra.mxu0 0.0
        %946 = vmatprep.subr.mxu0 0.0
        %947 = vmatpush1.msra.mxu0 0.0
        %948 = vmatprep.subr.mxu0 0.0
        %949 = vmatpush1.msra.mxu0 0.0
        %950 = vmatprep.subr.mxu0 0.0
        %951 = vmatpush1.msra.mxu0 0.0
        %952 = vmatprep.subr.mxu0 0.0
        %953 = vmatpush1.msra.mxu0 0.0
        %954 = vmatprep.subr.mxu0 0.0
        %955 = vmatpush1.msra.mxu0 0.0
        %956 = vmatprep.subr.mxu0 0.0
        %957 = vmatpush1.msra.mxu0 0.0
        %958 = vmatprep.subr.mxu0 0.0
        %959 = vmatpush1.msra.mxu0 0.0
        %960 = vmatprep.subr.mxu0 0.0
        %961 = vmatpush1.msra.mxu0 0.0
        %962 = vmatprep.subr.mxu0 0.0
        %963 = vmatpush1.msra.mxu0 0.0
        %964 = vmatprep.subr.mxu0 0.0
        %965 = vmatpush1.msra.mxu0 0.0
        %966 = vmatprep.subr.mxu0 0.0
        %967 = vmatpush1.msra.mxu0 0.0
        %968 = vmatprep.subr.mxu0 0.0
        %969 = vmatpush1.msra.mxu0 0.0
        %970 = vmatprep.subr.mxu0 0.0
        %971 = vmatpush1.msra.mxu0 0.0
        %972 = vmatprep.subr.mxu0 0.0
        %973 = vmatpush1.msra.mxu0 0.0
        %974 = vmatprep.subr.mxu0 0.0
        %975 = vmatpush1.msra.mxu0 0.0
        %976 = vmatprep.subr.mxu0 0.0
        %977 = vmatpush1.msra.mxu0 0.0
        %978 = vmatprep.subr.mxu0 0.0
        %979 = vmatpush1.msra.mxu0 0.0
        %980 = vmatprep.subr.mxu0 0.0
        %981 = vmatpush1.msra.mxu0 0.0
        %982 = vmatprep.subr.mxu0 0.0
        %983 = vmatpush1.msra.mxu0 0.0
        %984 = vmatprep.subr.mxu0 0.0
        %985 = vmatpush1.msra.mxu0 0.0
        %986 = vmatprep.subr.mxu0 0.0
        %987 = vmatpush1.msra.mxu0 0.0
        %988 = vmatprep.subr.mxu0 0.0
        %989 = vmatpush1.msra.mxu0 0.0
        %990 = vmatprep.mubr.f32.mxu0 0.0
        %991 = vmatmul.mubr.f32.gmra.mrb[0].mxu0 %v915
        %v992 = vpop.f32.mrb[0].mxu0
        %v993 = vadd.f32 %v896, %v992
        %v994 = vpop.f32.mrb[0].mxu0
        %995 = vmatprep.mubr.f32.mxu0 0.0
        %996 = vmatmul.mubr.f32.gmra.mrb[0].mxu0 %v918
        %v997 = vpop.f32.mrb[0].mxu0
        %v998 = vadd.f32 %v901, %v997
        %v999 = vpop.f32.mrb[0].mxu0
        %1000 = vmatprep.mubr.f32.mxu0 0.0
        %1001 = vmatmul.mubr.f32.gmra.mrb[0].mxu0 %v921
        %v1002 = vpop.f32.mrb[0].mxu0
        %v1003 = vadd.f32 %v906, %v1002
        %v1004 = vpop.f32.mrb[0].mxu0
        %1005 = vmatprep.mubr.f32.mxu0 0.0
        %1006 = vmatmul.mubr.f32.gmra.mrb[0].mxu0 %v924
        %v1007 = vpop.f32.mrb[0].mxu0
        %v1008 = vadd.f32 %v911, %v1007
        %v1009 = vpop.f32.mrb[0].mxu0
        %1010 = vdwg.mxu0
        %v1011 = vmul.f32 %v993, 0.35355338
        %v1012 = vmul.f32 %v998, 0.35355338
        %v1013 = vmul.f32 %v1003, 0.35355338
        %v1014 = vmul.f32 %v1008, 0.35355338
        %s1015 = scalar_lea.vmem %s4, 32
        %v1016 = vld [vmem:[%s1015] sm:$0xff]
        %v1017 = vld [vmem:[%s1015 + $0x8] sm:$0xff]
        %v1018 = vld [vmem:[%s1015 + $0x10] sm:$0xff]
        %v1019 = vld [vmem:[%s1015 + $0x18] sm:$0xff]
        %1021 = vset.pattern.permute.xlu0 0
        %1022 = vperm.xlu0 %1021, %v1016
        %v1023 = vpop.permute.xlu0 %1022
        %1026 = vset.pattern.permute.xlu0 0
        %1027 = vperm.xlu0 %1026, %v1017
        %v1028 = vpop.permute.xlu0 %1027
        %1031 = vset.pattern.permute.xlu0 0
        %1032 = vperm.xlu0 %1031, %v1018
        %v1033 = vpop.permute.xlu0 %1032
        %1036 = vset.pattern.permute.xlu0 0
        %1037 = vperm.xlu0 %1036, %v1019
        %v1038 = vpop.permute.xlu0 %1037
        %v1040 = vmul.f32 %v1023, %v685
        %v1041 = vmul.f32 %v1028, %v686
        %v1042 = vmul.f32 %v1033, %v687
        %v1043 = vmul.f32 %v1038, %v688
        %1044 = vset.pattern.permute.xlu0 1
        %1045 = vperm.xlu0 %1044, %v1016
        %v1046 = vpop.permute.xlu0 %1045
        %1048 = vset.pattern.permute.xlu0 1
        %1049 = vperm.xlu0 %1048, %v1017
        %v1050 = vpop.permute.xlu0 %1049
        %1052 = vset.pattern.permute.xlu0 1
        %1053 = vperm.xlu0 %1052, %v1018
        %v1054 = vpop.permute.xlu0 %1053
        %1056 = vset.pattern.permute.xlu0 1
        %1057 = vperm.xlu0 %1056, %v1019
        %v1058 = vpop.permute.xlu0 %1057
        %v1060 = vmul.f32 %v1046, %v660
        %v1061 = vmul.f32 %v1050, %v661
        %v1062 = vmul.f32 %v1054, %v662
        %v1063 = vmul.f32 %v1058, %v663
        %v1064 = vadd.f32 %v1040, %v1060
        %v1065 = vadd.f32 %v1041, %v1061
        %v1066 = vadd.f32 %v1042, %v1062
        %v1067 = vadd.f32 %v1043, %v1063
        %1068 = vset.pattern.permute.xlu0 2
        %1069 = vperm.xlu0 %1068, %v1016
        %v1070 = vpop.permute.xlu0 %1069
        %1072 = vset.pattern.permute.xlu0 2
        %1073 = vperm.xlu0 %1072, %v1017
        %v1074 = vpop.permute.xlu0 %1073
        %1076 = vset.pattern.permute.xlu0 2
        %1077 = vperm.xlu0 %1076, %v1018
        %v1078 = vpop.permute.xlu0 %1077
        %1080 = vset.pattern.permute.xlu0 2
        %1081 = vperm.xlu0 %1080, %v1019
        %v1082 = vpop.permute.xlu0 %1081
        %v1084 = vmul.f32 %v1070, %v702
        %v1085 = vmul.f32 %v1074, %v703
        %v1086 = vmul.f32 %v1078, %v704
        %v1087 = vmul.f32 %v1082, %v705
        %v1088 = vadd.f32 %v1064, %v1084
        %v1089 = vadd.f32 %v1065, %v1085
        %v1090 = vadd.f32 %v1066, %v1086
        %v1091 = vadd.f32 %v1067, %v1087
        %v1092 = vmul.f32 %v1088, %v782
        %v1093 = vmul.f32 %v1089, %v782
        %v1094 = vmul.f32 %v1090, %v782
        %v1095 = vmul.f32 %v1091, %v782
        %s1096 = scalar_lea.vmem %s5, 32
        %v1097 = vld [vmem:[%s1096] sm:$0xff]
        %v1098 = vld [vmem:[%s1096 + $0x8] sm:$0xff]
        %v1099 = vld [vmem:[%s1096 + $0x10] sm:$0xff]
        %v1100 = vld [vmem:[%s1096 + $0x18] sm:$0xff]
        %s1101 = scalar_lea.vmem %s6, 32
        %v1102 = vld [vmem:[%s1101] sm:$0xff]
        %v1103 = vld [vmem:[%s1101 + $0x8] sm:$0xff]
        %v1104 = vld [vmem:[%s1101 + $0x10] sm:$0xff]
        %v1105 = vld [vmem:[%s1101 + $0x18] sm:$0xff]
        %v1106 = vadd.f32 %v1092, %v1093
        %v1107 = vadd.f32 %v1106, %v1094
        %v1108 = vadd.f32 %v1107, %v1095
        %v1109 = vrot.slane %v1108, 4
        %v1110 = vadd.f32 %v1108, %v1109
        %v1111 = vrot.slane %v1110, 2
        %v1112 = vadd.f32 %v1110, %v1111
        %v1113 = vrot.slane %v1112, 1
        %v1114 = vadd.f32 %v1112, %v1113
        %v1115 = vmul.f32 %v1114, %v583
        %v1116 = vsub.f32 %v1092, %v1115
        %v1117 = vsub.f32 %v1093, %v1115
        %v1118 = vsub.f32 %v1094, %v1115
        %v1119 = vsub.f32 %v1095, %v1115
        %v1120 = vmul.f32 %v1116, %v1116
        %v1121 = vmul.f32 %v1117, %v1117
        %v1122 = vmul.f32 %v1118, %v1118
        %v1123 = vmul.f32 %v1119, %v1119
        %v1124 = vadd.f32 %v1120, %v1121
        %v1125 = vadd.f32 %v1124, %v1122
        %v1126 = vadd.f32 %v1125, %v1123
        %v1127 = vrot.slane %v1126, 4
        %v1128 = vadd.f32 %v1126, %v1127
        %v1129 = vrot.slane %v1128, 2
        %v1130 = vadd.f32 %v1128, %v1129
        %v1131 = vrot.slane %v1130, 1
        %v1132 = vadd.f32 %v1130, %v1131
        %v1133 = vmul.f32 %v1132, %v583
        %v1134 = vadd.f32 %v1133, 1e-05
        %v1135 = vrsqrt.pop %v1134
        %v1136 = vmul.f32 %v1134, %v1135
        %vm1137 = vcmp.eq.f32.partialorder %v1134, inf
        %v1138 = vsel %vm1137, %v1134, %v1136
        %vm1139 = vcmp.eq.f32.partialorder %v1134, 0.0
        %v1140 = vand.u32 %v1134, 2147483648
        %v1141 = vsel %vm1139, %v1140, %v1138
        %v1142 = vrcp.pop %v1141
        %v1143 = vmul.f32 %v1116, %v1142
        %v1144 = vmul.f32 %v1117, %v1142
        %v1145 = vmul.f32 %v1118, %v1142
        %v1146 = vmul.f32 %v1119, %v1142
        %1148 = vset.pattern.permute.xlu0 0
        %1149 = vperm.xlu0 %1148, %v1097
        %v1150 = vpop.permute.xlu0 %1149
        %1153 = vset.pattern.permute.xlu0 0
        %1154 = vperm.xlu0 %1153, %v1098
        %v1155 = vpop.permute.xlu0 %1154
        %1158 = vset.pattern.permute.xlu0 0
        %1159 = vperm.xlu0 %1158, %v1099
        %v1160 = vpop.permute.xlu0 %1159
        %1163 = vset.pattern.permute.xlu0 0
        %1164 = vperm.xlu0 %1163, %v1100
        %v1165 = vpop.permute.xlu0 %1164
        %v1167 = vmul.f32 %v1143, %v1150
        %v1168 = vmul.f32 %v1144, %v1155
        %v1169 = vmul.f32 %v1145, %v1160
        %v1170 = vmul.f32 %v1146, %v1165
        %1172 = vset.pattern.permute.xlu0 0
        %1173 = vperm.xlu0 %1172, %v1102
        %v1174 = vpop.permute.xlu0 %1173
        %1177 = vset.pattern.permute.xlu0 0
        %1178 = vperm.xlu0 %1177, %v1103
        %v1179 = vpop.permute.xlu0 %1178
        %1182 = vset.pattern.permute.xlu0 0
        %1183 = vperm.xlu0 %1182, %v1104
        %v1184 = vpop.permute.xlu0 %1183
        %1187 = vset.pattern.permute.xlu0 0
        %1188 = vperm.xlu0 %1187, %v1105
        %v1189 = vpop.permute.xlu0 %1188
        %v1191 = vadd.f32 %v1167, %v1174
        %v1192 = vadd.f32 %v1168, %v1179
        %v1193 = vadd.f32 %v1169, %v1184
        %v1194 = vadd.f32 %v1170, %v1189
        %s1195 = scalar_lea.vmem %s7, 32
        %v1196 = vld [vmem:[%s1195] sm:$0xff]
        %v1197 = vld [vmem:[%s1195 + $0x8] sm:$0xff]
        %v1198 = vld [vmem:[%s1195 + $0x10] sm:$0xff]
        %v1199 = vld [vmem:[%s1195 + $0x18] sm:$0xff]
        %s1200 = scalar_lea.vmem %s8, 32
        %v1201 = vld [vmem:[%s1200] sm:$0xff]
        %v1202 = vld [vmem:[%s1200 + $0x8] sm:$0xff]
        %v1203 = vld [vmem:[%s1200 + $0x10] sm:$0xff]
        %v1204 = vld [vmem:[%s1200 + $0x18] sm:$0xff]
        %1206 = vset.pattern.permute.xlu0 0
        %1207 = vperm.xlu0 %1206, %v1201
        %v1208 = vpop.permute.xlu0 %1207
        %1211 = vset.pattern.permute.xlu0 0
        %1212 = vperm.xlu0 %1211, %v1202
        %v1213 = vpop.permute.xlu0 %1212
        %1216 = vset.pattern.permute.xlu0 0
        %1217 = vperm.xlu0 %1216, %v1203
        %v1218 = vpop.permute.xlu0 %1217
        %1221 = vset.pattern.permute.xlu0 0
        %1222 = vperm.xlu0 %1221, %v1204
        %v1223 = vpop.permute.xlu0 %1222
        %v1226 = vsel %vm913, %v1196, 0
        %v1229 = vsel %vm913, %v1197, 0
        %v1232 = vsel %vm913, %v1198, 0
        %v1235 = vsel %vm913, %v1199, 0
        %1237 = vmatprep.subr.mxu0 0.0
        %1238 = vmatpush1.msra.mxu0 %v1191
        %1239 = vmatprep.subr.mxu0 0.0
        %1240 = vmatpush1.msra.mxu0 %v1192
        %1241 = vmatprep.subr.mxu0 0.0
        %1242 = vmatpush1.msra.mxu0 %v1193
        %1243 = vmatprep.subr.mxu0 0.0
        %1244 = vmatpush1.msra.mxu0 %v1194
        %1245 = vmatprep.subr.mxu0 0.0
        %1246 = vmatpush1.msra.mxu0 0.0
        %1247 = vmatprep.subr.mxu0 0.0
        %1248 = vmatpush1.msra.mxu0 0.0
        %1249 = vmatprep.subr.mxu0 0.0
        %1250 = vmatpush1.msra.mxu0 0.0
        %1251 = vmatprep.subr.mxu0 0.0
        %1252 = vmatpush1.msra.mxu0 0.0
        %1253 = vmatprep.subr.mxu0 0.0
        %1254 = vmatpush1.msra.mxu0 0.0
        %1255 = vmatprep.subr.mxu0 0.0
        %1256 = vmatpush1.msra.mxu0 0.0
        %1257 = vmatprep.subr.mxu0 0.0
        %1258 = vmatpush1.msra.mxu0 0.0
        %1259 = vmatprep.subr.mxu0 0.0
        %1260 = vmatpush1.msra.mxu0 0.0
        %1261 = vmatprep.subr.mxu0 0.0
        %1262 = vmatpush1.msra.mxu0 0.0
        %1263 = vmatprep.subr.mxu0 0.0
        %1264 = vmatpush1.msra.mxu0 0.0
        %1265 = vmatprep.subr.mxu0 0.0
        %1266 = vmatpush1.msra.mxu0 0.0
        %1267 = vmatprep.subr.mxu0 0.0
        %1268 = vmatpush1.msra.mxu0 0.0
        %1269 = vmatprep.subr.mxu0 0.0
        %1270 = vmatpush1.msra.mxu0 0.0
        %1271 = vmatprep.subr.mxu0 0.0
        %1272 = vmatpush1.msra.mxu0 0.0
        %1273 = vmatprep.subr.mxu0 0.0
        %1274 = vmatpush1.msra.mxu0 0.0
        %1275 = vmatprep.subr.mxu0 0.0
        %1276 = vmatpush1.msra.mxu0 0.0
        %1277 = vmatprep.subr.mxu0 0.0
        %1278 = vmatpush1.msra.mxu0 0.0
        %1279 = vmatprep.subr.mxu0 0.0
        %1280 = vmatpush1.msra.mxu0 0.0
        %1281 = vmatprep.subr.mxu0 0.0
        %1282 = vmatpush1.msra.mxu0 0.0
        %1283 = vmatprep.subr.mxu0 0.0
        %1284 = vmatpush1.msra.mxu0 0.0
        %1285 = vmatprep.subr.mxu0 0.0
        %1286 = vmatpush1.msra.mxu0 0.0
        %1287 = vmatprep.subr.mxu0 0.0
        %1288 = vmatpush1.msra.mxu0 0.0
        %1289 = vmatprep.subr.mxu0 0.0
        %1290 = vmatpush1.msra.mxu0 0.0
        %1291 = vmatprep.subr.mxu0 0.0
        %1292 = vmatpush1.msra.mxu0 0.0
        %1293 = vmatprep.subr.mxu0 0.0
        %1294 = vmatpush1.msra.mxu0 0.0
        %1295 = vmatprep.subr.mxu0 0.0
        %1296 = vmatpush1.msra.mxu0 0.0
        %1297 = vmatprep.subr.mxu0 0.0
        %1298 = vmatpush1.msra.mxu0 0.0
        %1299 = vmatprep.subr.mxu0 0.0
        %1300 = vmatpush1.msra.mxu0 0.0
        %1301 = vmatprep.mubr.f32.mxu0 0.0
        %1302 = vmatmul.mubr.f32.gmra.mrb[0].mxu0 %v1226
        %v1303 = vpop.f32.mrb[0].mxu0
        %v1304 = vadd.f32 %v1208, %v1303
        %v1305 = vpop.f32.mrb[0].mxu0
        %1306 = vmatprep.mubr.f32.mxu0 0.0
        %1307 = vmatmul.mubr.f32.gmra.mrb[0].mxu0 %v1229
        %v1308 = vpop.f32.mrb[0].mxu0
        %v1309 = vadd.f32 %v1213, %v1308
        %v1310 = vpop.f32.mrb[0].mxu0
        %1311 = vmatprep.mubr.f32.mxu0 0.0
        %1312 = vmatmul.mubr.f32.gmra.mrb[0].mxu0 %v1232
        %v1313 = vpop.f32.mrb[0].mxu0
        %v1314 = vadd.f32 %v1218, %v1313
        %v1315 = vpop.f32.mrb[0].mxu0
        %1316 = vmatprep.mubr.f32.mxu0 0.0
        %1317 = vmatmul.mubr.f32.gmra.mrb[0].mxu0 %v1235
        %v1318 = vpop.f32.mrb[0].mxu0
        %v1319 = vadd.f32 %v1223, %v1318
        %v1320 = vpop.f32.mrb[0].mxu0
        %1321 = vdwg.mxu0
        %s1322 = scalar_lea.vmem %s4, 64
        %v1323 = vld [vmem:[%s1322] sm:$0xff]
        %v1324 = vld [vmem:[%s1322 + $0x8] sm:$0xff]
        %v1325 = vld [vmem:[%s1322 + $0x10] sm:$0xff]
        %v1326 = vld [vmem:[%s1322 + $0x18] sm:$0xff]
        %1328 = vset.pattern.permute.xlu0 0
        %1329 = vperm.xlu0 %1328, %v1323
        %v1330 = vpop.permute.xlu0 %1329
        %1333 = vset.pattern.permute.xlu0 0
        %1334 = vperm.xlu0 %1333, %v1324
        %v1335 = vpop.permute.xlu0 %1334
        %1338 = vset.pattern.permute.xlu0 0
        %1339 = vperm.xlu0 %1338, %v1325
        %v1340 = vpop.permute.xlu0 %1339
        %1343 = vset.pattern.permute.xlu0 0
        %1344 = vperm.xlu0 %1343, %v1326
        %v1345 = vpop.permute.xlu0 %1344
        %v1347 = vmul.f32 %v1330, %v685
        %v1348 = vmul.f32 %v1335, %v686
        %v1349 = vmul.f32 %v1340, %v687
        %v1350 = vmul.f32 %v1345, %v688
        %1351 = vset.pattern.permute.xlu0 1
        %1352 = vperm.xlu0 %1351, %v1323
        %v1353 = vpop.permute.xlu0 %1352
        %1355 = vset.pattern.permute.xlu0 1
        %1356 = vperm.xlu0 %1355, %v1324
        %v1357 = vpop.permute.xlu0 %1356
        %1359 = vset.pattern.permute.xlu0 1
        %1360 = vperm.xlu0 %1359, %v1325
        %v1361 = vpop.permute.xlu0 %1360
        %1363 = vset.pattern.permute.xlu0 1
        %1364 = vperm.xlu0 %1363, %v1326
        %v1365 = vpop.permute.xlu0 %1364
        %v1367 = vmul.f32 %v1353, %v660
        %v1368 = vmul.f32 %v1357, %v661
        %v1369 = vmul.f32 %v1361, %v662
        %v1370 = vmul.f32 %v1365, %v663
        %v1371 = vadd.f32 %v1347, %v1367
        %v1372 = vadd.f32 %v1348, %v1368
        %v1373 = vadd.f32 %v1349, %v1369
        %v1374 = vadd.f32 %v1350, %v1370
        %1375 = vset.pattern.permute.xlu0 2
        %1376 = vperm.xlu0 %1375, %v1323
        %v1377 = vpop.permute.xlu0 %1376
        %1379 = vset.pattern.permute.xlu0 2
        %1380 = vperm.xlu0 %1379, %v1324
        %v1381 = vpop.permute.xlu0 %1380
        %1383 = vset.pattern.permute.xlu0 2
        %1384 = vperm.xlu0 %1383, %v1325
        %v1385 = vpop.permute.xlu0 %1384
        %1387 = vset.pattern.permute.xlu0 2
        %1388 = vperm.xlu0 %1387, %v1326
        %v1389 = vpop.permute.xlu0 %1388
        %v1391 = vmul.f32 %v1377, %v702
        %v1392 = vmul.f32 %v1381, %v703
        %v1393 = vmul.f32 %v1385, %v704
        %v1394 = vmul.f32 %v1389, %v705
        %v1395 = vadd.f32 %v1371, %v1391
        %v1396 = vadd.f32 %v1372, %v1392
        %v1397 = vadd.f32 %v1373, %v1393
        %v1398 = vadd.f32 %v1374, %v1394
        %v1399 = vmul.f32 %v1395, %v782
        %v1400 = vmul.f32 %v1396, %v782
        %v1401 = vmul.f32 %v1397, %v782
        %v1402 = vmul.f32 %v1398, %v782
        %s1403 = scalar_lea.vmem %s5, 64
        %v1404 = vld [vmem:[%s1403] sm:$0xff]
        %v1405 = vld [vmem:[%s1403 + $0x8] sm:$0xff]
        %v1406 = vld [vmem:[%s1403 + $0x10] sm:$0xff]
        %v1407 = vld [vmem:[%s1403 + $0x18] sm:$0xff]
        %s1408 = scalar_lea.vmem %s6, 64
        %v1409 = vld [vmem:[%s1408] sm:$0xff]
        %v1410 = vld [vmem:[%s1408 + $0x8] sm:$0xff]
        %v1411 = vld [vmem:[%s1408 + $0x10] sm:$0xff]
        %v1412 = vld [vmem:[%s1408 + $0x18] sm:$0xff]
        %v1413 = vadd.f32 %v1399, %v1400
        %v1414 = vadd.f32 %v1413, %v1401
        %v1415 = vadd.f32 %v1414, %v1402
        %v1416 = vrot.slane %v1415, 4
        %v1417 = vadd.f32 %v1415, %v1416
        %v1418 = vrot.slane %v1417, 2
        %v1419 = vadd.f32 %v1417, %v1418
        %v1420 = vrot.slane %v1419, 1
        %v1421 = vadd.f32 %v1419, %v1420
        %v1422 = vmul.f32 %v1421, %v583
        %v1423 = vsub.f32 %v1399, %v1422
        %v1424 = vsub.f32 %v1400, %v1422
        %v1425 = vsub.f32 %v1401, %v1422
        %v1426 = vsub.f32 %v1402, %v1422
        %v1427 = vmul.f32 %v1423, %v1423
        %v1428 = vmul.f32 %v1424, %v1424
        %v1429 = vmul.f32 %v1425, %v1425
        %v1430 = vmul.f32 %v1426, %v1426
        %v1431 = vadd.f32 %v1427, %v1428
        %v1432 = vadd.f32 %v1431, %v1429
        %v1433 = vadd.f32 %v1432, %v1430
        %v1434 = vrot.slane %v1433, 4
        %v1435 = vadd.f32 %v1433, %v1434
        %v1436 = vrot.slane %v1435, 2
        %v1437 = vadd.f32 %v1435, %v1436
        %v1438 = vrot.slane %v1437, 1
        %v1439 = vadd.f32 %v1437, %v1438
        %v1440 = vmul.f32 %v1439, %v583
        %v1441 = vadd.f32 %v1440, 1e-05
        %v1442 = vrsqrt.pop %v1441
        %v1443 = vmul.f32 %v1441, %v1442
        %vm1444 = vcmp.eq.f32.partialorder %v1441, inf
        %v1445 = vsel %vm1444, %v1441, %v1443
        %vm1446 = vcmp.eq.f32.partialorder %v1441, 0.0
        %v1447 = vand.u32 %v1441, 2147483648
        %v1448 = vsel %vm1446, %v1447, %v1445
        %v1449 = vrcp.pop %v1448
        %v1450 = vmul.f32 %v1423, %v1449
        %v1451 = vmul.f32 %v1424, %v1449
        %v1452 = vmul.f32 %v1425, %v1449
        %v1453 = vmul.f32 %v1426, %v1449
        %1455 = vset.pattern.permute.xlu0 0
        %1456 = vperm.xlu0 %1455, %v1404
        %v1457 = vpop.permute.xlu0 %1456
        %1460 = vset.pattern.permute.xlu0 0
        %1461 = vperm.xlu0 %1460, %v1405
        %v1462 = vpop.permute.xlu0 %1461
        %1465 = vset.pattern.permute.xlu0 0
        %1466 = vperm.xlu0 %1465, %v1406
        %v1467 = vpop.permute.xlu0 %1466
        %1470 = vset.pattern.permute.xlu0 0
        %1471 = vperm.xlu0 %1470, %v1407
        %v1472 = vpop.permute.xlu0 %1471
        %v1474 = vmul.f32 %v1450, %v1457
        %v1475 = vmul.f32 %v1451, %v1462
        %v1476 = vmul.f32 %v1452, %v1467
        %v1477 = vmul.f32 %v1453, %v1472
        %1479 = vset.pattern.permute.xlu0 0
        %1480 = vperm.xlu0 %1479, %v1409
        %v1481 = vpop.permute.xlu0 %1480
        %1484 = vset.pattern.permute.xlu0 0
        %1485 = vperm.xlu0 %1484, %v1410
        %v1486 = vpop.permute.xlu0 %1485
        %1489 = vset.pattern.permute.xlu0 0
        %1490 = vperm.xlu0 %1489, %v1411
        %v1491 = vpop.permute.xlu0 %1490
        %1494 = vset.pattern.permute.xlu0 0
        %1495 = vperm.xlu0 %1494, %v1412
        %v1496 = vpop.permute.xlu0 %1495
        %v1498 = vadd.f32 %v1474, %v1481
        %v1499 = vadd.f32 %v1475, %v1486
        %v1500 = vadd.f32 %v1476, %v1491
        %v1501 = vadd.f32 %v1477, %v1496
        %s1502 = scalar_lea.vmem %s7, 64
        %v1503 = vld [vmem:[%s1502] sm:$0xff]
        %v1504 = vld [vmem:[%s1502 + $0x8] sm:$0xff]
        %v1505 = vld [vmem:[%s1502 + $0x10] sm:$0xff]
        %v1506 = vld [vmem:[%s1502 + $0x18] sm:$0xff]
        %s1507 = scalar_lea.vmem %s8, 64
        %v1508 = vld [vmem:[%s1507] sm:$0xff]
        %v1509 = vld [vmem:[%s1507 + $0x8] sm:$0xff]
        %v1510 = vld [vmem:[%s1507 + $0x10] sm:$0xff]
        %v1511 = vld [vmem:[%s1507 + $0x18] sm:$0xff]
        %1513 = vset.pattern.permute.xlu0 0
        %1514 = vperm.xlu0 %1513, %v1508
        %v1515 = vpop.permute.xlu0 %1514
        %1518 = vset.pattern.permute.xlu0 0
        %1519 = vperm.xlu0 %1518, %v1509
        %v1520 = vpop.permute.xlu0 %1519
        %1523 = vset.pattern.permute.xlu0 0
        %1524 = vperm.xlu0 %1523, %v1510
        %v1525 = vpop.permute.xlu0 %1524
        %1528 = vset.pattern.permute.xlu0 0
        %1529 = vperm.xlu0 %1528, %v1511
        %v1530 = vpop.permute.xlu0 %1529
        %v1533 = vsel %vm913, %v1503, 0
        %v1536 = vsel %vm913, %v1504, 0
        %v1539 = vsel %vm913, %v1505, 0
        %v1542 = vsel %vm913, %v1506, 0
        %1544 = vmatprep.subr.mxu0 0.0
        %1545 = vmatpush1.msra.mxu0 %v1498
        %1546 = vmatprep.subr.mxu0 0.0
        %1547 = vmatpush1.msra.mxu0 %v1499
        %1548 = vmatprep.subr.mxu0 0.0
        %1549 = vmatpush1.msra.mxu0 %v1500
        %1550 = vmatprep.subr.mxu0 0.0
        %1551 = vmatpush1.msra.mxu0 %v1501
        %1552 = vmatprep.subr.mxu0 0.0
        %1553 = vmatpush1.msra.mxu0 0.0
        %1554 = vmatprep.subr.mxu0 0.0
        %1555 = vmatpush1.msra.mxu0 0.0
        %1556 = vmatprep.subr.mxu0 0.0
        %1557 = vmatpush1.msra.mxu0 0.0
        %1558 = vmatprep.subr.mxu0 0.0
        %1559 = vmatpush1.msra.mxu0 0.0
        %1560 = vmatprep.subr.mxu0 0.0
        %1561 = vmatpush1.msra.mxu0 0.0
        %1562 = vmatprep.subr.mxu0 0.0
        %1563 = vmatpush1.msra.mxu0 0.0
        %1564 = vmatprep.subr.mxu0 0.0
        %1565 = vmatpush1.msra.mxu0 0.0
        %1566 = vmatprep.subr.mxu0 0.0
        %1567 = vmatpush1.msra.mxu0 0.0
        %1568 = vmatprep.subr.mxu0 0.0
        %1569 = vmatpush1.msra.mxu0 0.0
        %1570 = vmatprep.subr.mxu0 0.0
        %1571 = vmatpush1.msra.mxu0 0.0
        %1572 = vmatprep.subr.mxu0 0.0
        %1573 = vmatpush1.msra.mxu0 0.0
        %1574 = vmatprep.subr.mxu0 0.0
        %1575 = vmatpush1.msra.mxu0 0.0
        %1576 = vmatprep.subr.mxu0 0.0
        %1577 = vmatpush1.msra.mxu0 0.0
        %1578 = vmatprep.subr.mxu0 0.0
        %1579 = vmatpush1.msra.mxu0 0.0
        %1580 = vmatprep.subr.mxu0 0.0
        %1581 = vmatpush1.msra.mxu0 0.0
        %1582 = vmatprep.subr.mxu0 0.0
        %1583 = vmatpush1.msra.mxu0 0.0
        %1584 = vmatprep.subr.mxu0 0.0
        %1585 = vmatpush1.msra.mxu0 0.0
        %1586 = vmatprep.subr.mxu0 0.0
        %1587 = vmatpush1.msra.mxu0 0.0
        %1588 = vmatprep.subr.mxu0 0.0
        %1589 = vmatpush1.msra.mxu0 0.0
        %1590 = vmatprep.subr.mxu0 0.0
        %1591 = vmatpush1.msra.mxu0 0.0
        %1592 = vmatprep.subr.mxu0 0.0
        %1593 = vmatpush1.msra.mxu0 0.0
        %1594 = vmatprep.subr.mxu0 0.0
        %1595 = vmatpush1.msra.mxu0 0.0
        %1596 = vmatprep.subr.mxu0 0.0
        %1597 = vmatpush1.msra.mxu0 0.0
        %1598 = vmatprep.subr.mxu0 0.0
        %1599 = vmatpush1.msra.mxu0 0.0
        %1600 = vmatprep.subr.mxu0 0.0
        %1601 = vmatpush1.msra.mxu0 0.0
        %1602 = vmatprep.subr.mxu0 0.0
        %1603 = vmatpush1.msra.mxu0 0.0
        %1604 = vmatprep.subr.mxu0 0.0
        %1605 = vmatpush1.msra.mxu0 0.0
        %1606 = vmatprep.subr.mxu0 0.0
        %1607 = vmatpush1.msra.mxu0 0.0
        %1608 = vmatprep.mubr.f32.mxu0 0.0
        %1609 = vmatmul.mubr.f32.gmra.mrb[0].mxu0 %v1533
        %v1610 = vpop.f32.mrb[0].mxu0
        %v1611 = vadd.f32 %v1515, %v1610
        %v1612 = vpop.f32.mrb[0].mxu0
        %1613 = vmatprep.mubr.f32.mxu0 0.0
        %1614 = vmatmul.mubr.f32.gmra.mrb[0].mxu0 %v1536
        %v1615 = vpop.f32.mrb[0].mxu0
        %v1616 = vadd.f32 %v1520, %v1615
        %v1617 = vpop.f32.mrb[0].mxu0
        %1618 = vmatprep.mubr.f32.mxu0 0.0
        %1619 = vmatmul.mubr.f32.gmra.mrb[0].mxu0 %v1539
        %v1620 = vpop.f32.mrb[0].mxu0
        %v1621 = vadd.f32 %v1525, %v1620
        %v1622 = vpop.f32.mrb[0].mxu0
        %1623 = vmatprep.mubr.f32.mxu0 0.0
        %1624 = vmatmul.mubr.f32.gmra.mrb[0].mxu0 %v1542
        %v1625 = vpop.f32.mrb[0].mxu0
        %v1626 = vadd.f32 %v1530, %v1625
        %v1627 = vpop.f32.mrb[0].mxu0
        %1628 = vdwg.mxu0
        %v1629 = vmul.f32 %v1611, %v782
        %v1630 = vmul.f32 %v1616, %v782
        %v1631 = vmul.f32 %v1621, %v782
        %v1632 = vmul.f32 %v1626, %v782
        %1633 = vxpose.xlu0.b32.start [1/16] %v1011, 128
        %1634 = vxpose.xlu0.b32.cont [2/16] %v1012, 128
        %1635 = vxpose.xlu0.b32.cont [3/16] %v1013, 128
        %1636 = vxpose.xlu0.b32.cont [4/16] %v1014, 128
        %1637 = vxpose.xlu0.b32.cont [5/16] 0.0, 128
        %1638 = vxpose.xlu0.b32.cont [6/16] 0.0, 128
        %1639 = vxpose.xlu0.b32.cont [7/16] 0.0, 128
        %1640 = vxpose.xlu0.b32.cont [8/16] 0.0, 128
        %1641 = vxpose.xlu0.b32.cont [9/16] 0.0, 128
        %1642 = vxpose.xlu0.b32.cont [10/16] 0.0, 128
        %1643 = vxpose.xlu0.b32.cont [11/16] 0.0, 128
        %1644 = vxpose.xlu0.b32.cont [12/16] 0.0, 128
        %1645 = vxpose.xlu0.b32.cont [13/16] 0.0, 128
        %1646 = vxpose.xlu0.b32.cont [14/16] 0.0, 128
        %1647 = vxpose.xlu0.b32.cont [15/16] 0.0, 128
        %1648 = vxpose.xlu0.b32.end [16/16] 0.0, 128
        %v1649 = vpop.trf.xlu0
        %v1650 = vpop.trf.xlu0
        %v1651 = vpop.trf.xlu0
        %v1652 = vpop.trf.xlu0
        %v1653 = vpop.trf.xlu0
        %v1654 = vpop.trf.xlu0
        %v1655 = vpop.trf.xlu0
        %v1656 = vpop.trf.xlu0
        %v1657 = vpop.trf.xlu0
        %v1658 = vpop.trf.xlu0
        %v1659 = vpop.trf.xlu0
        %v1660 = vpop.trf.xlu0
        %v1661 = vpop.trf.xlu0
        %v1662 = vpop.trf.xlu0
        %v1663 = vpop.trf.xlu0
        %v1664 = vpop.trf.xlu0
        %vm1665 = vcmask 64512
        %v1667 = vsel %vm1665, %v1649, 0
        %v1670 = vsel %vm1665, %v1650, 0
        %v1673 = vsel %vm1665, %v1651, 0
        %v1676 = vsel %vm1665, %v1652, 0
        %v1679 = vsel %vm1665, %v1653, 0
        %v1682 = vsel %vm1665, %v1654, 0
        %v1685 = vsel %vm1665, %v1655, 0
        %v1688 = vsel %vm1665, %v1656, 0
        %v1691 = vsel %vm1665, %v1657, 0
        %v1694 = vsel %vm1665, %v1658, 0
        %v1697 = vsel %vm1665, %v1659, 0
        %v1700 = vsel %vm1665, %v1660, 0
        %v1703 = vsel %vm1665, %v1661, 0
        %v1706 = vsel %vm1665, %v1662, 0
        %v1709 = vsel %vm1665, %v1663, 0
        %v1712 = vsel %vm1665, %v1664, 0
        %1714 = vmatprep.subr.mxu0 0.0
        %1715 = vmatpush1.msra.mxu0 %v1304
        %1716 = vmatprep.subr.mxu0 0.0
        %1717 = vmatpush1.msra.mxu0 0.0
        %1718 = vmatprep.subr.mxu0 0.0
        %1719 = vmatpush1.msra.mxu0 0.0
        %1720 = vmatprep.subr.mxu0 0.0
        %1721 = vmatpush1.msra.mxu0 0.0
        %1722 = vmatprep.subr.mxu0 0.0
        %1723 = vmatpush1.msra.mxu0 0.0
        %1724 = vmatprep.subr.mxu0 0.0
        %1725 = vmatpush1.msra.mxu0 0.0
        %1726 = vmatprep.subr.mxu0 0.0
        %1727 = vmatpush1.msra.mxu0 0.0
        %1728 = vmatprep.subr.mxu0 0.0
        %1729 = vmatpush1.msra.mxu0 0.0
        %1730 = vmatprep.subr.mxu0 0.0
        %1731 = vmatpush1.msra.mxu0 0.0
        %1732 = vmatprep.subr.mxu0 0.0
        %1733 = vmatpush1.msra.mxu0 0.0
        %1734 = vmatprep.subr.mxu0 0.0
        %1735 = vmatpush1.msra.mxu0 0.0
        %1736 = vmatprep.subr.mxu0 0.0
        %1737 = vmatpush1.msra.mxu0 0.0
        %1738 = vmatprep.subr.mxu0 0.0
        %1739 = vmatpush1.msra.mxu0 0.0
        %1740 = vmatprep.subr.mxu0 0.0
        %1741 = vmatpush1.msra.mxu0 0.0
        %1742 = vmatprep.subr.mxu0 0.0
        %1743 = vmatpush1.msra.mxu0 0.0
        %1744 = vmatprep.subr.mxu0 0.0
        %1745 = vmatpush1.msra.mxu0 0.0
        %1746 = vmatprep.subr.mxu0 0.0
        %1747 = vmatpush1.msra.mxu0 0.0
        %1748 = vmatprep.subr.mxu0 0.0
        %1749 = vmatpush1.msra.mxu0 0.0
        %1750 = vmatprep.subr.mxu0 0.0
        %1751 = vmatpush1.msra.mxu0 0.0
        %1752 = vmatprep.subr.mxu0 0.0
        %1753 = vmatpush1.msra.mxu0 0.0
        %1754 = vmatprep.subr.mxu0 0.0
        %1755 = vmatpush1.msra.mxu0 0.0
        %1756 = vmatprep.subr.mxu0 0.0
        %1757 = vmatpush1.msra.mxu0 0.0
        %1758 = vmatprep.subr.mxu0 0.0
        %1759 = vmatpush1.msra.mxu0 0.0
        %1760 = vmatprep.subr.mxu0 0.0
        %1761 = vmatpush1.msra.mxu0 0.0
        %1762 = vmatprep.subr.mxu0 0.0
        %1763 = vmatpush1.msra.mxu0 0.0
        %1764 = vmatprep.subr.mxu0 0.0
        %1765 = vmatpush1.msra.mxu0 0.0
        %1766 = vmatprep.subr.mxu0 0.0
        %1767 = vmatpush1.msra.mxu0 0.0
        %1768 = vmatprep.subr.mxu0 0.0
        %1769 = vmatpush1.msra.mxu0 0.0
        %1770 = vmatprep.subr.mxu0 0.0
        %1771 = vmatpush1.msra.mxu0 0.0
        %1772 = vmatprep.subr.mxu0 0.0
        %1773 = vmatpush1.msra.mxu0 0.0
        %1774 = vmatprep.subr.mxu0 0.0
        %1775 = vmatpush1.msra.mxu0 0.0
        %1776 = vmatprep.subr.mxu0 0.0
        %1777 = vmatpush1.msra.mxu0 0.0
        %1778 = vmatprep.mubr.f32.mxu0 0.0
        %1779 = vmatmul.mubr.f32.gmra.mrb[0].mxu0 %v1667
        %v1780 = vpop.f32.mrb[0].mxu0
        %v1781 = vadd.f32 0.0, %v1780
        %v1782 = vpop.f32.mrb[0].mxu0
        %1783 = vmatprep.mubr.f32.mxu0 0.0
        %1784 = vmatmul.mubr.f32.gmra.mrb[0].mxu0 %v1670
        %v1785 = vpop.f32.mrb[0].mxu0
        %v1786 = vadd.f32 0.0, %v1785
        %v1787 = vpop.f32.mrb[0].mxu0
        %1788 = vmatprep.mubr.f32.mxu0 0.0
        %1789 = vmatmul.mubr.f32.gmra.mrb[0].mxu0 %v1673
        %v1790 = vpop.f32.mrb[0].mxu0
        %v1791 = vadd.f32 0.0, %v1790
        %v1792 = vpop.f32.mrb[0].mxu0
        %1793 = vmatprep.mubr.f32.mxu0 0.0
        %1794 = vmatmul.mubr.f32.gmra.mrb[0].mxu0 %v1676
        %v1795 = vpop.f32.mrb[0].mxu0
        %v1796 = vadd.f32 0.0, %v1795
        %v1797 = vpop.f32.mrb[0].mxu0
        %1798 = vmatprep.mubr.f32.mxu0 0.0
        %1799 = vmatmul.mubr.f32.gmra.mrb[0].mxu0 %v1679
        %v1800 = vpop.f32.mrb[0].mxu0
        %v1801 = vadd.f32 0.0, %v1800
        %v1802 = vpop.f32.mrb[0].mxu0
        %1803 = vmatprep.mubr.f32.mxu0 0.0
        %1804 = vmatmul.mubr.f32.gmra.mrb[0].mxu0 %v1682
        %v1805 = vpop.f32.mrb[0].mxu0
        %v1806 = vadd.f32 0.0, %v1805
        %v1807 = vpop.f32.mrb[0].mxu0
        %1808 = vmatprep.mubr.f32.mxu0 0.0
        %1809 = vmatmul.mubr.f32.gmra.mrb[0].mxu0 %v1685
        %v1810 = vpop.f32.mrb[0].mxu0
        %v1811 = vadd.f32 0.0, %v1810
        %v1812 = vpop.f32.mrb[0].mxu0
        %1813 = vmatprep.mubr.f32.mxu0 0.0
        %1814 = vmatmul.mubr.f32.gmra.mrb[0].mxu0 %v1688
        %v1815 = vpop.f32.mrb[0].mxu0
        %v1816 = vadd.f32 0.0, %v1815
        %v1817 = vpop.f32.mrb[0].mxu0
        %1818 = vmatprep.mubr.f32.mxu0 0.0
        %1819 = vmatmul.mubr.f32.gmra.mrb[0].mxu0 %v1691
        %v1820 = vpop.f32.mrb[0].mxu0
        %v1821 = vadd.f32 0.0, %v1820
        %v1822 = vpop.f32.mrb[0].mxu0
        %1823 = vmatprep.mubr.f32.mxu0 0.0
        %1824 = vmatmul.mubr.f32.gmra.mrb[0].mxu0 %v1694
        %v1825 = vpop.f32.mrb[0].mxu0
        %v1826 = vadd.f32 0.0, %v1825
        %v1827 = vpop.f32.mrb[0].mxu0
        %1828 = vmatprep.mubr.f32.mxu0 0.0
        %1829 = vmatmul.mubr.f32.gmra.mrb[0].mxu0 %v1697
        %v1830 = vpop.f32.mrb[0].mxu0
        %v1831 = vadd.f32 0.0, %v1830
        %v1832 = vpop.f32.mrb[0].mxu0
        %1833 = vmatprep.mubr.f32.mxu0 0.0
        %1834 = vmatmul.mubr.f32.gmra.mrb[0].mxu0 %v1700
        %v1835 = vpop.f32.mrb[0].mxu0
        %v1836 = vadd.f32 0.0, %v1835
        %v1837 = vpop.f32.mrb[0].mxu0
        %1838 = vmatprep.mubr.f32.mxu0 0.0
        %1839 = vmatmul.mubr.f32.gmra.mrb[0].mxu0 %v1703
        %v1840 = vpop.f32.mrb[0].mxu0
        %v1841 = vadd.f32 0.0, %v1840
        %v1842 = vpop.f32.mrb[0].mxu0
        %1843 = vmatprep.mubr.f32.mxu0 0.0
        %1844 = vmatmul.mubr.f32.gmra.mrb[0].mxu0 %v1706
        %v1845 = vpop.f32.mrb[0].mxu0
        %v1846 = vadd.f32 0.0, %v1845
        %v1847 = vpop.f32.mrb[0].mxu0
        %1848 = vmatprep.mubr.f32.mxu0 0.0
        %1849 = vmatmul.mubr.f32.gmra.mrb[0].mxu0 %v1709
        %v1850 = vpop.f32.mrb[0].mxu0
        %v1851 = vadd.f32 0.0, %v1850
        %v1852 = vpop.f32.mrb[0].mxu0
        %1853 = vmatprep.mubr.f32.mxu0 0.0
        %1854 = vmatmul.mubr.f32.gmra.mrb[0].mxu0 %v1712
        %v1855 = vpop.f32.mrb[0].mxu0
        %v1856 = vadd.f32 0.0, %v1855
        %v1857 = vpop.f32.mrb[0].mxu0
        %1858 = vdwg.mxu0
        %1859 = vmax.xlane.f32.xlu0 %v1781
        %v1860 = vpop.xlane.xlu0 %1859
        %1861 = vmax.xlane.f32.xlu0 %v1786
        %v1862 = vpop.xlane.xlu0 %1861
        %1863 = vmax.xlane.f32.xlu0 %v1791
        %v1864 = vpop.xlane.xlu0 %1863
        %1865 = vmax.xlane.f32.xlu0 %v1796
        %v1866 = vpop.xlane.xlu0 %1865
        %1867 = vmax.xlane.f32.xlu0 %v1801
        %v1868 = vpop.xlane.xlu0 %1867
        %1869 = vmax.xlane.f32.xlu0 %v1806
        %v1870 = vpop.xlane.xlu0 %1869
        %1871 = vmax.xlane.f32.xlu0 %v1811
        %v1872 = vpop.xlane.xlu0 %1871
        %1873 = vmax.xlane.f32.xlu0 %v1816
        %v1874 = vpop.xlane.xlu0 %1873
        %1875 = vmax.xlane.f32.xlu0 %v1821
        %v1876 = vpop.xlane.xlu0 %1875
        %1877 = vmax.xlane.f32.xlu0 %v1826
        %v1878 = vpop.xlane.xlu0 %1877
        %1879 = vmax.xlane.f32.xlu0 %v1831
        %v1880 = vpop.xlane.xlu0 %1879
        %1881 = vmax.xlane.f32.xlu0 %v1836
        %v1882 = vpop.xlane.xlu0 %1881
        %1883 = vmax.xlane.f32.xlu0 %v1841
        %v1884 = vpop.xlane.xlu0 %1883
        %1885 = vmax.xlane.f32.xlu0 %v1846
        %v1886 = vpop.xlane.xlu0 %1885
        %1887 = vmax.xlane.f32.xlu0 %v1851
        %v1888 = vpop.xlane.xlu0 %1887
        %1889 = vmax.xlane.f32.xlu0 %v1856
        %v1890 = vpop.xlane.xlu0 %1889
        %v1891 = vsub.f32 %v1781, %v1860
        %v1892 = vsub.f32 %v1786, %v1862
        %v1893 = vsub.f32 %v1791, %v1864
        %v1894 = vsub.f32 %v1796, %v1866
        %v1895 = vsub.f32 %v1801, %v1868
        %v1896 = vsub.f32 %v1806, %v1870
        %v1897 = vsub.f32 %v1811, %v1872
        %v1898 = vsub.f32 %v1816, %v1874
        %v1899 = vsub.f32 %v1821, %v1876
        %v1900 = vsub.f32 %v1826, %v1878
        %v1901 = vsub.f32 %v1831, %v1880
        %v1902 = vsub.f32 %v1836, %v1882
        %v1903 = vsub.f32 %v1841, %v1884
        %v1904 = vsub.f32 %v1846, %v1886
        %v1905 = vsub.f32 %v1851, %v1888
        %v1906 = vsub.f32 %v1856, %v1890
        %v1907 = vmul.f32 %v1891, 1.442695
        %v1908 = vpow.pop %v1907
        %v1909 = vmul.f32 %v1892, 1.442695
        %v1910 = vpow.pop %v1909
        %v1911 = vmul.f32 %v1893, 1.442695
        %v1912 = vpow.pop %v1911
        %v1913 = vmul.f32 %v1894, 1.442695
        %v1914 = vpow.pop %v1913
        %v1915 = vmul.f32 %v1895, 1.442695
        %v1916 = vpow.pop %v1915
        %v1917 = vmul.f32 %v1896, 1.442695
        %v1918 = vpow.pop %v1917
        %v1919 = vmul.f32 %v1897, 1.442695
        %v1920 = vpow.pop %v1919
        %v1921 = vmul.f32 %v1898, 1.442695
        %v1922 = vpow.pop %v1921
        %v1923 = vmul.f32 %v1899, 1.442695
        %v1924 = vpow.pop %v1923
        %v1925 = vmul.f32 %v1900, 1.442695
        %v1926 = vpow.pop %v1925
        %v1927 = vmul.f32 %v1901, 1.442695
        %v1928 = vpow.pop %v1927
        %v1929 = vmul.f32 %v1902, 1.442695
        %v1930 = vpow.pop %v1929
        %v1931 = vmul.f32 %v1903, 1.442695
        %v1932 = vpow.pop %v1931
        %v1933 = vmul.f32 %v1904, 1.442695
        %v1934 = vpow.pop %v1933
        %v1935 = vmul.f32 %v1905, 1.442695
        %v1936 = vpow.pop %v1935
        %v1937 = vmul.f32 %v1906, 1.442695
        %v1938 = vpow.pop %v1937
        %1939 = vadd.xlane.f32.xlu0 %v1908
        %v1940 = vpop.xlane.xlu0 %1939
        %1941 = vadd.xlane.f32.xlu0 %v1910
        %v1942 = vpop.xlane.xlu0 %1941
        %1943 = vadd.xlane.f32.xlu0 %v1912
        %v1944 = vpop.xlane.xlu0 %1943
        %1945 = vadd.xlane.f32.xlu0 %v1914
        %v1946 = vpop.xlane.xlu0 %1945
        %1947 = vadd.xlane.f32.xlu0 %v1916
        %v1948 = vpop.xlane.xlu0 %1947
        %1949 = vadd.xlane.f32.xlu0 %v1918
        %v1950 = vpop.xlane.xlu0 %1949
        %1951 = vadd.xlane.f32.xlu0 %v1920
        %v1952 = vpop.xlane.xlu0 %1951
        %1953 = vadd.xlane.f32.xlu0 %v1922
        %v1954 = vpop.xlane.xlu0 %1953
        %1955 = vadd.xlane.f32.xlu0 %v1924
        %v1956 = vpop.xlane.xlu0 %1955
        %1957 = vadd.xlane.f32.xlu0 %v1926
        %v1958 = vpop.xlane.xlu0 %1957
        %1959 = vadd.xlane.f32.xlu0 %v1928
        %v1960 = vpop.xlane.xlu0 %1959
        %1961 = vadd.xlane.f32.xlu0 %v1930
        %v1962 = vpop.xlane.xlu0 %1961
        %1963 = vadd.xlane.f32.xlu0 %v1932
        %v1964 = vpop.xlane.xlu0 %1963
        %1965 = vadd.xlane.f32.xlu0 %v1934
        %v1966 = vpop.xlane.xlu0 %1965
        %1967 = vadd.xlane.f32.xlu0 %v1936
        %v1968 = vpop.xlane.xlu0 %1967
        %1969 = vadd.xlane.f32.xlu0 %v1938
        %v1970 = vpop.xlane.xlu0 %1969
        %v1971 = vrcp.pop %v1940
        %v1972 = vrcp.pop %v1942
        %v1973 = vrcp.pop %v1944
        %v1974 = vrcp.pop %v1946
        %v1975 = vrcp.pop %v1948
        %v1976 = vrcp.pop %v1950
        %v1977 = vrcp.pop %v1952
        %v1978 = vrcp.pop %v1954
        %v1979 = vrcp.pop %v1956
        %v1980 = vrcp.pop %v1958
        %v1981 = vrcp.pop %v1960
        %v1982 = vrcp.pop %v1962
        %v1983 = vrcp.pop %v1964
        %v1984 = vrcp.pop %v1966
        %v1985 = vrcp.pop %v1968
        %v1986 = vrcp.pop %v1970
        %v1987 = vmul.f32 %v1908, %v1971
        %v1988 = vmul.f32 %v1910, %v1972
        %v1989 = vmul.f32 %v1912, %v1973
        %v1990 = vmul.f32 %v1914, %v1974
        %v1991 = vmul.f32 %v1916, %v1975
        %v1992 = vmul.f32 %v1918, %v1976
        %v1993 = vmul.f32 %v1920, %v1977
        %v1994 = vmul.f32 %v1922, %v1978
        %v1995 = vmul.f32 %v1924, %v1979
        %v1996 = vmul.f32 %v1926, %v1980
        %v1997 = vmul.f32 %v1928, %v1981
        %v1998 = vmul.f32 %v1930, %v1982
        %v1999 = vmul.f32 %v1932, %v1983
        %v2000 = vmul.f32 %v1934, %v1984
        %v2001 = vmul.f32 %v1936, %v1985
        %v2002 = vmul.f32 %v1938, %v1986
        %2003 = vmatprep.subr.mxu0 0.0
        %2004 = vmatpush1.xpose.msra.mxu0 %v1987
        %2005 = vmatprep.subr.mxu0 0.0
        %2006 = vmatpush1.xpose.msra.mxu0 %v1988
        %2007 = vmatprep.subr.mxu0 0.0
        %2008 = vmatpush1.xpose.msra.mxu0 %v1989
        %2009 = vmatprep.subr.mxu0 0.0
        %2010 = vmatpush1.xpose.msra.mxu0 %v1990
        %2011 = vmatprep.subr.mxu0 0.0
        %2012 = vmatpush1.xpose.msra.mxu0 %v1991
        %2013 = vmatprep.subr.mxu0 0.0
        %2014 = vmatpush1.xpose.msra.mxu0 %v1992
        %2015 = vmatprep.subr.mxu0 0.0
        %2016 = vmatpush1.xpose.msra.mxu0 %v1993
        %2017 = vmatprep.subr.mxu0 0.0
        %2018 = vmatpush1.xpose.msra.mxu0 %v1994
        %2019 = vmatprep.subr.mxu0 0.0
        %2020 = vmatpush1.xpose.msra.mxu0 %v1995
        %2021 = vmatprep.subr.mxu0 0.0
        %2022 = vmatpush1.xpose.msra.mxu0 %v1996
        %2023 = vmatprep.subr.mxu0 0.0
        %2024 = vmatpush1.xpose.msra.mxu0 %v1997
        %2025 = vmatprep.subr.mxu0 0.0
        %2026 = vmatpush1.xpose.msra.mxu0 %v1998
        %2027 = vmatprep.subr.mxu0 0.0
        %2028 = vmatpush1.xpose.msra.mxu0 %v1999
        %2029 = vmatprep.subr.mxu0 0.0
        %2030 = vmatpush1.xpose.msra.mxu0 %v2000
        %2031 = vmatprep.subr.mxu0 0.0
        %2032 = vmatpush1.xpose.msra.mxu0 %v2001
        %2033 = vmatprep.subr.mxu0 0.0
        %2034 = vmatpush1.xpose.msra.mxu0 %v2002
        %2035 = vmatprep.subr.mxu0 0.0
        %2036 = vmatpush1.xpose.msra.mxu0 0.0
        %2037 = vmatprep.subr.mxu0 0.0
        %2038 = vmatpush1.xpose.msra.mxu0 0.0
        %2039 = vmatprep.subr.mxu0 0.0
        %2040 = vmatpush1.xpose.msra.mxu0 0.0
        %2041 = vmatprep.subr.mxu0 0.0
        %2042 = vmatpush1.xpose.msra.mxu0 0.0
        %2043 = vmatprep.subr.mxu0 0.0
        %2044 = vmatpush1.xpose.msra.mxu0 0.0
        %2045 = vmatprep.subr.mxu0 0.0
        %2046 = vmatpush1.xpose.msra.mxu0 0.0
        %2047 = vmatprep.subr.mxu0 0.0
        %2048 = vmatpush1.xpose.msra.mxu0 0.0
        %2049 = vmatprep.subr.mxu0 0.0
        %2050 = vmatpush1.xpose.msra.mxu0 0.0
        %2051 = vmatprep.subr.mxu0 0.0
        %2052 = vmatpush1.xpose.msra.mxu0 0.0
        %2053 = vmatprep.subr.mxu0 0.0
        %2054 = vmatpush1.xpose.msra.mxu0 0.0
        %2055 = vmatprep.subr.mxu0 0.0
        %2056 = vmatpush1.xpose.msra.mxu0 0.0
        %2057 = vmatprep.subr.mxu0 0.0
        %2058 = vmatpush1.xpose.msra.mxu0 0.0
        %2059 = vmatprep.subr.mxu0 0.0
        %2060 = vmatpush1.xpose.msra.mxu0 0.0
        %2061 = vmatprep.subr.mxu0 0.0
        %2062 = vmatpush1.xpose.msra.mxu0 0.0
        %2063 = vmatprep.subr.mxu0 0.0
        %2064 = vmatpush1.xpose.msra.mxu0 0.0
        %2065 = vmatprep.subr.mxu0 0.0
        %2066 = vmatpush1.xpose.msra.mxu0 0.0
        %2067 = vmatprep.mubr.f32.mxu0 0.0
        %2068 = vmatmul.mubr.f32.gmra.mrb[0].mxu0 %v1629
        %v2069 = vpop.f32.mrb[0].mxu0
        %v2070 = vadd.f32 0.0, %v2069
        %v2071 = vpop.f32.mrb[0].mxu0
        %2072 = vdwg.mxu0
        %2073 = vrot.lane.b32.xlu0 %v1649, 120
        %v2074 = vpop.permute.xlu0 %2073
        %2075 = vrot.lane.b32.xlu0 %v1650, 120
        %v2076 = vpop.permute.xlu0 %2075
        %2077 = vrot.lane.b32.xlu0 %v1651, 120
        %v2078 = vpop.permute.xlu0 %2077
        %2079 = vrot.lane.b32.xlu0 %v1652, 120
        %v2080 = vpop.permute.xlu0 %2079
        %2081 = vrot.lane.b32.xlu0 %v1653, 120
        %v2082 = vpop.permute.xlu0 %2081
        %2083 = vrot.lane.b32.xlu0 %v1654, 120
        %v2084 = vpop.permute.xlu0 %2083
        %2085 = vrot.lane.b32.xlu0 %v1655, 120
        %v2086 = vpop.permute.xlu0 %2085
        %2087 = vrot.lane.b32.xlu0 %v1656, 120
        %v2088 = vpop.permute.xlu0 %2087
        %2089 = vrot.lane.b32.xlu0 %v1657, 120
        %v2090 = vpop.permute.xlu0 %2089
        %2091 = vrot.lane.b32.xlu0 %v1658, 120
        %v2092 = vpop.permute.xlu0 %2091
        %2093 = vrot.lane.b32.xlu0 %v1659, 120
        %v2094 = vpop.permute.xlu0 %2093
        %2095 = vrot.lane.b32.xlu0 %v1660, 120
        %v2096 = vpop.permute.xlu0 %2095
        %2097 = vrot.lane.b32.xlu0 %v1661, 120
        %v2098 = vpop.permute.xlu0 %2097
        %2099 = vrot.lane.b32.xlu0 %v1662, 120
        %v2100 = vpop.permute.xlu0 %2099
        %2101 = vrot.lane.b32.xlu0 %v1663, 120
        %v2102 = vpop.permute.xlu0 %2101
        %2103 = vrot.lane.b32.xlu0 %v1664, 120
        %v2104 = vpop.permute.xlu0 %2103
        %v2105 = vsel %vm1665, %v2074, 0
        %v2107 = vsel %vm1665, %v2076, 0
        %v2109 = vsel %vm1665, %v2078, 0
        %v2111 = vsel %vm1665, %v2080, 0
        %v2113 = vsel %vm1665, %v2082, 0
        %v2115 = vsel %vm1665, %v2084, 0
        %v2117 = vsel %vm1665, %v2086, 0
        %v2119 = vsel %vm1665, %v2088, 0
        %v2121 = vsel %vm1665, %v2090, 0
        %v2123 = vsel %vm1665, %v2092, 0
        %v2125 = vsel %vm1665, %v2094, 0
        %v2127 = vsel %vm1665, %v2096, 0
        %v2129 = vsel %vm1665, %v2098, 0
        %v2131 = vsel %vm1665, %v2100, 0
        %v2133 = vsel %vm1665, %v2102, 0
        %v2135 = vsel %vm1665, %v2104, 0
        %2137 = vmatprep.subr.mxu0 0.0
        %2138 = vmatpush1.msra.mxu0 %v1309
        %2139 = vmatprep.subr.mxu0 0.0
        %2140 = vmatpush1.msra.mxu0 0.0
        %2141 = vmatprep.subr.mxu0 0.0
        %2142 = vmatpush1.msra.mxu0 0.0
        %2143 = vmatprep.subr.mxu0 0.0
        %2144 = vmatpush1.msra.mxu0 0.0
        %2145 = vmatprep.subr.mxu0 0.0
        %2146 = vmatpush1.msra.mxu0 0.0
        %2147 = vmatprep.subr.mxu0 0.0
        %2148 = vmatpush1.msra.mxu0 0.0
        %2149 = vmatprep.subr.mxu0 0.0
        %2150 = vmatpush1.msra.mxu0 0.0
        %2151 = vmatprep.subr.mxu0 0.0
        %2152 = vmatpush1.msra.mxu0 0.0
        %2153 = vmatprep.subr.mxu0 0.0
        %2154 = vmatpush1.msra.mxu0 0.0
        %2155 = vmatprep.subr.mxu0 0.0
        %2156 = vmatpush1.msra.mxu0 0.0
        %2157 = vmatprep.subr.mxu0 0.0
        %2158 = vmatpush1.msra.mxu0 0.0
        %2159 = vmatprep.subr.mxu0 0.0
        %2160 = vmatpush1.msra.mxu0 0.0
        %2161 = vmatprep.subr.mxu0 0.0
        %2162 = vmatpush1.msra.mxu0 0.0
        %2163 = vmatprep.subr.mxu0 0.0
        %2164 = vmatpush1.msra.mxu0 0.0
        %2165 = vmatprep.subr.mxu0 0.0
        %2166 = vmatpush1.msra.mxu0 0.0
        %2167 = vmatprep.subr.mxu0 0.0
        %2168 = vmatpush1.msra.mxu0 0.0
        %2169 = vmatprep.subr.mxu0 0.0
        %2170 = vmatpush1.msra.mxu0 0.0
        %2171 = vmatprep.subr.mxu0 0.0
        %2172 = vmatpush1.msra.mxu0 0.0
        %2173 = vmatprep.subr.mxu0 0.0
        %2174 = vmatpush1.msra.mxu0 0.0
        %2175 = vmatprep.subr.mxu0 0.0
        %2176 = vmatpush1.msra.mxu0 0.0
        %2177 = vmatprep.subr.mxu0 0.0
        %2178 = vmatpush1.msra.mxu0 0.0
        %2179 = vmatprep.subr.mxu0 0.0
        %2180 = vmatpush1.msra.mxu0 0.0
        %2181 = vmatprep.subr.mxu0 0.0
        %2182 = vmatpush1.msra.mxu0 0.0
        %2183 = vmatprep.subr.mxu0 0.0
        %2184 = vmatpush1.msra.mxu0 0.0
        %2185 = vmatprep.subr.mxu0 0.0
        %2186 = vmatpush1.msra.mxu0 0.0
        %2187 = vmatprep.subr.mxu0 0.0
        %2188 = vmatpush1.msra.mxu0 0.0
        %2189 = vmatprep.subr.mxu0 0.0
        %2190 = vmatpush1.msra.mxu0 0.0
        %2191 = vmatprep.subr.mxu0 0.0
        %2192 = vmatpush1.msra.mxu0 0.0
        %2193 = vmatprep.subr.mxu0 0.0
        %2194 = vmatpush1.msra.mxu0 0.0
        %2195 = vmatprep.subr.mxu0 0.0
        %2196 = vmatpush1.msra.mxu0 0.0
        %2197 = vmatprep.subr.mxu0 0.0
        %2198 = vmatpush1.msra.mxu0 0.0
        %2199 = vmatprep.subr.mxu0 0.0
        %2200 = vmatpush1.msra.mxu0 0.0
        %2201 = vmatprep.mubr.f32.mxu0 0.0
        %2202 = vmatmul.mubr.f32.gmra.mrb[0].mxu0 %v2105
        %v2203 = vpop.f32.mrb[0].mxu0
        %v2204 = vadd.f32 0.0, %v2203
        %v2205 = vpop.f32.mrb[0].mxu0
        %2206 = vmatprep.mubr.f32.mxu0 0.0
        %2207 = vmatmul.mubr.f32.gmra.mrb[0].mxu0 %v2107
        %v2208 = vpop.f32.mrb[0].mxu0
        %v2209 = vadd.f32 0.0, %v2208
        %v2210 = vpop.f32.mrb[0].mxu0
        %2211 = vmatprep.mubr.f32.mxu0 0.0
        %2212 = vmatmul.mubr.f32.gmra.mrb[0].mxu0 %v2109
        %v2213 = vpop.f32.mrb[0].mxu0
        %v2214 = vadd.f32 0.0, %v2213
        %v2215 = vpop.f32.mrb[0].mxu0
        %2216 = vmatprep.mubr.f32.mxu0 0.0
        %2217 = vmatmul.mubr.f32.gmra.mrb[0].mxu0 %v2111
        %v2218 = vpop.f32.mrb[0].mxu0
        %v2219 = vadd.f32 0.0, %v2218
        %v2220 = vpop.f32.mrb[0].mxu0
        %2221 = vmatprep.mubr.f32.mxu0 0.0
        %2222 = vmatmul.mubr.f32.gmra.mrb[0].mxu0 %v2113
        %v2223 = vpop.f32.mrb[0].mxu0
        %v2224 = vadd.f32 0.0, %v2223
        %v2225 = vpop.f32.mrb[0].mxu0
        %2226 = vmatprep.mubr.f32.mxu0 0.0
        %2227 = vmatmul.mubr.f32.gmra.mrb[0].mxu0 %v2115
        %v2228 = vpop.f32.mrb[0].mxu0
        %v2229 = vadd.f32 0.0, %v2228
        %v2230 = vpop.f32.mrb[0].mxu0
        %2231 = vmatprep.mubr.f32.mxu0 0.0
        %2232 = vmatmul.mubr.f32.gmra.mrb[0].mxu0 %v2117
        %v2233 = vpop.f32.mrb[0].mxu0
        %v2234 = vadd.f32 0.0, %v2233
        %v2235 = vpop.f32.mrb[0].mxu0
        %2236 = vmatprep.mubr.f32.mxu0 0.0
        %2237 = vmatmul.mubr.f32.gmra.mrb[0].mxu0 %v2119
        %v2238 = vpop.f32.mrb[0].mxu0
        %v2239 = vadd.f32 0.0, %v2238
        %v2240 = vpop.f32.mrb[0].mxu0
        %2241 = vmatprep.mubr.f32.mxu0 0.0
        %2242 = vmatmul.mubr.f32.gmra.mrb[0].mxu0 %v2121
        %v2243 = vpop.f32.mrb[0].mxu0
        %v2244 = vadd.f32 0.0, %v2243
        %v2245 = vpop.f32.mrb[0].mxu0
        %2246 = vmatprep.mubr.f32.mxu0 0.0
        %2247 = vmatmul.mubr.f32.gmra.mrb[0].mxu0 %v2123
        %v2248 = vpop.f32.mrb[0].mxu0
        %v2249 = vadd.f32 0.0, %v2248
        %v2250 = vpop.f32.mrb[0].mxu0
        %2251 = vmatprep.mubr.f32.mxu0 0.0
        %2252 = vmatmul.mubr.f32.gmra.mrb[0].mxu0 %v2125
        %v2253 = vpop.f32.mrb[0].mxu0
        %v2254 = vadd.f32 0.0, %v2253
        %v2255 = vpop.f32.mrb[0].mxu0
        %2256 = vmatprep.mubr.f32.mxu0 0.0
        %2257 = vmatmul.mubr.f32.gmra.mrb[0].mxu0 %v2127
        %v2258 = vpop.f32.mrb[0].mxu0
        %v2259 = vadd.f32 0.0, %v2258
        %v2260 = vpop.f32.mrb[0].mxu0
        %2261 = vmatprep.mubr.f32.mxu0 0.0
        %2262 = vmatmul.mubr.f32.gmra.mrb[0].mxu0 %v2129
        %v2263 = vpop.f32.mrb[0].mxu0
        %v2264 = vadd.f32 0.0, %v2263
        %v2265 = vpop.f32.mrb[0].mxu0
        %2266 = vmatprep.mubr.f32.mxu0 0.0
        %2267 = vmatmul.mubr.f32.gmra.mrb[0].mxu0 %v2131
        %v2268 = vpop.f32.mrb[0].mxu0
        %v2269 = vadd.f32 0.0, %v2268
        %v2270 = vpop.f32.mrb[0].mxu0
        %2271 = vmatprep.mubr.f32.mxu0 0.0
        %2272 = vmatmul.mubr.f32.gmra.mrb[0].mxu0 %v2133
        %v2273 = vpop.f32.mrb[0].mxu0
        %v2274 = vadd.f32 0.0, %v2273
        %v2275 = vpop.f32.mrb[0].mxu0
        %2276 = vmatprep.mubr.f32.mxu0 0.0
        %2277 = vmatmul.mubr.f32.gmra.mrb[0].mxu0 %v2135
        %v2278 = vpop.f32.mrb[0].mxu0
        %v2279 = vadd.f32 0.0, %v2278
        %v2280 = vpop.f32.mrb[0].mxu0
        %2281 = vdwg.mxu0
        %2282 = vmax.xlane.f32.xlu0 %v2204
        %v2283 = vpop.xlane.xlu0 %2282
        %2284 = vmax.xlane.f32.xlu0 %v2209
        %v2285 = vpop.xlane.xlu0 %2284
        %2286 = vmax.xlane.f32.xlu0 %v2214
        %v2287 = vpop.xlane.xlu0 %2286
        %2288 = vmax.xlane.f32.xlu0 %v2219
        %v2289 = vpop.xlane.xlu0 %2288
        %2290 = vmax.xlane.f32.xlu0 %v2224
        %v2291 = vpop.xlane.xlu0 %2290
        %2292 = vmax.xlane.f32.xlu0 %v2229
        %v2293 = vpop.xlane.xlu0 %2292
        %2294 = vmax.xlane.f32.xlu0 %v2234
        %v2295 = vpop.xlane.xlu0 %2294
        %2296 = vmax.xlane.f32.xlu0 %v2239
        %v2297 = vpop.xlane.xlu0 %2296
        %2298 = vmax.xlane.f32.xlu0 %v2244
        %v2299 = vpop.xlane.xlu0 %2298
        %2300 = vmax.xlane.f32.xlu0 %v2249
        %v2301 = vpop.xlane.xlu0 %2300
        %2302 = vmax.xlane.f32.xlu0 %v2254
        %v2303 = vpop.xlane.xlu0 %2302
        %2304 = vmax.xlane.f32.xlu0 %v2259
        %v2305 = vpop.xlane.xlu0 %2304
        %2306 = vmax.xlane.f32.xlu0 %v2264
        %v2307 = vpop.xlane.xlu0 %2306
        %2308 = vmax.xlane.f32.xlu0 %v2269
        %v2309 = vpop.xlane.xlu0 %2308
        %2310 = vmax.xlane.f32.xlu0 %v2274
        %v2311 = vpop.xlane.xlu0 %2310
        %2312 = vmax.xlane.f32.xlu0 %v2279
        %v2313 = vpop.xlane.xlu0 %2312
        %v2314 = vsub.f32 %v2204, %v2283
        %v2315 = vsub.f32 %v2209, %v2285
        %v2316 = vsub.f32 %v2214, %v2287
        %v2317 = vsub.f32 %v2219, %v2289
        %v2318 = vsub.f32 %v2224, %v2291
        %v2319 = vsub.f32 %v2229, %v2293
        %v2320 = vsub.f32 %v2234, %v2295
        %v2321 = vsub.f32 %v2239, %v2297
        %v2322 = vsub.f32 %v2244, %v2299
        %v2323 = vsub.f32 %v2249, %v2301
        %v2324 = vsub.f32 %v2254, %v2303
        %v2325 = vsub.f32 %v2259, %v2305
        %v2326 = vsub.f32 %v2264, %v2307
        %v2327 = vsub.f32 %v2269, %v2309
        %v2328 = vsub.f32 %v2274, %v2311
        %v2329 = vsub.f32 %v2279, %v2313
        %v2330 = vmul.f32 %v2314, 1.442695
        %v2331 = vpow.pop %v2330
        %v2332 = vmul.f32 %v2315, 1.442695
        %v2333 = vpow.pop %v2332
        %v2334 = vmul.f32 %v2316, 1.442695
        %v2335 = vpow.pop %v2334
        %v2336 = vmul.f32 %v2317, 1.442695
        %v2337 = vpow.pop %v2336
        %v2338 = vmul.f32 %v2318, 1.442695
        %v2339 = vpow.pop %v2338
        %v2340 = vmul.f32 %v2319, 1.442695
        %v2341 = vpow.pop %v2340
        %v2342 = vmul.f32 %v2320, 1.442695
        %v2343 = vpow.pop %v2342
        %v2344 = vmul.f32 %v2321, 1.442695
        %v2345 = vpow.pop %v2344
        %v2346 = vmul.f32 %v2322, 1.442695
        %v2347 = vpow.pop %v2346
        %v2348 = vmul.f32 %v2323, 1.442695
        %v2349 = vpow.pop %v2348
        %v2350 = vmul.f32 %v2324, 1.442695
        %v2351 = vpow.pop %v2350
        %v2352 = vmul.f32 %v2325, 1.442695
        %v2353 = vpow.pop %v2352
        %v2354 = vmul.f32 %v2326, 1.442695
        %v2355 = vpow.pop %v2354
        %v2356 = vmul.f32 %v2327, 1.442695
        %v2357 = vpow.pop %v2356
        %v2358 = vmul.f32 %v2328, 1.442695
        %v2359 = vpow.pop %v2358
        %v2360 = vmul.f32 %v2329, 1.442695
        %v2361 = vpow.pop %v2360
        %2362 = vadd.xlane.f32.xlu0 %v2331
        %v2363 = vpop.xlane.xlu0 %2362
        %2364 = vadd.xlane.f32.xlu0 %v2333
        %v2365 = vpop.xlane.xlu0 %2364
        %2366 = vadd.xlane.f32.xlu0 %v2335
        %v2367 = vpop.xlane.xlu0 %2366
        %2368 = vadd.xlane.f32.xlu0 %v2337
        %v2369 = vpop.xlane.xlu0 %2368
        %2370 = vadd.xlane.f32.xlu0 %v2339
        %v2371 = vpop.xlane.xlu0 %2370
        %2372 = vadd.xlane.f32.xlu0 %v2341
        %v2373 = vpop.xlane.xlu0 %2372
        %2374 = vadd.xlane.f32.xlu0 %v2343
        %v2375 = vpop.xlane.xlu0 %2374
        %2376 = vadd.xlane.f32.xlu0 %v2345
        %v2377 = vpop.xlane.xlu0 %2376
        %2378 = vadd.xlane.f32.xlu0 %v2347
        %v2379 = vpop.xlane.xlu0 %2378
        %2380 = vadd.xlane.f32.xlu0 %v2349
        %v2381 = vpop.xlane.xlu0 %2380
        %2382 = vadd.xlane.f32.xlu0 %v2351
        %v2383 = vpop.xlane.xlu0 %2382
        %2384 = vadd.xlane.f32.xlu0 %v2353
        %v2385 = vpop.xlane.xlu0 %2384
        %2386 = vadd.xlane.f32.xlu0 %v2355
        %v2387 = vpop.xlane.xlu0 %2386
        %2388 = vadd.xlane.f32.xlu0 %v2357
        %v2389 = vpop.xlane.xlu0 %2388
        %2390 = vadd.xlane.f32.xlu0 %v2359
        %v2391 = vpop.xlane.xlu0 %2390
        %2392 = vadd.xlane.f32.xlu0 %v2361
        %v2393 = vpop.xlane.xlu0 %2392
        %v2394 = vrcp.pop %v2363
        %v2395 = vrcp.pop %v2365
        %v2396 = vrcp.pop %v2367
        %v2397 = vrcp.pop %v2369
        %v2398 = vrcp.pop %v2371
        %v2399 = vrcp.pop %v2373
        %v2400 = vrcp.pop %v2375
        %v2401 = vrcp.pop %v2377
        %v2402 = vrcp.pop %v2379
        %v2403 = vrcp.pop %v2381
        %v2404 = vrcp.pop %v2383
        %v2405 = vrcp.pop %v2385
        %v2406 = vrcp.pop %v2387
        %v2407 = vrcp.pop %v2389
        %v2408 = vrcp.pop %v2391
        %v2409 = vrcp.pop %v2393
        %v2410 = vmul.f32 %v2331, %v2394
        %v2411 = vmul.f32 %v2333, %v2395
        %v2412 = vmul.f32 %v2335, %v2396
        %v2413 = vmul.f32 %v2337, %v2397
        %v2414 = vmul.f32 %v2339, %v2398
        %v2415 = vmul.f32 %v2341, %v2399
        %v2416 = vmul.f32 %v2343, %v2400
        %v2417 = vmul.f32 %v2345, %v2401
        %v2418 = vmul.f32 %v2347, %v2402
        %v2419 = vmul.f32 %v2349, %v2403
        %v2420 = vmul.f32 %v2351, %v2404
        %v2421 = vmul.f32 %v2353, %v2405
        %v2422 = vmul.f32 %v2355, %v2406
        %v2423 = vmul.f32 %v2357, %v2407
        %v2424 = vmul.f32 %v2359, %v2408
        %v2425 = vmul.f32 %v2361, %v2409
        %2426 = vmatprep.subr.mxu0 0.0
        %2427 = vmatpush1.xpose.msra.mxu0 %v2410
        %2428 = vmatprep.subr.mxu0 0.0
        %2429 = vmatpush1.xpose.msra.mxu0 %v2411
        %2430 = vmatprep.subr.mxu0 0.0
        %2431 = vmatpush1.xpose.msra.mxu0 %v2412
        %2432 = vmatprep.subr.mxu0 0.0
        %2433 = vmatpush1.xpose.msra.mxu0 %v2413
        %2434 = vmatprep.subr.mxu0 0.0
        %2435 = vmatpush1.xpose.msra.mxu0 %v2414
        %2436 = vmatprep.subr.mxu0 0.0
        %2437 = vmatpush1.xpose.msra.mxu0 %v2415
        %2438 = vmatprep.subr.mxu0 0.0
        %2439 = vmatpush1.xpose.msra.mxu0 %v2416
        %2440 = vmatprep.subr.mxu0 0.0
        %2441 = vmatpush1.xpose.msra.mxu0 %v2417
        %2442 = vmatprep.subr.mxu0 0.0
        %2443 = vmatpush1.xpose.msra.mxu0 %v2418
        %2444 = vmatprep.subr.mxu0 0.0
        %2445 = vmatpush1.xpose.msra.mxu0 %v2419
        %2446 = vmatprep.subr.mxu0 0.0
        %2447 = vmatpush1.xpose.msra.mxu0 %v2420
        %2448 = vmatprep.subr.mxu0 0.0
        %2449 = vmatpush1.xpose.msra.mxu0 %v2421
        %2450 = vmatprep.subr.mxu0 0.0
        %2451 = vmatpush1.xpose.msra.mxu0 %v2422
        %2452 = vmatprep.subr.mxu0 0.0
        %2453 = vmatpush1.xpose.msra.mxu0 %v2423
        %2454 = vmatprep.subr.mxu0 0.0
        %2455 = vmatpush1.xpose.msra.mxu0 %v2424
        %2456 = vmatprep.subr.mxu0 0.0
        %2457 = vmatpush1.xpose.msra.mxu0 %v2425
        %2458 = vmatprep.subr.mxu0 0.0
        %2459 = vmatpush1.xpose.msra.mxu0 0.0
        %2460 = vmatprep.subr.mxu0 0.0
        %2461 = vmatpush1.xpose.msra.mxu0 0.0
        %2462 = vmatprep.subr.mxu0 0.0
        %2463 = vmatpush1.xpose.msra.mxu0 0.0
        %2464 = vmatprep.subr.mxu0 0.0
        %2465 = vmatpush1.xpose.msra.mxu0 0.0
        %2466 = vmatprep.subr.mxu0 0.0
        %2467 = vmatpush1.xpose.msra.mxu0 0.0
        %2468 = vmatprep.subr.mxu0 0.0
        %2469 = vmatpush1.xpose.msra.mxu0 0.0
        %2470 = vmatprep.subr.mxu0 0.0
        %2471 = vmatpush1.xpose.msra.mxu0 0.0
        %2472 = vmatprep.subr.mxu0 0.0
        %2473 = vmatpush1.xpose.msra.mxu0 0.0
        %2474 = vmatprep.subr.mxu0 0.0
        %2475 = vmatpush1.xpose.msra.mxu0 0.0
        %2476 = vmatprep.subr.mxu0 0.0
        %2477 = vmatpush1.xpose.msra.mxu0 0.0
        %2478 = vmatprep.subr.mxu0 0.0
        %2479 = vmatpush1.xpose.msra.mxu0 0.0
        %2480 = vmatprep.subr.mxu0 0.0
        %2481 = vmatpush1.xpose.msra.mxu0 0.0
        %2482 = vmatprep.subr.mxu0 0.0
        %2483 = vmatpush1.xpose.msra.mxu0 0.0
        %2484 = vmatprep.subr.mxu0 0.0
        %2485 = vmatpush1.xpose.msra.mxu0 0.0
        %2486 = vmatprep.subr.mxu0 0.0
        %2487 = vmatpush1.xpose.msra.mxu0 0.0
        %2488 = vmatprep.subr.mxu0 0.0
        %2489 = vmatpush1.xpose.msra.mxu0 0.0
        %2490 = vmatprep.mubr.f32.mxu0 0.0
        %2491 = vmatmul.mubr.f32.gmra.mrb[0].mxu0 %v1630
        %v2492 = vpop.f32.mrb[0].mxu0
        %v2493 = vadd.f32 0.0, %v2492
        %v2494 = vpop.f32.mrb[0].mxu0
        %2495 = vdwg.mxu0
        %2496 = vrot.lane.b32.xlu0 %v1649, 112
        %v2497 = vpop.permute.xlu0 %2496
        %2498 = vrot.lane.b32.xlu0 %v1650, 112
        %v2499 = vpop.permute.xlu0 %2498
        %2500 = vrot.lane.b32.xlu0 %v1651, 112
        %v2501 = vpop.permute.xlu0 %2500
        %2502 = vrot.lane.b32.xlu0 %v1652, 112
        %v2503 = vpop.permute.xlu0 %2502
        %2504 = vrot.lane.b32.xlu0 %v1653, 112
        %v2505 = vpop.permute.xlu0 %2504
        %2506 = vrot.lane.b32.xlu0 %v1654, 112
        %v2507 = vpop.permute.xlu0 %2506
        %2508 = vrot.lane.b32.xlu0 %v1655, 112
        %v2509 = vpop.permute.xlu0 %2508
        %2510 = vrot.lane.b32.xlu0 %v1656, 112
        %v2511 = vpop.permute.xlu0 %2510
        %2512 = vrot.lane.b32.xlu0 %v1657, 112
        %v2513 = vpop.permute.xlu0 %2512
        %2514 = vrot.lane.b32.xlu0 %v1658, 112
        %v2515 = vpop.permute.xlu0 %2514
        %2516 = vrot.lane.b32.xlu0 %v1659, 112
        %v2517 = vpop.permute.xlu0 %2516
        %2518 = vrot.lane.b32.xlu0 %v1660, 112
        %v2519 = vpop.permute.xlu0 %2518
        %2520 = vrot.lane.b32.xlu0 %v1661, 112
        %v2521 = vpop.permute.xlu0 %2520
        %2522 = vrot.lane.b32.xlu0 %v1662, 112
        %v2523 = vpop.permute.xlu0 %2522
        %2524 = vrot.lane.b32.xlu0 %v1663, 112
        %v2525 = vpop.permute.xlu0 %2524
        %2526 = vrot.lane.b32.xlu0 %v1664, 112
        %v2527 = vpop.permute.xlu0 %2526
        %v2528 = vsel %vm1665, %v2497, 0
        %v2530 = vsel %vm1665, %v2499, 0
        %v2532 = vsel %vm1665, %v2501, 0
        %v2534 = vsel %vm1665, %v2503, 0
        %v2536 = vsel %vm1665, %v2505, 0
        %v2538 = vsel %vm1665, %v2507, 0
        %v2540 = vsel %vm1665, %v2509, 0
        %v2542 = vsel %vm1665, %v2511, 0
        %v2544 = vsel %vm1665, %v2513, 0
        %v2546 = vsel %vm1665, %v2515, 0
        %v2548 = vsel %vm1665, %v2517, 0
        %v2550 = vsel %vm1665, %v2519, 0
        %v2552 = vsel %vm1665, %v2521, 0
        %v2554 = vsel %vm1665, %v2523, 0
        %v2556 = vsel %vm1665, %v2525, 0
        %v2558 = vsel %vm1665, %v2527, 0
        %2560 = vmatprep.subr.mxu0 0.0
        %2561 = vmatpush1.msra.mxu0 %v1314
        %2562 = vmatprep.subr.mxu0 0.0
        %2563 = vmatpush1.msra.mxu0 0.0
        %2564 = vmatprep.subr.mxu0 0.0
        %2565 = vmatpush1.msra.mxu0 0.0
        %2566 = vmatprep.subr.mxu0 0.0
        %2567 = vmatpush1.msra.mxu0 0.0
        %2568 = vmatprep.subr.mxu0 0.0
        %2569 = vmatpush1.msra.mxu0 0.0
        %2570 = vmatprep.subr.mxu0 0.0
        %2571 = vmatpush1.msra.mxu0 0.0
        %2572 = vmatprep.subr.mxu0 0.0
        %2573 = vmatpush1.msra.mxu0 0.0
        %2574 = vmatprep.subr.mxu0 0.0
        %2575 = vmatpush1.msra.mxu0 0.0
        %2576 = vmatprep.subr.mxu0 0.0
        %2577 = vmatpush1.msra.mxu0 0.0
        %2578 = vmatprep.subr.mxu0 0.0
        %2579 = vmatpush1.msra.mxu0 0.0
        %2580 = vmatprep.subr.mxu0 0.0
        %2581 = vmatpush1.msra.mxu0 0.0
        %2582 = vmatprep.subr.mxu0 0.0
        %2583 = vmatpush1.msra.mxu0 0.0
        %2584 = vmatprep.subr.mxu0 0.0
        %2585 = vmatpush1.msra.mxu0 0.0
        %2586 = vmatprep.subr.mxu0 0.0
        %2587 = vmatpush1.msra.mxu0 0.0
        %2588 = vmatprep.subr.mxu0 0.0
        %2589 = vmatpush1.msra.mxu0 0.0
        %2590 = vmatprep.subr.mxu0 0.0
        %2591 = vmatpush1.msra.mxu0 0.0
        %2592 = vmatprep.subr.mxu0 0.0
        %2593 = vmatpush1.msra.mxu0 0.0
        %2594 = vmatprep.subr.mxu0 0.0
        %2595 = vmatpush1.msra.mxu0 0.0
        %2596 = vmatprep.subr.mxu0 0.0
        %2597 = vmatpush1.msra.mxu0 0.0
        %2598 = vmatprep.subr.mxu0 0.0
        %2599 = vmatpush1.msra.mxu0 0.0
        %2600 = vmatprep.subr.mxu0 0.0
        %2601 = vmatpush1.msra.mxu0 0.0
        %2602 = vmatprep.subr.mxu0 0.0
        %2603 = vmatpush1.msra.mxu0 0.0
        %2604 = vmatprep.subr.mxu0 0.0
        %2605 = vmatpush1.msra.mxu0 0.0
        %2606 = vmatprep.subr.mxu0 0.0
        %2607 = vmatpush1.msra.mxu0 0.0
        %2608 = vmatprep.subr.mxu0 0.0
        %2609 = vmatpush1.msra.mxu0 0.0
        %2610 = vmatprep.subr.mxu0 0.0
        %2611 = vmatpush1.msra.mxu0 0.0
        %2612 = vmatprep.subr.mxu0 0.0
        %2613 = vmatpush1.msra.mxu0 0.0
        %2614 = vmatprep.subr.mxu0 0.0
        %2615 = vmatpush1.msra.mxu0 0.0
        %2616 = vmatprep.subr.mxu0 0.0
        %2617 = vmatpush1.msra.mxu0 0.0
        %2618 = vmatprep.subr.mxu0 0.0
        %2619 = vmatpush1.msra.mxu0 0.0
        %2620 = vmatprep.subr.mxu0 0.0
        %2621 = vmatpush1.msra.mxu0 0.0
        %2622 = vmatprep.subr.mxu0 0.0
        %2623 = vmatpush1.msra.mxu0 0.0
        %2624 = vmatprep.mubr.f32.mxu0 0.0
        %2625 = vmatmul.mubr.f32.gmra.mrb[0].mxu0 %v2528
        %v2626 = vpop.f32.mrb[0].mxu0
        %v2627 = vadd.f32 0.0, %v2626
        %v2628 = vpop.f32.mrb[0].mxu0
        %2629 = vmatprep.mubr.f32.mxu0 0.0
        %2630 = vmatmul.mubr.f32.gmra.mrb[0].mxu0 %v2530
        %v2631 = vpop.f32.mrb[0].mxu0
        %v2632 = vadd.f32 0.0, %v2631
        %v2633 = vpop.f32.mrb[0].mxu0
        %2634 = vmatprep.mubr.f32.mxu0 0.0
        %2635 = vmatmul.mubr.f32.gmra.mrb[0].mxu0 %v2532
        %v2636 = vpop.f32.mrb[0].mxu0
        %v2637 = vadd.f32 0.0, %v2636
        %v2638 = vpop.f32.mrb[0].mxu0
        %2639 = vmatprep.mubr.f32.mxu0 0.0
        %2640 = vmatmul.mubr.f32.gmra.mrb[0].mxu0 %v2534
        %v2641 = vpop.f32.mrb[0].mxu0
        %v2642 = vadd.f32 0.0, %v2641
        %v2643 = vpop.f32.mrb[0].mxu0
        %2644 = vmatprep.mubr.f32.mxu0 0.0
        %2645 = vmatmul.mubr.f32.gmra.mrb[0].mxu0 %v2536
        %v2646 = vpop.f32.mrb[0].mxu0
        %v2647 = vadd.f32 0.0, %v2646
        %v2648 = vpop.f32.mrb[0].mxu0
        %2649 = vmatprep.mubr.f32.mxu0 0.0
        %2650 = vmatmul.mubr.f32.gmra.mrb[0].mxu0 %v2538
        %v2651 = vpop.f32.mrb[0].mxu0
        %v2652 = vadd.f32 0.0, %v2651
        %v2653 = vpop.f32.mrb[0].mxu0
        %2654 = vmatprep.mubr.f32.mxu0 0.0
        %2655 = vmatmul.mubr.f32.gmra.mrb[0].mxu0 %v2540
        %v2656 = vpop.f32.mrb[0].mxu0
        %v2657 = vadd.f32 0.0, %v2656
        %v2658 = vpop.f32.mrb[0].mxu0
        %2659 = vmatprep.mubr.f32.mxu0 0.0
        %2660 = vmatmul.mubr.f32.gmra.mrb[0].mxu0 %v2542
        %v2661 = vpop.f32.mrb[0].mxu0
        %v2662 = vadd.f32 0.0, %v2661
        %v2663 = vpop.f32.mrb[0].mxu0
        %2664 = vmatprep.mubr.f32.mxu0 0.0
        %2665 = vmatmul.mubr.f32.gmra.mrb[0].mxu0 %v2544
        %v2666 = vpop.f32.mrb[0].mxu0
        %v2667 = vadd.f32 0.0, %v2666
        %v2668 = vpop.f32.mrb[0].mxu0
        %2669 = vmatprep.mubr.f32.mxu0 0.0
        %2670 = vmatmul.mubr.f32.gmra.mrb[0].mxu0 %v2546
        %v2671 = vpop.f32.mrb[0].mxu0
        %v2672 = vadd.f32 0.0, %v2671
        %v2673 = vpop.f32.mrb[0].mxu0
        %2674 = vmatprep.mubr.f32.mxu0 0.0
        %2675 = vmatmul.mubr.f32.gmra.mrb[0].mxu0 %v2548
        %v2676 = vpop.f32.mrb[0].mxu0
        %v2677 = vadd.f32 0.0, %v2676
        %v2678 = vpop.f32.mrb[0].mxu0
        %2679 = vmatprep.mubr.f32.mxu0 0.0
        %2680 = vmatmul.mubr.f32.gmra.mrb[0].mxu0 %v2550
        %v2681 = vpop.f32.mrb[0].mxu0
        %v2682 = vadd.f32 0.0, %v2681
        %v2683 = vpop.f32.mrb[0].mxu0
        %2684 = vmatprep.mubr.f32.mxu0 0.0
        %2685 = vmatmul.mubr.f32.gmra.mrb[0].mxu0 %v2552
        %v2686 = vpop.f32.mrb[0].mxu0
        %v2687 = vadd.f32 0.0, %v2686
        %v2688 = vpop.f32.mrb[0].mxu0
        %2689 = vmatprep.mubr.f32.mxu0 0.0
        %2690 = vmatmul.mubr.f32.gmra.mrb[0].mxu0 %v2554
        %v2691 = vpop.f32.mrb[0].mxu0
        %v2692 = vadd.f32 0.0, %v2691
        %v2693 = vpop.f32.mrb[0].mxu0
        %2694 = vmatprep.mubr.f32.mxu0 0.0
        %2695 = vmatmul.mubr.f32.gmra.mrb[0].mxu0 %v2556
        %v2696 = vpop.f32.mrb[0].mxu0
        %v2697 = vadd.f32 0.0, %v2696
        %v2698 = vpop.f32.mrb[0].mxu0
        %2699 = vmatprep.mubr.f32.mxu0 0.0
        %2700 = vmatmul.mubr.f32.gmra.mrb[0].mxu0 %v2558
        %v2701 = vpop.f32.mrb[0].mxu0
        %v2702 = vadd.f32 0.0, %v2701
        %v2703 = vpop.f32.mrb[0].mxu0
        %2704 = vdwg.mxu0
        %2705 = vmax.xlane.f32.xlu0 %v2627
        %v2706 = vpop.xlane.xlu0 %2705
        %2707 = vmax.xlane.f32.xlu0 %v2632
        %v2708 = vpop.xlane.xlu0 %2707
        %2709 = vmax.xlane.f32.xlu0 %v2637
        %v2710 = vpop.xlane.xlu0 %2709
        %2711 = vmax.xlane.f32.xlu0 %v2642
        %v2712 = vpop.xlane.xlu0 %2711
        %2713 = vmax.xlane.f32.xlu0 %v2647
        %v2714 = vpop.xlane.xlu0 %2713
        %2715 = vmax.xlane.f32.xlu0 %v2652
        %v2716 = vpop.xlane.xlu0 %2715
        %2717 = vmax.xlane.f32.xlu0 %v2657
        %v2718 = vpop.xlane.xlu0 %2717
        %2719 = vmax.xlane.f32.xlu0 %v2662
        %v2720 = vpop.xlane.xlu0 %2719
        %2721 = vmax.xlane.f32.xlu0 %v2667
        %v2722 = vpop.xlane.xlu0 %2721
        %2723 = vmax.xlane.f32.xlu0 %v2672
        %v2724 = vpop.xlane.xlu0 %2723
        %2725 = vmax.xlane.f32.xlu0 %v2677
        %v2726 = vpop.xlane.xlu0 %2725
        %2727 = vmax.xlane.f32.xlu0 %v2682
        %v2728 = vpop.xlane.xlu0 %2727
        %2729 = vmax.xlane.f32.xlu0 %v2687
        %v2730 = vpop.xlane.xlu0 %2729
        %2731 = vmax.xlane.f32.xlu0 %v2692
        %v2732 = vpop.xlane.xlu0 %2731
        %2733 = vmax.xlane.f32.xlu0 %v2697
        %v2734 = vpop.xlane.xlu0 %2733
        %2735 = vmax.xlane.f32.xlu0 %v2702
        %v2736 = vpop.xlane.xlu0 %2735
        %v2737 = vsub.f32 %v2627, %v2706
        %v2738 = vsub.f32 %v2632, %v2708
        %v2739 = vsub.f32 %v2637, %v2710
        %v2740 = vsub.f32 %v2642, %v2712
        %v2741 = vsub.f32 %v2647, %v2714
        %v2742 = vsub.f32 %v2652, %v2716
        %v2743 = vsub.f32 %v2657, %v2718
        %v2744 = vsub.f32 %v2662, %v2720
        %v2745 = vsub.f32 %v2667, %v2722
        %v2746 = vsub.f32 %v2672, %v2724
        %v2747 = vsub.f32 %v2677, %v2726
        %v2748 = vsub.f32 %v2682, %v2728
        %v2749 = vsub.f32 %v2687, %v2730
        %v2750 = vsub.f32 %v2692, %v2732
        %v2751 = vsub.f32 %v2697, %v2734
        %v2752 = vsub.f32 %v2702, %v2736
        %v2753 = vmul.f32 %v2737, 1.442695
        %v2754 = vpow.pop %v2753
        %v2755 = vmul.f32 %v2738, 1.442695
        %v2756 = vpow.pop %v2755
        %v2757 = vmul.f32 %v2739, 1.442695
        %v2758 = vpow.pop %v2757
        %v2759 = vmul.f32 %v2740, 1.442695
        %v2760 = vpow.pop %v2759
        %v2761 = vmul.f32 %v2741, 1.442695
        %v2762 = vpow.pop %v2761
        %v2763 = vmul.f32 %v2742, 1.442695
        %v2764 = vpow.pop %v2763
        %v2765 = vmul.f32 %v2743, 1.442695
        %v2766 = vpow.pop %v2765
        %v2767 = vmul.f32 %v2744, 1.442695
        %v2768 = vpow.pop %v2767
        %v2769 = vmul.f32 %v2745, 1.442695
        %v2770 = vpow.pop %v2769
        %v2771 = vmul.f32 %v2746, 1.442695
        %v2772 = vpow.pop %v2771
        %v2773 = vmul.f32 %v2747, 1.442695
        %v2774 = vpow.pop %v2773
        %v2775 = vmul.f32 %v2748, 1.442695
        %v2776 = vpow.pop %v2775
        %v2777 = vmul.f32 %v2749, 1.442695
        %v2778 = vpow.pop %v2777
        %v2779 = vmul.f32 %v2750, 1.442695
        %v2780 = vpow.pop %v2779
        %v2781 = vmul.f32 %v2751, 1.442695
        %v2782 = vpow.pop %v2781
        %v2783 = vmul.f32 %v2752, 1.442695
        %v2784 = vpow.pop %v2783
        %2785 = vadd.xlane.f32.xlu0 %v2754
        %v2786 = vpop.xlane.xlu0 %2785
        %2787 = vadd.xlane.f32.xlu0 %v2756
        %v2788 = vpop.xlane.xlu0 %2787
        %2789 = vadd.xlane.f32.xlu0 %v2758
        %v2790 = vpop.xlane.xlu0 %2789
        %2791 = vadd.xlane.f32.xlu0 %v2760
        %v2792 = vpop.xlane.xlu0 %2791
        %2793 = vadd.xlane.f32.xlu0 %v2762
        %v2794 = vpop.xlane.xlu0 %2793
        %2795 = vadd.xlane.f32.xlu0 %v2764
        %v2796 = vpop.xlane.xlu0 %2795
        %2797 = vadd.xlane.f32.xlu0 %v2766
        %v2798 = vpop.xlane.xlu0 %2797
        %2799 = vadd.xlane.f32.xlu0 %v2768
        %v2800 = vpop.xlane.xlu0 %2799
        %2801 = vadd.xlane.f32.xlu0 %v2770
        %v2802 = vpop.xlane.xlu0 %2801
        %2803 = vadd.xlane.f32.xlu0 %v2772
        %v2804 = vpop.xlane.xlu0 %2803
        %2805 = vadd.xlane.f32.xlu0 %v2774
        %v2806 = vpop.xlane.xlu0 %2805
        %2807 = vadd.xlane.f32.xlu0 %v2776
        %v2808 = vpop.xlane.xlu0 %2807
        %2809 = vadd.xlane.f32.xlu0 %v2778
        %v2810 = vpop.xlane.xlu0 %2809
        %2811 = vadd.xlane.f32.xlu0 %v2780
        %v2812 = vpop.xlane.xlu0 %2811
        %2813 = vadd.xlane.f32.xlu0 %v2782
        %v2814 = vpop.xlane.xlu0 %2813
        %2815 = vadd.xlane.f32.xlu0 %v2784
        %v2816 = vpop.xlane.xlu0 %2815
        %v2817 = vrcp.pop %v2786
        %v2818 = vrcp.pop %v2788
        %v2819 = vrcp.pop %v2790
        %v2820 = vrcp.pop %v2792
        %v2821 = vrcp.pop %v2794
        %v2822 = vrcp.pop %v2796
        %v2823 = vrcp.pop %v2798
        %v2824 = vrcp.pop %v2800
        %v2825 = vrcp.pop %v2802
        %v2826 = vrcp.pop %v2804
        %v2827 = vrcp.pop %v2806
        %v2828 = vrcp.pop %v2808
        %v2829 = vrcp.pop %v2810
        %v2830 = vrcp.pop %v2812
        %v2831 = vrcp.pop %v2814
        %v2832 = vrcp.pop %v2816
        %v2833 = vmul.f32 %v2754, %v2817
        %v2834 = vmul.f32 %v2756, %v2818
        %v2835 = vmul.f32 %v2758, %v2819
        %v2836 = vmul.f32 %v2760, %v2820
        %v2837 = vmul.f32 %v2762, %v2821
        %v2838 = vmul.f32 %v2764, %v2822
        %v2839 = vmul.f32 %v2766, %v2823
        %v2840 = vmul.f32 %v2768, %v2824
        %v2841 = vmul.f32 %v2770, %v2825
        %v2842 = vmul.f32 %v2772, %v2826
        %v2843 = vmul.f32 %v2774, %v2827
        %v2844 = vmul.f32 %v2776, %v2828
        %v2845 = vmul.f32 %v2778, %v2829
        %v2846 = vmul.f32 %v2780, %v2830
        %v2847 = vmul.f32 %v2782, %v2831
        %v2848 = vmul.f32 %v2784, %v2832
        %2849 = vmatprep.subr.mxu0 0.0
        %2850 = vmatpush1.xpose.msra.mxu0 %v2833
        %2851 = vmatprep.subr.mxu0 0.0
        %2852 = vmatpush1.xpose.msra.mxu0 %v2834
        %2853 = vmatprep.subr.mxu0 0.0
        %2854 = vmatpush1.xpose.msra.mxu0 %v2835
        %2855 = vmatprep.subr.mxu0 0.0
        %2856 = vmatpush1.xpose.msra.mxu0 %v2836
        %2857 = vmatprep.subr.mxu0 0.0
        %2858 = vmatpush1.xpose.msra.mxu0 %v2837
        %2859 = vmatprep.subr.mxu0 0.0
        %2860 = vmatpush1.xpose.msra.mxu0 %v2838
        %2861 = vmatprep.subr.mxu0 0.0
        %2862 = vmatpush1.xpose.msra.mxu0 %v2839
        %2863 = vmatprep.subr.mxu0 0.0
        %2864 = vmatpush1.xpose.msra.mxu0 %v2840
        %2865 = vmatprep.subr.mxu0 0.0
        %2866 = vmatpush1.xpose.msra.mxu0 %v2841
        %2867 = vmatprep.subr.mxu0 0.0
        %2868 = vmatpush1.xpose.msra.mxu0 %v2842
        %2869 = vmatprep.subr.mxu0 0.0
        %2870 = vmatpush1.xpose.msra.mxu0 %v2843
        %2871 = vmatprep.subr.mxu0 0.0
        %2872 = vmatpush1.xpose.msra.mxu0 %v2844
        %2873 = vmatprep.subr.mxu0 0.0
        %2874 = vmatpush1.xpose.msra.mxu0 %v2845
        %2875 = vmatprep.subr.mxu0 0.0
        %2876 = vmatpush1.xpose.msra.mxu0 %v2846
        %2877 = vmatprep.subr.mxu0 0.0
        %2878 = vmatpush1.xpose.msra.mxu0 %v2847
        %2879 = vmatprep.subr.mxu0 0.0
        %2880 = vmatpush1.xpose.msra.mxu0 %v2848
        %2881 = vmatprep.subr.mxu0 0.0
        %2882 = vmatpush1.xpose.msra.mxu0 0.0
        %2883 = vmatprep.subr.mxu0 0.0
        %2884 = vmatpush1.xpose.msra.mxu0 0.0
        %2885 = vmatprep.subr.mxu0 0.0
        %2886 = vmatpush1.xpose.msra.mxu0 0.0
        %2887 = vmatprep.subr.mxu0 0.0
        %2888 = vmatpush1.xpose.msra.mxu0 0.0
        %2889 = vmatprep.subr.mxu0 0.0
        %2890 = vmatpush1.xpose.msra.mxu0 0.0
        %2891 = vmatprep.subr.mxu0 0.0
        %2892 = vmatpush1.xpose.msra.mxu0 0.0
        %2893 = vmatprep.subr.mxu0 0.0
        %2894 = vmatpush1.xpose.msra.mxu0 0.0
        %2895 = vmatprep.subr.mxu0 0.0
        %2896 = vmatpush1.xpose.msra.mxu0 0.0
        %2897 = vmatprep.subr.mxu0 0.0
        %2898 = vmatpush1.xpose.msra.mxu0 0.0
        %2899 = vmatprep.subr.mxu0 0.0
        %2900 = vmatpush1.xpose.msra.mxu0 0.0
        %2901 = vmatprep.subr.mxu0 0.0
        %2902 = vmatpush1.xpose.msra.mxu0 0.0
        %2903 = vmatprep.subr.mxu0 0.0
        %2904 = vmatpush1.xpose.msra.mxu0 0.0
        %2905 = vmatprep.subr.mxu0 0.0
        %2906 = vmatpush1.xpose.msra.mxu0 0.0
        %2907 = vmatprep.subr.mxu0 0.0
        %2908 = vmatpush1.xpose.msra.mxu0 0.0
        %2909 = vmatprep.subr.mxu0 0.0
        %2910 = vmatpush1.xpose.msra.mxu0 0.0
        %2911 = vmatprep.subr.mxu0 0.0
        %2912 = vmatpush1.xpose.msra.mxu0 0.0
        %2913 = vmatprep.mubr.f32.mxu0 0.0
        %2914 = vmatmul.mubr.f32.gmra.mrb[0].mxu0 %v1631
        %v2915 = vpop.f32.mrb[0].mxu0
        %v2916 = vadd.f32 0.0, %v2915
        %v2917 = vpop.f32.mrb[0].mxu0
        %2918 = vdwg.mxu0
        %2919 = vrot.lane.b32.xlu0 %v1649, 104
        %v2920 = vpop.permute.xlu0 %2919
        %2921 = vrot.lane.b32.xlu0 %v1650, 104
        %v2922 = vpop.permute.xlu0 %2921
        %2923 = vrot.lane.b32.xlu0 %v1651, 104
        %v2924 = vpop.permute.xlu0 %2923
        %2925 = vrot.lane.b32.xlu0 %v1652, 104
        %v2926 = vpop.permute.xlu0 %2925
        %2927 = vrot.lane.b32.xlu0 %v1653, 104
        %v2928 = vpop.permute.xlu0 %2927
        %2929 = vrot.lane.b32.xlu0 %v1654, 104
        %v2930 = vpop.permute.xlu0 %2929
        %2931 = vrot.lane.b32.xlu0 %v1655, 104
        %v2932 = vpop.permute.xlu0 %2931
        %2933 = vrot.lane.b32.xlu0 %v1656, 104
        %v2934 = vpop.permute.xlu0 %2933
        %2935 = vrot.lane.b32.xlu0 %v1657, 104
        %v2936 = vpop.permute.xlu0 %2935
        %2937 = vrot.lane.b32.xlu0 %v1658, 104
        %v2938 = vpop.permute.xlu0 %2937
        %2939 = vrot.lane.b32.xlu0 %v1659, 104
        %v2940 = vpop.permute.xlu0 %2939
        %2941 = vrot.lane.b32.xlu0 %v1660, 104
        %v2942 = vpop.permute.xlu0 %2941
        %2943 = vrot.lane.b32.xlu0 %v1661, 104
        %v2944 = vpop.permute.xlu0 %2943
        %2945 = vrot.lane.b32.xlu0 %v1662, 104
        %v2946 = vpop.permute.xlu0 %2945
        %2947 = vrot.lane.b32.xlu0 %v1663, 104
        %v2948 = vpop.permute.xlu0 %2947
        %2949 = vrot.lane.b32.xlu0 %v1664, 104
        %v2950 = vpop.permute.xlu0 %2949
        %v2951 = vsel %vm1665, %v2920, 0
        %v2953 = vsel %vm1665, %v2922, 0
        %v2955 = vsel %vm1665, %v2924, 0
        %v2957 = vsel %vm1665, %v2926, 0
        %v2959 = vsel %vm1665, %v2928, 0
        %v2961 = vsel %vm1665, %v2930, 0
        %v2963 = vsel %vm1665, %v2932, 0
        %v2965 = vsel %vm1665, %v2934, 0
        %v2967 = vsel %vm1665, %v2936, 0
        %v2969 = vsel %vm1665, %v2938, 0
        %v2971 = vsel %vm1665, %v2940, 0
        %v2973 = vsel %vm1665, %v2942, 0
        %v2975 = vsel %vm1665, %v2944, 0
        %v2977 = vsel %vm1665, %v2946, 0
        %v2979 = vsel %vm1665, %v2948, 0
        %v2981 = vsel %vm1665, %v2950, 0
        %2983 = vmatprep.subr.mxu0 0.0
        %2984 = vmatpush1.msra.mxu0 %v1319
        %2985 = vmatprep.subr.mxu0 0.0
        %2986 = vmatpush1.msra.mxu0 0.0
        %2987 = vmatprep.subr.mxu0 0.0
        %2988 = vmatpush1.msra.mxu0 0.0
        %2989 = vmatprep.subr.mxu0 0.0
        %2990 = vmatpush1.msra.mxu0 0.0
        %2991 = vmatprep.subr.mxu0 0.0
        %2992 = vmatpush1.msra.mxu0 0.0
        %2993 = vmatprep.subr.mxu0 0.0
        %2994 = vmatpush1.msra.mxu0 0.0
        %2995 = vmatprep.subr.mxu0 0.0
        %2996 = vmatpush1.msra.mxu0 0.0
        %2997 = vmatprep.subr.mxu0 0.0
        %2998 = vmatpush1.msra.mxu0 0.0
        %2999 = vmatprep.subr.mxu0 0.0
        %3000 = vmatpush1.msra.mxu0 0.0
        %3001 = vmatprep.subr.mxu0 0.0
        %3002 = vmatpush1.msra.mxu0 0.0
        %3003 = vmatprep.subr.mxu0 0.0
        %3004 = vmatpush1.msra.mxu0 0.0
        %3005 = vmatprep.subr.mxu0 0.0
        %3006 = vmatpush1.msra.mxu0 0.0
        %3007 = vmatprep.subr.mxu0 0.0
        %3008 = vmatpush1.msra.mxu0 0.0
        %3009 = vmatprep.subr.mxu0 0.0
        %3010 = vmatpush1.msra.mxu0 0.0
        %3011 = vmatprep.subr.mxu0 0.0
        %3012 = vmatpush1.msra.mxu0 0.0
        %3013 = vmatprep.subr.mxu0 0.0
        %3014 = vmatpush1.msra.mxu0 0.0
        %3015 = vmatprep.subr.mxu0 0.0
        %3016 = vmatpush1.msra.mxu0 0.0
        %3017 = vmatprep.subr.mxu0 0.0
        %3018 = vmatpush1.msra.mxu0 0.0
        %3019 = vmatprep.subr.mxu0 0.0
        %3020 = vmatpush1.msra.mxu0 0.0
        %3021 = vmatprep.subr.mxu0 0.0
        %3022 = vmatpush1.msra.mxu0 0.0
        %3023 = vmatprep.subr.mxu0 0.0
        %3024 = vmatpush1.msra.mxu0 0.0
        %3025 = vmatprep.subr.mxu0 0.0
        %3026 = vmatpush1.msra.mxu0 0.0
        %3027 = vmatprep.subr.mxu0 0.0
        %3028 = vmatpush1.msra.mxu0 0.0
        %3029 = vmatprep.subr.mxu0 0.0
        %3030 = vmatpush1.msra.mxu0 0.0
        %3031 = vmatprep.subr.mxu0 0.0
        %3032 = vmatpush1.msra.mxu0 0.0
        %3033 = vmatprep.subr.mxu0 0.0
        %3034 = vmatpush1.msra.mxu0 0.0
        %3035 = vmatprep.subr.mxu0 0.0
        %3036 = vmatpush1.msra.mxu0 0.0
        %3037 = vmatprep.subr.mxu0 0.0
        %3038 = vmatpush1.msra.mxu0 0.0
        %3039 = vmatprep.subr.mxu0 0.0
        %3040 = vmatpush1.msra.mxu0 0.0
        %3041 = vmatprep.subr.mxu0 0.0
        %3042 = vmatpush1.msra.mxu0 0.0
        %3043 = vmatprep.subr.mxu0 0.0
        %3044 = vmatpush1.msra.mxu0 0.0
        %3045 = vmatprep.subr.mxu0 0.0
        %3046 = vmatpush1.msra.mxu0 0.0
        %3047 = vmatprep.mubr.f32.mxu0 0.0
        %3048 = vmatmul.mubr.f32.gmra.mrb[0].mxu0 %v2951
        %v3049 = vpop.f32.mrb[0].mxu0
        %v3050 = vadd.f32 0.0, %v3049
        %v3051 = vpop.f32.mrb[0].mxu0
        %3052 = vmatprep.mubr.f32.mxu0 0.0
        %3053 = vmatmul.mubr.f32.gmra.mrb[0].mxu0 %v2953
        %v3054 = vpop.f32.mrb[0].mxu0
        %v3055 = vadd.f32 0.0, %v3054
        %v3056 = vpop.f32.mrb[0].mxu0
        %3057 = vmatprep.mubr.f32.mxu0 0.0
        %3058 = vmatmul.mubr.f32.gmra.mrb[0].mxu0 %v2955
        %v3059 = vpop.f32.mrb[0].mxu0
        %v3060 = vadd.f32 0.0, %v3059
        %v3061 = vpop.f32.mrb[0].mxu0
        %3062 = vmatprep.mubr.f32.mxu0 0.0
        %3063 = vmatmul.mubr.f32.gmra.mrb[0].mxu0 %v2957
        %v3064 = vpop.f32.mrb[0].mxu0
        %v3065 = vadd.f32 0.0, %v3064
        %v3066 = vpop.f32.mrb[0].mxu0
        %3067 = vmatprep.mubr.f32.mxu0 0.0
        %3068 = vmatmul.mubr.f32.gmra.mrb[0].mxu0 %v2959
        %v3069 = vpop.f32.mrb[0].mxu0
        %v3070 = vadd.f32 0.0, %v3069
        %v3071 = vpop.f32.mrb[0].mxu0
        %3072 = vmatprep.mubr.f32.mxu0 0.0
        %3073 = vmatmul.mubr.f32.gmra.mrb[0].mxu0 %v2961
        %v3074 = vpop.f32.mrb[0].mxu0
        %v3075 = vadd.f32 0.0, %v3074
        %v3076 = vpop.f32.mrb[0].mxu0
        %3077 = vmatprep.mubr.f32.mxu0 0.0
        %3078 = vmatmul.mubr.f32.gmra.mrb[0].mxu0 %v2963
        %v3079 = vpop.f32.mrb[0].mxu0
        %v3080 = vadd.f32 0.0, %v3079
        %v3081 = vpop.f32.mrb[0].mxu0
        %3082 = vmatprep.mubr.f32.mxu0 0.0
        %3083 = vmatmul.mubr.f32.gmra.mrb[0].mxu0 %v2965
        %v3084 = vpop.f32.mrb[0].mxu0
        %v3085 = vadd.f32 0.0, %v3084
        %v3086 = vpop.f32.mrb[0].mxu0
        %3087 = vmatprep.mubr.f32.mxu0 0.0
        %3088 = vmatmul.mubr.f32.gmra.mrb[0].mxu0 %v2967
        %v3089 = vpop.f32.mrb[0].mxu0
        %v3090 = vadd.f32 0.0, %v3089
        %v3091 = vpop.f32.mrb[0].mxu0
        %3092 = vmatprep.mubr.f32.mxu0 0.0
        %3093 = vmatmul.mubr.f32.gmra.mrb[0].mxu0 %v2969
        %v3094 = vpop.f32.mrb[0].mxu0
        %v3095 = vadd.f32 0.0, %v3094
        %v3096 = vpop.f32.mrb[0].mxu0
        %3097 = vmatprep.mubr.f32.mxu0 0.0
        %3098 = vmatmul.mubr.f32.gmra.mrb[0].mxu0 %v2971
        %v3099 = vpop.f32.mrb[0].mxu0
        %v3100 = vadd.f32 0.0, %v3099
        %v3101 = vpop.f32.mrb[0].mxu0
        %3102 = vmatprep.mubr.f32.mxu0 0.0
        %3103 = vmatmul.mubr.f32.gmra.mrb[0].mxu0 %v2973
        %v3104 = vpop.f32.mrb[0].mxu0
        %v3105 = vadd.f32 0.0, %v3104
        %v3106 = vpop.f32.mrb[0].mxu0
        %3107 = vmatprep.mubr.f32.mxu0 0.0
        %3108 = vmatmul.mubr.f32.gmra.mrb[0].mxu0 %v2975
        %v3109 = vpop.f32.mrb[0].mxu0
        %v3110 = vadd.f32 0.0, %v3109
        %v3111 = vpop.f32.mrb[0].mxu0
        %3112 = vmatprep.mubr.f32.mxu0 0.0
        %3113 = vmatmul.mubr.f32.gmra.mrb[0].mxu0 %v2977
        %v3114 = vpop.f32.mrb[0].mxu0
        %v3115 = vadd.f32 0.0, %v3114
        %v3116 = vpop.f32.mrb[0].mxu0
        %3117 = vmatprep.mubr.f32.mxu0 0.0
        %3118 = vmatmul.mubr.f32.gmra.mrb[0].mxu0 %v2979
        %v3119 = vpop.f32.mrb[0].mxu0
        %v3120 = vadd.f32 0.0, %v3119
        %v3121 = vpop.f32.mrb[0].mxu0
        %3122 = vmatprep.mubr.f32.mxu0 0.0
        %3123 = vmatmul.mubr.f32.gmra.mrb[0].mxu0 %v2981
        %v3124 = vpop.f32.mrb[0].mxu0
        %v3125 = vadd.f32 0.0, %v3124
        %v3126 = vpop.f32.mrb[0].mxu0
        %3127 = vdwg.mxu0
        %3128 = vmax.xlane.f32.xlu0 %v3050
        %v3129 = vpop.xlane.xlu0 %3128
        %3130 = vmax.xlane.f32.xlu0 %v3055
        %v3131 = vpop.xlane.xlu0 %3130
        %3132 = vmax.xlane.f32.xlu0 %v3060
        %v3133 = vpop.xlane.xlu0 %3132
        %3134 = vmax.xlane.f32.xlu0 %v3065
        %v3135 = vpop.xlane.xlu0 %3134
        %3136 = vmax.xlane.f32.xlu0 %v3070
        %v3137 = vpop.xlane.xlu0 %3136
        %3138 = vmax.xlane.f32.xlu0 %v3075
        %v3139 = vpop.xlane.xlu0 %3138
        %3140 = vmax.xlane.f32.xlu0 %v3080
        %v3141 = vpop.xlane.xlu0 %3140
        %3142 = vmax.xlane.f32.xlu0 %v3085
        %v3143 = vpop.xlane.xlu0 %3142
        %3144 = vmax.xlane.f32.xlu0 %v3090
        %v3145 = vpop.xlane.xlu0 %3144
        %3146 = vmax.xlane.f32.xlu0 %v3095
        %v3147 = vpop.xlane.xlu0 %3146
        %3148 = vmax.xlane.f32.xlu0 %v3100
        %v3149 = vpop.xlane.xlu0 %3148
        %3150 = vmax.xlane.f32.xlu0 %v3105
        %v3151 = vpop.xlane.xlu0 %3150
        %3152 = vmax.xlane.f32.xlu0 %v3110
        %v3153 = vpop.xlane.xlu0 %3152
        %3154 = vmax.xlane.f32.xlu0 %v3115
        %v3155 = vpop.xlane.xlu0 %3154
        %3156 = vmax.xlane.f32.xlu0 %v3120
        %v3157 = vpop.xlane.xlu0 %3156
        %3158 = vmax.xlane.f32.xlu0 %v3125
        %v3159 = vpop.xlane.xlu0 %3158
        %v3160 = vsub.f32 %v3050, %v3129
        %v3161 = vsub.f32 %v3055, %v3131
        %v3162 = vsub.f32 %v3060, %v3133
        %v3163 = vsub.f32 %v3065, %v3135
        %v3164 = vsub.f32 %v3070, %v3137
        %v3165 = vsub.f32 %v3075, %v3139
        %v3166 = vsub.f32 %v3080, %v3141
        %v3167 = vsub.f32 %v3085, %v3143
        %v3168 = vsub.f32 %v3090, %v3145
        %v3169 = vsub.f32 %v3095, %v3147
        %v3170 = vsub.f32 %v3100, %v3149
        %v3171 = vsub.f32 %v3105, %v3151
        %v3172 = vsub.f32 %v3110, %v3153
        %v3173 = vsub.f32 %v3115, %v3155
        %v3174 = vsub.f32 %v3120, %v3157
        %v3175 = vsub.f32 %v3125, %v3159
        %v3176 = vmul.f32 %v3160, 1.442695
        %v3177 = vpow.pop %v3176
        %v3178 = vmul.f32 %v3161, 1.442695
        %v3179 = vpow.pop %v3178
        %v3180 = vmul.f32 %v3162, 1.442695
        %v3181 = vpow.pop %v3180
        %v3182 = vmul.f32 %v3163, 1.442695
        %v3183 = vpow.pop %v3182
        %v3184 = vmul.f32 %v3164, 1.442695
        %v3185 = vpow.pop %v3184
        %v3186 = vmul.f32 %v3165, 1.442695
        %v3187 = vpow.pop %v3186
        %v3188 = vmul.f32 %v3166, 1.442695
        %v3189 = vpow.pop %v3188
        %v3190 = vmul.f32 %v3167, 1.442695
        %v3191 = vpow.pop %v3190
        %v3192 = vmul.f32 %v3168, 1.442695
        %v3193 = vpow.pop %v3192
        %v3194 = vmul.f32 %v3169, 1.442695
        %v3195 = vpow.pop %v3194
        %v3196 = vmul.f32 %v3170, 1.442695
        %v3197 = vpow.pop %v3196
        %v3198 = vmul.f32 %v3171, 1.442695
        %v3199 = vpow.pop %v3198
        %v3200 = vmul.f32 %v3172, 1.442695
        %v3201 = vpow.pop %v3200
        %v3202 = vmul.f32 %v3173, 1.442695
        %v3203 = vpow.pop %v3202
        %v3204 = vmul.f32 %v3174, 1.442695
        %v3205 = vpow.pop %v3204
        %v3206 = vmul.f32 %v3175, 1.442695
        %v3207 = vpow.pop %v3206
        %3208 = vadd.xlane.f32.xlu0 %v3177
        %v3209 = vpop.xlane.xlu0 %3208
        %3210 = vadd.xlane.f32.xlu0 %v3179
        %v3211 = vpop.xlane.xlu0 %3210
        %3212 = vadd.xlane.f32.xlu0 %v3181
        %v3213 = vpop.xlane.xlu0 %3212
        %3214 = vadd.xlane.f32.xlu0 %v3183
        %v3215 = vpop.xlane.xlu0 %3214
        %3216 = vadd.xlane.f32.xlu0 %v3185
        %v3217 = vpop.xlane.xlu0 %3216
        %3218 = vadd.xlane.f32.xlu0 %v3187
        %v3219 = vpop.xlane.xlu0 %3218
        %3220 = vadd.xlane.f32.xlu0 %v3189
        %v3221 = vpop.xlane.xlu0 %3220
        %3222 = vadd.xlane.f32.xlu0 %v3191
        %v3223 = vpop.xlane.xlu0 %3222
        %3224 = vadd.xlane.f32.xlu0 %v3193
        %v3225 = vpop.xlane.xlu0 %3224
        %3226 = vadd.xlane.f32.xlu0 %v3195
        %v3227 = vpop.xlane.xlu0 %3226
        %3228 = vadd.xlane.f32.xlu0 %v3197
        %v3229 = vpop.xlane.xlu0 %3228
        %3230 = vadd.xlane.f32.xlu0 %v3199
        %v3231 = vpop.xlane.xlu0 %3230
        %3232 = vadd.xlane.f32.xlu0 %v3201
        %v3233 = vpop.xlane.xlu0 %3232
        %3234 = vadd.xlane.f32.xlu0 %v3203
        %v3235 = vpop.xlane.xlu0 %3234
        %3236 = vadd.xlane.f32.xlu0 %v3205
        %v3237 = vpop.xlane.xlu0 %3236
        %3238 = vadd.xlane.f32.xlu0 %v3207
        %v3239 = vpop.xlane.xlu0 %3238
        %v3240 = vrcp.pop %v3209
        %v3241 = vrcp.pop %v3211
        %v3242 = vrcp.pop %v3213
        %v3243 = vrcp.pop %v3215
        %v3244 = vrcp.pop %v3217
        %v3245 = vrcp.pop %v3219
        %v3246 = vrcp.pop %v3221
        %v3247 = vrcp.pop %v3223
        %v3248 = vrcp.pop %v3225
        %v3249 = vrcp.pop %v3227
        %v3250 = vrcp.pop %v3229
        %v3251 = vrcp.pop %v3231
        %v3252 = vrcp.pop %v3233
        %v3253 = vrcp.pop %v3235
        %v3254 = vrcp.pop %v3237
        %v3255 = vrcp.pop %v3239
        %v3256 = vmul.f32 %v3177, %v3240
        %v3257 = vmul.f32 %v3179, %v3241
        %v3258 = vmul.f32 %v3181, %v3242
        %v3259 = vmul.f32 %v3183, %v3243
        %v3260 = vmul.f32 %v3185, %v3244
        %v3261 = vmul.f32 %v3187, %v3245
        %v3262 = vmul.f32 %v3189, %v3246
        %v3263 = vmul.f32 %v3191, %v3247
        %v3264 = vmul.f32 %v3193, %v3248
        %v3265 = vmul.f32 %v3195, %v3249
        %v3266 = vmul.f32 %v3197, %v3250
        %v3267 = vmul.f32 %v3199, %v3251
        %v3268 = vmul.f32 %v3201, %v3252
        %v3269 = vmul.f32 %v3203, %v3253
        %v3270 = vmul.f32 %v3205, %v3254
        %v3271 = vmul.f32 %v3207, %v3255
        %3272 = vmatprep.subr.mxu0 0.0
        %3273 = vmatpush1.xpose.msra.mxu0 %v3256
        %3274 = vmatprep.subr.mxu0 0.0
        %3275 = vmatpush1.xpose.msra.mxu0 %v3257
        %3276 = vmatprep.subr.mxu0 0.0
        %3277 = vmatpush1.xpose.msra.mxu0 %v3258
        %3278 = vmatprep.subr.mxu0 0.0
        %3279 = vmatpush1.xpose.msra.mxu0 %v3259
        %3280 = vmatprep.subr.mxu0 0.0
        %3281 = vmatpush1.xpose.msra.mxu0 %v3260
        %3282 = vmatprep.subr.mxu0 0.0
        %3283 = vmatpush1.xpose.msra.mxu0 %v3261
        %3284 = vmatprep.subr.mxu0 0.0
        %3285 = vmatpush1.xpose.msra.mxu0 %v3262
        %3286 = vmatprep.subr.mxu0 0.0
        %3287 = vmatpush1.xpose.msra.mxu0 %v3263
        %3288 = vmatprep.subr.mxu0 0.0
        %3289 = vmatpush1.xpose.msra.mxu0 %v3264
        %3290 = vmatprep.subr.mxu0 0.0
        %3291 = vmatpush1.xpose.msra.mxu0 %v3265
        %3292 = vmatprep.subr.mxu0 0.0
        %3293 = vmatpush1.xpose.msra.mxu0 %v3266
        %3294 = vmatprep.subr.mxu0 0.0
        %3295 = vmatpush1.xpose.msra.mxu0 %v3267
        %3296 = vmatprep.subr.mxu0 0.0
        %3297 = vmatpush1.xpose.msra.mxu0 %v3268
        %3298 = vmatprep.subr.mxu0 0.0
        %3299 = vmatpush1.xpose.msra.mxu0 %v3269
        %3300 = vmatprep.subr.mxu0 0.0
        %3301 = vmatpush1.xpose.msra.mxu0 %v3270
        %3302 = vmatprep.subr.mxu0 0.0
        %3303 = vmatpush1.xpose.msra.mxu0 %v3271
        %3304 = vmatprep.subr.mxu0 0.0
        %3305 = vmatpush1.xpose.msra.mxu0 0.0
        %3306 = vmatprep.subr.mxu0 0.0
        %3307 = vmatpush1.xpose.msra.mxu0 0.0
        %3308 = vmatprep.subr.mxu0 0.0
        %3309 = vmatpush1.xpose.msra.mxu0 0.0
        %3310 = vmatprep.subr.mxu0 0.0
        %3311 = vmatpush1.xpose.msra.mxu0 0.0
        %3312 = vmatprep.subr.mxu0 0.0
        %3313 = vmatpush1.xpose.msra.mxu0 0.0
        %3314 = vmatprep.subr.mxu0 0.0
        %3315 = vmatpush1.xpose.msra.mxu0 0.0
        %3316 = vmatprep.subr.mxu0 0.0
        %3317 = vmatpush1.xpose.msra.mxu0 0.0
        %3318 = vmatprep.subr.mxu0 0.0
        %3319 = vmatpush1.xpose.msra.mxu0 0.0
        %3320 = vmatprep.subr.mxu0 0.0
        %3321 = vmatpush1.xpose.msra.mxu0 0.0
        %3322 = vmatprep.subr.mxu0 0.0
        %3323 = vmatpush1.xpose.msra.mxu0 0.0
        %3324 = vmatprep.subr.mxu0 0.0
        %3325 = vmatpush1.xpose.msra.mxu0 0.0
        %3326 = vmatprep.subr.mxu0 0.0
        %3327 = vmatpush1.xpose.msra.mxu0 0.0
        %3328 = vmatprep.subr.mxu0 0.0
        %3329 = vmatpush1.xpose.msra.mxu0 0.0
        %3330 = vmatprep.subr.mxu0 0.0
        %3331 = vmatpush1.xpose.msra.mxu0 0.0
        %3332 = vmatprep.subr.mxu0 0.0
        %3333 = vmatpush1.xpose.msra.mxu0 0.0
        %3334 = vmatprep.subr.mxu0 0.0
        %3335 = vmatpush1.xpose.msra.mxu0 0.0
        %3336 = vmatprep.mubr.f32.mxu0 0.0
        %3337 = vmatmul.mubr.f32.gmra.mrb[0].mxu0 %v1632
        %v3338 = vpop.f32.mrb[0].mxu0
        %v3339 = vadd.f32 0.0, %v3338
        %v3340 = vpop.f32.mrb[0].mxu0
        %3341 = vdwg.mxu0
        %v3342 = vld [vmem:[%s9] sm:$0xff]
        %v3343 = vld [vmem:[%s9 + $0x8] sm:$0xff]
        %v3344 = vld [vmem:[%s9 + $0x10] sm:$0xff]
        %v3345 = vld [vmem:[%s9 + $0x18] sm:$0xff]
        %v3346 = vld [vmem:[%s10] sm:$0xff]
        %v3347 = vld [vmem:[%s10 + $0x8] sm:$0xff]
        %v3348 = vld [vmem:[%s10 + $0x10] sm:$0xff]
        %v3349 = vld [vmem:[%s10 + $0x18] sm:$0xff]
        %3351 = vset.pattern.permute.xlu0 0
        %3352 = vperm.xlu0 %3351, %v3346
        %v3353 = vpop.permute.xlu0 %3352
        %3356 = vset.pattern.permute.xlu0 0
        %3357 = vperm.xlu0 %3356, %v3347
        %v3358 = vpop.permute.xlu0 %3357
        %3361 = vset.pattern.permute.xlu0 0
        %3362 = vperm.xlu0 %3361, %v3348
        %v3363 = vpop.permute.xlu0 %3362
        %3366 = vset.pattern.permute.xlu0 0
        %3367 = vperm.xlu0 %3366, %v3349
        %v3368 = vpop.permute.xlu0 %3367
        %v3371 = vsel %vm913, %v3342, 0
        %v3374 = vsel %vm913, %v3343, 0
        %v3377 = vsel %vm913, %v3344, 0
        %v3380 = vsel %vm913, %v3345, 0
        %3382 = vmatprep.subr.mxu0 0.0
        %3383 = vmatpush1.msra.mxu0 %v2070
        %3384 = vmatprep.subr.mxu0 0.0
        %3385 = vmatpush1.msra.mxu0 %v2493
        %3386 = vmatprep.subr.mxu0 0.0
        %3387 = vmatpush1.msra.mxu0 %v2916
        %3388 = vmatprep.subr.mxu0 0.0
        %3389 = vmatpush1.msra.mxu0 %v3339
        %3390 = vmatprep.subr.mxu0 0.0
        %3391 = vmatpush1.msra.mxu0 0.0
        %3392 = vmatprep.subr.mxu0 0.0
        %3393 = vmatpush1.msra.mxu0 0.0
        %3394 = vmatprep.subr.mxu0 0.0
        %3395 = vmatpush1.msra.mxu0 0.0
        %3396 = vmatprep.subr.mxu0 0.0
        %3397 = vmatpush1.msra.mxu0 0.0
        %3398 = vmatprep.subr.mxu0 0.0
        %3399 = vmatpush1.msra.mxu0 0.0
        %3400 = vmatprep.subr.mxu0 0.0
        %3401 = vmatpush1.msra.mxu0 0.0
        %3402 = vmatprep.subr.mxu0 0.0
        %3403 = vmatpush1.msra.mxu0 0.0
        %3404 = vmatprep.subr.mxu0 0.0
        %3405 = vmatpush1.msra.mxu0 0.0
        %3406 = vmatprep.subr.mxu0 0.0
        %3407 = vmatpush1.msra.mxu0 0.0
        %3408 = vmatprep.subr.mxu0 0.0
        %3409 = vmatpush1.msra.mxu0 0.0
        %3410 = vmatprep.subr.mxu0 0.0
        %3411 = vmatpush1.msra.mxu0 0.0
        %3412 = vmatprep.subr.mxu0 0.0
        %3413 = vmatpush1.msra.mxu0 0.0
        %3414 = vmatprep.subr.mxu0 0.0
        %3415 = vmatpush1.msra.mxu0 0.0
        %3416 = vmatprep.subr.mxu0 0.0
        %3417 = vmatpush1.msra.mxu0 0.0
        %3418 = vmatprep.subr.mxu0 0.0
        %3419 = vmatpush1.msra.mxu0 0.0
        %3420 = vmatprep.subr.mxu0 0.0
        %3421 = vmatpush1.msra.mxu0 0.0
        %3422 = vmatprep.subr.mxu0 0.0
        %3423 = vmatpush1.msra.mxu0 0.0
        %3424 = vmatprep.subr.mxu0 0.0
        %3425 = vmatpush1.msra.mxu0 0.0
        %3426 = vmatprep.subr.mxu0 0.0
        %3427 = vmatpush1.msra.mxu0 0.0
        %3428 = vmatprep.subr.mxu0 0.0
        %3429 = vmatpush1.msra.mxu0 0.0
        %3430 = vmatprep.subr.mxu0 0.0
        %3431 = vmatpush1.msra.mxu0 0.0
        %3432 = vmatprep.subr.mxu0 0.0
        %3433 = vmatpush1.msra.mxu0 0.0
        %3434 = vmatprep.subr.mxu0 0.0
        %3435 = vmatpush1.msra.mxu0 0.0
        %3436 = vmatprep.subr.mxu0 0.0
        %3437 = vmatpush1.msra.mxu0 0.0
        %3438 = vmatprep.subr.mxu0 0.0
        %3439 = vmatpush1.msra.mxu0 0.0
        %3440 = vmatprep.subr.mxu0 0.0
        %3441 = vmatpush1.msra.mxu0 0.0
        %3442 = vmatprep.subr.mxu0 0.0
        %3443 = vmatpush1.msra.mxu0 0.0
        %3444 = vmatprep.subr.mxu0 0.0
        %3445 = vmatpush1.msra.mxu0 0.0
        %3446 = vmatprep.mubr.f32.mxu0 0.0
        %3447 = vmatmul.mubr.f32.gmra.mrb[0].mxu0 %v3371
        %v3448 = vpop.f32.mrb[0].mxu0
        %v3449 = vadd.f32 %v3353, %v3448
        %v3450 = vpop.f32.mrb[0].mxu0
        %3451 = vmatprep.mubr.f32.mxu0 0.0
        %3452 = vmatmul.mubr.f32.gmra.mrb[0].mxu0 %v3374
        %v3453 = vpop.f32.mrb[0].mxu0
        %v3454 = vadd.f32 %v3358, %v3453
        %v3455 = vpop.f32.mrb[0].mxu0
        %3456 = vmatprep.mubr.f32.mxu0 0.0
        %3457 = vmatmul.mubr.f32.gmra.mrb[0].mxu0 %v3377
        %v3458 = vpop.f32.mrb[0].mxu0
        %v3459 = vadd.f32 %v3363, %v3458
        %v3460 = vpop.f32.mrb[0].mxu0
        %3461 = vmatprep.mubr.f32.mxu0 0.0
        %3462 = vmatmul.mubr.f32.gmra.mrb[0].mxu0 %v3380
        %v3463 = vpop.f32.mrb[0].mxu0
        %v3464 = vadd.f32 %v3368, %v3463
        %v3465 = vpop.f32.mrb[0].mxu0
        %3466 = vdwg.mxu0
        %v3467 = vmul.f32 %v3449, %v782
        %v3468 = vmul.f32 %v3454, %v782
        %v3469 = vmul.f32 %v3459, %v782
        %v3470 = vmul.f32 %v3464, %v782
        %v3471 = vmul.f32 %v561, %v782
        %v3472 = vmul.f32 %v562, %v782
        %v3473 = vmul.f32 %v563, %v782
        %v3474 = vmul.f32 %v564, %v782
        %v3475 = vadd.f32 %v3471, %v3467
        %v3476 = vadd.f32 %v3472, %v3468
        %v3477 = vadd.f32 %v3473, %v3469
        %v3478 = vadd.f32 %v3474, %v3470
        %v3479 = vld [vmem:[%s11] sm:$0xff]
        %v3480 = vld [vmem:[%s11 + $0x8] sm:$0xff]
        %v3481 = vld [vmem:[%s11 + $0x10] sm:$0xff]
        %v3482 = vld [vmem:[%s11 + $0x18] sm:$0xff]
        %v3483 = vld [vmem:[%s12] sm:$0xff]
        %v3484 = vld [vmem:[%s12 + $0x8] sm:$0xff]
        %v3485 = vld [vmem:[%s12 + $0x10] sm:$0xff]
        %v3486 = vld [vmem:[%s12 + $0x18] sm:$0xff]
        %v3487 = vadd.f32 %v3475, %v3476
        %v3488 = vadd.f32 %v3487, %v3477
        %v3489 = vadd.f32 %v3488, %v3478
        %v3490 = vrot.slane %v3489, 4
        %v3491 = vadd.f32 %v3489, %v3490
        %v3492 = vrot.slane %v3491, 2
        %v3493 = vadd.f32 %v3491, %v3492
        %v3494 = vrot.slane %v3493, 1
        %v3495 = vadd.f32 %v3493, %v3494
        %v3496 = vmul.f32 %v3495, %v583
        %v3497 = vsub.f32 %v3475, %v3496
        %v3498 = vsub.f32 %v3476, %v3496
        %v3499 = vsub.f32 %v3477, %v3496
        %v3500 = vsub.f32 %v3478, %v3496
        %v3501 = vmul.f32 %v3497, %v3497
        %v3502 = vmul.f32 %v3498, %v3498
        %v3503 = vmul.f32 %v3499, %v3499
        %v3504 = vmul.f32 %v3500, %v3500
        %v3505 = vadd.f32 %v3501, %v3502
        %v3506 = vadd.f32 %v3505, %v3503
        %v3507 = vadd.f32 %v3506, %v3504
        %v3508 = vrot.slane %v3507, 4
        %v3509 = vadd.f32 %v3507, %v3508
        %v3510 = vrot.slane %v3509, 2
        %v3511 = vadd.f32 %v3509, %v3510
        %v3512 = vrot.slane %v3511, 1
        %v3513 = vadd.f32 %v3511, %v3512
        %v3514 = vmul.f32 %v3513, %v583
        %v3515 = vadd.f32 %v3514, 1e-05
        %v3516 = vrsqrt.pop %v3515
        %v3517 = vmul.f32 %v3515, %v3516
        %vm3518 = vcmp.eq.f32.partialorder %v3515, inf
        %v3519 = vsel %vm3518, %v3515, %v3517
        %vm3520 = vcmp.eq.f32.partialorder %v3515, 0.0
        %v3521 = vand.u32 %v3515, 2147483648
        %v3522 = vsel %vm3520, %v3521, %v3519
        %v3523 = vrcp.pop %v3522
        %v3524 = vmul.f32 %v3497, %v3523
        %v3525 = vmul.f32 %v3498, %v3523
        %v3526 = vmul.f32 %v3499, %v3523
        %v3527 = vmul.f32 %v3500, %v3523
        %3529 = vset.pattern.permute.xlu0 0
        %3530 = vperm.xlu0 %3529, %v3479
        %v3531 = vpop.permute.xlu0 %3530
        %3534 = vset.pattern.permute.xlu0 0
        %3535 = vperm.xlu0 %3534, %v3480
        %v3536 = vpop.permute.xlu0 %3535
        %3539 = vset.pattern.permute.xlu0 0
        %3540 = vperm.xlu0 %3539, %v3481
        %v3541 = vpop.permute.xlu0 %3540
        %3544 = vset.pattern.permute.xlu0 0
        %3545 = vperm.xlu0 %3544, %v3482
        %v3546 = vpop.permute.xlu0 %3545
        %v3548 = vmul.f32 %v3524, %v3531
        %v3549 = vmul.f32 %v3525, %v3536
        %v3550 = vmul.f32 %v3526, %v3541
        %v3551 = vmul.f32 %v3527, %v3546
        %3553 = vset.pattern.permute.xlu0 0
        %3554 = vperm.xlu0 %3553, %v3483
        %v3555 = vpop.permute.xlu0 %3554
        %3558 = vset.pattern.permute.xlu0 0
        %3559 = vperm.xlu0 %3558, %v3484
        %v3560 = vpop.permute.xlu0 %3559
        %3563 = vset.pattern.permute.xlu0 0
        %3564 = vperm.xlu0 %3563, %v3485
        %v3565 = vpop.permute.xlu0 %3564
        %3568 = vset.pattern.permute.xlu0 0
        %3569 = vperm.xlu0 %3568, %v3486
        %v3570 = vpop.permute.xlu0 %3569
        %v3572 = vadd.f32 %v3548, %v3555
        %v3573 = vadd.f32 %v3549, %v3560
        %v3574 = vadd.f32 %v3550, %v3565
        %v3575 = vadd.f32 %v3551, %v3570
        %v3576 = vld [vmem:[%s13] sm:$0xff]
        %v3577 = vld [vmem:[%s13 + $0x8] sm:$0xff]
        %v3578 = vld [vmem:[%s13 + $0x10] sm:$0xff]
        %v3579 = vld [vmem:[%s13 + $0x18] sm:$0xff]
        %v3580 = vld [vmem:[%s13 + $0x20] sm:$0xff]
        %v3581 = vld [vmem:[%s13 + $0x28] sm:$0xff]
        %v3582 = vld [vmem:[%s13 + $0x30] sm:$0xff]
        %v3583 = vld [vmem:[%s13 + $0x38] sm:$0xff]
        %v3584 = vld [vmem:[%s13 + $0x40] sm:$0xff]
        %v3585 = vld [vmem:[%s13 + $0x48] sm:$0xff]
        %v3586 = vld [vmem:[%s13 + $0x50] sm:$0xff]
        %v3587 = vld [vmem:[%s13 + $0x58] sm:$0xff]
        %v3588 = vld [vmem:[%s13 + $0x60] sm:$0xff]
        %v3589 = vld [vmem:[%s13 + $0x68] sm:$0xff]
        %v3590 = vld [vmem:[%s13 + $0x70] sm:$0xff]
        %v3591 = vld [vmem:[%s13 + $0x78] sm:$0xff]
        %v3592 = vld [vmem:[%s14] sm:$0xff]
        %v3593 = vld [vmem:[%s14 + $0x8] sm:$0xff]
        %v3594 = vld [vmem:[%s14 + $0x10] sm:$0xff]
        %v3595 = vld [vmem:[%s14 + $0x18] sm:$0xff]
        %v3596 = vld [vmem:[%s14 + $0x20] sm:$0xff]
        %v3597 = vld [vmem:[%s14 + $0x28] sm:$0xff]
        %v3598 = vld [vmem:[%s14 + $0x30] sm:$0xff]
        %v3599 = vld [vmem:[%s14 + $0x38] sm:$0xff]
        %v3600 = vld [vmem:[%s14 + $0x40] sm:$0xff]
        %v3601 = vld [vmem:[%s14 + $0x48] sm:$0xff]
        %v3602 = vld [vmem:[%s14 + $0x50] sm:$0xff]
        %v3603 = vld [vmem:[%s14 + $0x58] sm:$0xff]
        %v3604 = vld [vmem:[%s14 + $0x60] sm:$0xff]
        %v3605 = vld [vmem:[%s14 + $0x68] sm:$0xff]
        %v3606 = vld [vmem:[%s14 + $0x70] sm:$0xff]
        %v3607 = vld [vmem:[%s14 + $0x78] sm:$0xff]
        %3609 = vset.pattern.permute.xlu0 0
        %3610 = vperm.xlu0 %3609, %v3592
        %v3611 = vpop.permute.xlu0 %3610
        %3614 = vset.pattern.permute.xlu0 0
        %3615 = vperm.xlu0 %3614, %v3593
        %v3616 = vpop.permute.xlu0 %3615
        %3619 = vset.pattern.permute.xlu0 0
        %3620 = vperm.xlu0 %3619, %v3594
        %v3621 = vpop.permute.xlu0 %3620
        %3624 = vset.pattern.permute.xlu0 0
        %3625 = vperm.xlu0 %3624, %v3595
        %v3626 = vpop.permute.xlu0 %3625
        %3629 = vset.pattern.permute.xlu0 0
        %3630 = vperm.xlu0 %3629, %v3596
        %v3631 = vpop.permute.xlu0 %3630
        %3634 = vset.pattern.permute.xlu0 0
        %3635 = vperm.xlu0 %3634, %v3597
        %v3636 = vpop.permute.xlu0 %3635
        %3639 = vset.pattern.permute.xlu0 0
        %3640 = vperm.xlu0 %3639, %v3598
        %v3641 = vpop.permute.xlu0 %3640
        %3644 = vset.pattern.permute.xlu0 0
        %3645 = vperm.xlu0 %3644, %v3599
        %v3646 = vpop.permute.xlu0 %3645
        %3649 = vset.pattern.permute.xlu0 0
        %3650 = vperm.xlu0 %3649, %v3600
        %v3651 = vpop.permute.xlu0 %3650
        %3654 = vset.pattern.permute.xlu0 0
        %3655 = vperm.xlu0 %3654, %v3601
        %v3656 = vpop.permute.xlu0 %3655
        %3659 = vset.pattern.permute.xlu0 0
        %3660 = vperm.xlu0 %3659, %v3602
        %v3661 = vpop.permute.xlu0 %3660
        %3664 = vset.pattern.permute.xlu0 0
        %3665 = vperm.xlu0 %3664, %v3603
        %v3666 = vpop.permute.xlu0 %3665
        %3669 = vset.pattern.permute.xlu0 0
        %3670 = vperm.xlu0 %3669, %v3604
        %v3671 = vpop.permute.xlu0 %3670
        %3674 = vset.pattern.permute.xlu0 0
        %3675 = vperm.xlu0 %3674, %v3605
        %v3676 = vpop.permute.xlu0 %3675
        %3679 = vset.pattern.permute.xlu0 0
        %3680 = vperm.xlu0 %3679, %v3606
        %v3681 = vpop.permute.xlu0 %3680
        %3684 = vset.pattern.permute.xlu0 0
        %3685 = vperm.xlu0 %3684, %v3607
        %v3686 = vpop.permute.xlu0 %3685
        %v3689 = vsel %vm913, %v3576, 0
        %v3692 = vsel %vm913, %v3577, 0
        %v3695 = vsel %vm913, %v3578, 0
        %v3698 = vsel %vm913, %v3579, 0
        %v3701 = vsel %vm913, %v3580, 0
        %v3704 = vsel %vm913, %v3581, 0
        %v3707 = vsel %vm913, %v3582, 0
        %v3710 = vsel %vm913, %v3583, 0
        %v3713 = vsel %vm913, %v3584, 0
        %v3716 = vsel %vm913, %v3585, 0
        %v3719 = vsel %vm913, %v3586, 0
        %v3722 = vsel %vm913, %v3587, 0
        %v3725 = vsel %vm913, %v3588, 0
        %v3728 = vsel %vm913, %v3589, 0
        %v3731 = vsel %vm913, %v3590, 0
        %v3734 = vsel %vm913, %v3591, 0
        %3736 = vmatprep.subr.mxu0 0.0
        %3737 = vmatpush1.msra.mxu0 %v3572
        %3738 = vmatprep.subr.mxu0 0.0
        %3739 = vmatpush1.msra.mxu0 %v3573
        %3740 = vmatprep.subr.mxu0 0.0
        %3741 = vmatpush1.msra.mxu0 %v3574
        %3742 = vmatprep.subr.mxu0 0.0
        %3743 = vmatpush1.msra.mxu0 %v3575
        %3744 = vmatprep.subr.mxu0 0.0
        %3745 = vmatpush1.msra.mxu0 0.0
        %3746 = vmatprep.subr.mxu0 0.0
        %3747 = vmatpush1.msra.mxu0 0.0
        %3748 = vmatprep.subr.mxu0 0.0
        %3749 = vmatpush1.msra.mxu0 0.0
        %3750 = vmatprep.subr.mxu0 0.0
        %3751 = vmatpush1.msra.mxu0 0.0
        %3752 = vmatprep.subr.mxu0 0.0
        %3753 = vmatpush1.msra.mxu0 0.0
        %3754 = vmatprep.subr.mxu0 0.0
        %3755 = vmatpush1.msra.mxu0 0.0
        %3756 = vmatprep.subr.mxu0 0.0
        %3757 = vmatpush1.msra.mxu0 0.0
        %3758 = vmatprep.subr.mxu0 0.0
        %3759 = vmatpush1.msra.mxu0 0.0
        %3760 = vmatprep.subr.mxu0 0.0
        %3761 = vmatpush1.msra.mxu0 0.0
        %3762 = vmatprep.subr.mxu0 0.0
        %3763 = vmatpush1.msra.mxu0 0.0
        %3764 = vmatprep.subr.mxu0 0.0
        %3765 = vmatpush1.msra.mxu0 0.0
        %3766 = vmatprep.subr.mxu0 0.0
        %3767 = vmatpush1.msra.mxu0 0.0
        %3768 = vmatprep.subr.mxu0 0.0
        %3769 = vmatpush1.msra.mxu0 0.0
        %3770 = vmatprep.subr.mxu0 0.0
        %3771 = vmatpush1.msra.mxu0 0.0
        %3772 = vmatprep.subr.mxu0 0.0
        %3773 = vmatpush1.msra.mxu0 0.0
        %3774 = vmatprep.subr.mxu0 0.0
        %3775 = vmatpush1.msra.mxu0 0.0
        %3776 = vmatprep.subr.mxu0 0.0
        %3777 = vmatpush1.msra.mxu0 0.0
        %3778 = vmatprep.subr.mxu0 0.0
        %3779 = vmatpush1.msra.mxu0 0.0
        %3780 = vmatprep.subr.mxu0 0.0
        %3781 = vmatpush1.msra.mxu0 0.0
        %3782 = vmatprep.subr.mxu0 0.0
        %3783 = vmatpush1.msra.mxu0 0.0
        %3784 = vmatprep.subr.mxu0 0.0
        %3785 = vmatpush1.msra.mxu0 0.0
        %3786 = vmatprep.subr.mxu0 0.0
        %3787 = vmatpush1.msra.mxu0 0.0
        %3788 = vmatprep.subr.mxu0 0.0
        %3789 = vmatpush1.msra.mxu0 0.0
        %3790 = vmatprep.subr.mxu0 0.0
        %3791 = vmatpush1.msra.mxu0 0.0
        %3792 = vmatprep.subr.mxu0 0.0
        %3793 = vmatpush1.msra.mxu0 0.0
        %3794 = vmatprep.subr.mxu0 0.0
        %3795 = vmatpush1.msra.mxu0 0.0
        %3796 = vmatprep.subr.mxu0 0.0
        %3797 = vmatpush1.msra.mxu0 0.0
        %3798 = vmatprep.subr.mxu0 0.0
        %3799 = vmatpush1.msra.mxu0 0.0
        %3800 = vmatprep.mubr.f32.mxu0 0.0
        %3801 = vmatmul.mubr.f32.gmra.mrb[0].mxu0 %v3689
        %v3802 = vpop.f32.mrb[0].mxu0
        %v3803 = vadd.f32 %v3611, %v3802
        %v3804 = vpop.f32.mrb[0].mxu0
        %3805 = vmatprep.mubr.f32.mxu0 0.0
        %3806 = vmatmul.mubr.f32.gmra.mrb[0].mxu0 %v3692
        %v3807 = vpop.f32.mrb[0].mxu0
        %v3808 = vadd.f32 %v3616, %v3807
        %v3809 = vpop.f32.mrb[0].mxu0
        %3810 = vmatprep.mubr.f32.mxu0 0.0
        %3811 = vmatmul.mubr.f32.gmra.mrb[0].mxu0 %v3695
        %v3812 = vpop.f32.mrb[0].mxu0
        %v3813 = vadd.f32 %v3621, %v3812
        %v3814 = vpop.f32.mrb[0].mxu0
        %3815 = vmatprep.mubr.f32.mxu0 0.0
        %3816 = vmatmul.mubr.f32.gmra.mrb[0].mxu0 %v3698
        %v3817 = vpop.f32.mrb[0].mxu0
        %v3818 = vadd.f32 %v3626, %v3817
        %v3819 = vpop.f32.mrb[0].mxu0
        %3820 = vmatprep.mubr.f32.mxu0 0.0
        %3821 = vmatmul.mubr.f32.gmra.mrb[0].mxu0 %v3701
        %v3822 = vpop.f32.mrb[0].mxu0
        %v3823 = vadd.f32 %v3631, %v3822
        %v3824 = vpop.f32.mrb[0].mxu0
        %3825 = vmatprep.mubr.f32.mxu0 0.0
        %3826 = vmatmul.mubr.f32.gmra.mrb[0].mxu0 %v3704
        %v3827 = vpop.f32.mrb[0].mxu0
        %v3828 = vadd.f32 %v3636, %v3827
        %v3829 = vpop.f32.mrb[0].mxu0
        %3830 = vmatprep.mubr.f32.mxu0 0.0
        %3831 = vmatmul.mubr.f32.gmra.mrb[0].mxu0 %v3707
        %v3832 = vpop.f32.mrb[0].mxu0
        %v3833 = vadd.f32 %v3641, %v3832
        %v3834 = vpop.f32.mrb[0].mxu0
        %3835 = vmatprep.mubr.f32.mxu0 0.0
        %3836 = vmatmul.mubr.f32.gmra.mrb[0].mxu0 %v3710
        %v3837 = vpop.f32.mrb[0].mxu0
        %v3838 = vadd.f32 %v3646, %v3837
        %v3839 = vpop.f32.mrb[0].mxu0
        %3840 = vmatprep.mubr.f32.mxu0 0.0
        %3841 = vmatmul.mubr.f32.gmra.mrb[0].mxu0 %v3713
        %v3842 = vpop.f32.mrb[0].mxu0
        %v3843 = vadd.f32 %v3651, %v3842
        %v3844 = vpop.f32.mrb[0].mxu0
        %3845 = vmatprep.mubr.f32.mxu0 0.0
        %3846 = vmatmul.mubr.f32.gmra.mrb[0].mxu0 %v3716
        %v3847 = vpop.f32.mrb[0].mxu0
        %v3848 = vadd.f32 %v3656, %v3847
        %v3849 = vpop.f32.mrb[0].mxu0
        %3850 = vmatprep.mubr.f32.mxu0 0.0
        %3851 = vmatmul.mubr.f32.gmra.mrb[0].mxu0 %v3719
        %v3852 = vpop.f32.mrb[0].mxu0
        %v3853 = vadd.f32 %v3661, %v3852
        %v3854 = vpop.f32.mrb[0].mxu0
        %3855 = vmatprep.mubr.f32.mxu0 0.0
        %3856 = vmatmul.mubr.f32.gmra.mrb[0].mxu0 %v3722
        %v3857 = vpop.f32.mrb[0].mxu0
        %v3858 = vadd.f32 %v3666, %v3857
        %v3859 = vpop.f32.mrb[0].mxu0
        %3860 = vmatprep.mubr.f32.mxu0 0.0
        %3861 = vmatmul.mubr.f32.gmra.mrb[0].mxu0 %v3725
        %v3862 = vpop.f32.mrb[0].mxu0
        %v3863 = vadd.f32 %v3671, %v3862
        %v3864 = vpop.f32.mrb[0].mxu0
        %3865 = vmatprep.mubr.f32.mxu0 0.0
        %3866 = vmatmul.mubr.f32.gmra.mrb[0].mxu0 %v3728
        %v3867 = vpop.f32.mrb[0].mxu0
        %v3868 = vadd.f32 %v3676, %v3867
        %v3869 = vpop.f32.mrb[0].mxu0
        %3870 = vmatprep.mubr.f32.mxu0 0.0
        %3871 = vmatmul.mubr.f32.gmra.mrb[0].mxu0 %v3731
        %v3872 = vpop.f32.mrb[0].mxu0
        %v3873 = vadd.f32 %v3681, %v3872
        %v3874 = vpop.f32.mrb[0].mxu0
        %3875 = vmatprep.mubr.f32.mxu0 0.0
        %3876 = vmatmul.mubr.f32.gmra.mrb[0].mxu0 %v3734
        %v3877 = vpop.f32.mrb[0].mxu0
        %v3878 = vadd.f32 %v3686, %v3877
        %v3879 = vpop.f32.mrb[0].mxu0
        %3880 = vdwg.mxu0
        %v3881 = vmul.f32 %v3803, 0.5
        %v3882 = vmul.f32 %v3808, 0.5
        %v3883 = vmul.f32 %v3813, 0.5
        %v3884 = vmul.f32 %v3818, 0.5
        %v3885 = vmul.f32 %v3823, 0.5
        %v3886 = vmul.f32 %v3828, 0.5
        %v3887 = vmul.f32 %v3833, 0.5
        %v3888 = vmul.f32 %v3838, 0.5
        %v3889 = vmul.f32 %v3843, 0.5
        %v3890 = vmul.f32 %v3848, 0.5
        %v3891 = vmul.f32 %v3853, 0.5
        %v3892 = vmul.f32 %v3858, 0.5
        %v3893 = vmul.f32 %v3863, 0.5
        %v3894 = vmul.f32 %v3868, 0.5
        %v3895 = vmul.f32 %v3873, 0.5
        %v3896 = vmul.f32 %v3878, 0.5
        %v3897 = vmul.f32 %v3803, 0.70710677
        %v3898 = vmul.f32 %v3808, 0.70710677
        %v3899 = vmul.f32 %v3813, 0.70710677
        %v3900 = vmul.f32 %v3818, 0.70710677
        %v3901 = vmul.f32 %v3823, 0.70710677
        %v3902 = vmul.f32 %v3828, 0.70710677
        %v3903 = vmul.f32 %v3833, 0.70710677
        %v3904 = vmul.f32 %v3838, 0.70710677
        %v3905 = vmul.f32 %v3843, 0.70710677
        %v3906 = vmul.f32 %v3848, 0.70710677
        %v3907 = vmul.f32 %v3853, 0.70710677
        %v3908 = vmul.f32 %v3858, 0.70710677
        %v3909 = vmul.f32 %v3863, 0.70710677
        %v3910 = vmul.f32 %v3868, 0.70710677
        %v3911 = vmul.f32 %v3873, 0.70710677
        %v3912 = vmul.f32 %v3878, 0.70710677
        %v3913 = vand.u32 2147483647, %v3897
        %v3914 = vand.u32 2147483647, %v3898
        %v3915 = vand.u32 2147483647, %v3899
        %v3916 = vand.u32 2147483647, %v3900
        %v3917 = vand.u32 2147483647, %v3901
        %v3918 = vand.u32 2147483647, %v3902
        %v3919 = vand.u32 2147483647, %v3903
        %v3920 = vand.u32 2147483647, %v3904
        %v3921 = vand.u32 2147483647, %v3905
        %v3922 = vand.u32 2147483647, %v3906
        %v3923 = vand.u32 2147483647, %v3907
        %v3924 = vand.u32 2147483647, %v3908
        %v3925 = vand.u32 2147483647, %v3909
        %v3926 = vand.u32 2147483647, %v3910
        %v3927 = vand.u32 2147483647, %v3911
        %v3928 = vand.u32 2147483647, %v3912
        %v3929 = vmul.f32 %v3913, 0.3275911
        %v3930 = vmul.f32 %v3914, 0.3275911
        %v3931 = vmul.f32 %v3915, 0.3275911
        %v3932 = vmul.f32 %v3916, 0.3275911
        %v3933 = vmul.f32 %v3917, 0.3275911
        %v3934 = vmul.f32 %v3918, 0.3275911
        %v3935 = vmul.f32 %v3919, 0.3275911
        %v3936 = vmul.f32 %v3920, 0.3275911
        %v3937 = vmul.f32 %v3921, 0.3275911
        %v3938 = vmul.f32 %v3922, 0.3275911
        %v3939 = vmul.f32 %v3923, 0.3275911
        %v3940 = vmul.f32 %v3924, 0.3275911
        %v3941 = vmul.f32 %v3925, 0.3275911
        %v3942 = vmul.f32 %v3926, 0.3275911
        %v3943 = vmul.f32 %v3927, 0.3275911
        %v3944 = vmul.f32 %v3928, 0.3275911
        %v3945 = vadd.f32 %v3929, 1.0
        %v3946 = vadd.f32 %v3930, 1.0
        %v3947 = vadd.f32 %v3931, 1.0
        %v3948 = vadd.f32 %v3932, 1.0
        %v3949 = vadd.f32 %v3933, 1.0
        %v3950 = vadd.f32 %v3934, 1.0
        %v3951 = vadd.f32 %v3935, 1.0
        %v3952 = vadd.f32 %v3936, 1.0
        %v3953 = vadd.f32 %v3937, 1.0
        %v3954 = vadd.f32 %v3938, 1.0
        %v3955 = vadd.f32 %v3939, 1.0
        %v3956 = vadd.f32 %v3940, 1.0
        %v3957 = vadd.f32 %v3941, 1.0
        %v3958 = vadd.f32 %v3942, 1.0
        %v3959 = vadd.f32 %v3943, 1.0
        %v3960 = vadd.f32 %v3944, 1.0
        %v3961 = vrcp.pop %v3945
        %v3962 = vmul.f32 1.0, %v3961
        %v3963 = vrcp.pop %v3946
        %v3964 = vmul.f32 1.0, %v3963
        %v3965 = vrcp.pop %v3947
        %v3966 = vmul.f32 1.0, %v3965
        %v3967 = vrcp.pop %v3948
        %v3968 = vmul.f32 1.0, %v3967
        %v3969 = vrcp.pop %v3949
        %v3970 = vmul.f32 1.0, %v3969
        %v3971 = vrcp.pop %v3950
        %v3972 = vmul.f32 1.0, %v3971
        %v3973 = vrcp.pop %v3951
        %v3974 = vmul.f32 1.0, %v3973
        %v3975 = vrcp.pop %v3952
        %v3976 = vmul.f32 1.0, %v3975
        %v3977 = vrcp.pop %v3953
        %v3978 = vmul.f32 1.0, %v3977
        %v3979 = vrcp.pop %v3954
        %v3980 = vmul.f32 1.0, %v3979
        %v3981 = vrcp.pop %v3955
        %v3982 = vmul.f32 1.0, %v3981
        %v3983 = vrcp.pop %v3956
        %v3984 = vmul.f32 1.0, %v3983
        %v3985 = vrcp.pop %v3957
        %v3986 = vmul.f32 1.0, %v3985
        %v3987 = vrcp.pop %v3958
        %v3988 = vmul.f32 1.0, %v3987
        %v3989 = vrcp.pop %v3959
        %v3990 = vmul.f32 1.0, %v3989
        %v3991 = vrcp.pop %v3960
        %v3992 = vmul.f32 1.0, %v3991
        %v3993 = vmul.f32 %v3962, 1.0614054
        %v3994 = vmul.f32 %v3964, 1.0614054
        %v3995 = vmul.f32 %v3966, 1.0614054
        %v3996 = vmul.f32 %v3968, 1.0614054
        %v3997 = vmul.f32 %v3970, 1.0614054
        %v3998 = vmul.f32 %v3972, 1.0614054
        %v3999 = vmul.f32 %v3974, 1.0614054
        %v4000 = vmul.f32 %v3976, 1.0614054
        %v4001 = vmul.f32 %v3978, 1.0614054
        %v4002 = vmul.f32 %v3980, 1.0614054
        %v4003 = vmul.f32 %v3982, 1.0614054
        %v4004 = vmul.f32 %v3984, 1.0614054
        %v4005 = vmul.f32 %v3986, 1.0614054
        %v4006 = vmul.f32 %v3988, 1.0614054
        %v4007 = vmul.f32 %v3990, 1.0614054
        %v4008 = vmul.f32 %v3992, 1.0614054
        %v4009 = vadd.f32 %v3993, -1.4531521
        %v4010 = vadd.f32 %v3994, -1.4531521
        %v4011 = vadd.f32 %v3995, -1.4531521
        %v4012 = vadd.f32 %v3996, -1.4531521
        %v4013 = vadd.f32 %v3997, -1.4531521
        %v4014 = vadd.f32 %v3998, -1.4531521
        %v4015 = vadd.f32 %v3999, -1.4531521
        %v4016 = vadd.f32 %v4000, -1.4531521
        %v4017 = vadd.f32 %v4001, -1.4531521
        %v4018 = vadd.f32 %v4002, -1.4531521
        %v4019 = vadd.f32 %v4003, -1.4531521
        %v4020 = vadd.f32 %v4004, -1.4531521
        %v4021 = vadd.f32 %v4005, -1.4531521
        %v4022 = vadd.f32 %v4006, -1.4531521
        %v4023 = vadd.f32 %v4007, -1.4531521
        %v4024 = vadd.f32 %v4008, -1.4531521
        %v4025 = vmul.f32 %v4009, %v3962
        %v4026 = vmul.f32 %v4010, %v3964
        %v4027 = vmul.f32 %v4011, %v3966
        %v4028 = vmul.f32 %v4012, %v3968
        %v4029 = vmul.f32 %v4013, %v3970
        %v4030 = vmul.f32 %v4014, %v3972
        %v4031 = vmul.f32 %v4015, %v3974
        %v4032 = vmul.f32 %v4016, %v3976
        %v4033 = vmul.f32 %v4017, %v3978
        %v4034 = vmul.f32 %v4018, %v3980
        %v4035 = vmul.f32 %v4019, %v3982
        %v4036 = vmul.f32 %v4020, %v3984
        %v4037 = vmul.f32 %v4021, %v3986
        %v4038 = vmul.f32 %v4022, %v3988
        %v4039 = vmul.f32 %v4023, %v3990
        %v4040 = vmul.f32 %v4024, %v3992
        %v4041 = vadd.f32 %v4025, 1.4214138
        %v4042 = vadd.f32 %v4026, 1.4214138
        %v4043 = vadd.f32 %v4027, 1.4214138
        %v4044 = vadd.f32 %v4028, 1.4214138
        %v4045 = vadd.f32 %v4029, 1.4214138
        %v4046 = vadd.f32 %v4030, 1.4214138
        %v4047 = vadd.f32 %v4031, 1.4214138
        %v4048 = vadd.f32 %v4032, 1.4214138
        %v4049 = vadd.f32 %v4033, 1.4214138
        %v4050 = vadd.f32 %v4034, 1.4214138
        %v4051 = vadd.f32 %v4035, 1.4214138
        %v4052 = vadd.f32 %v4036, 1.4214138
        %v4053 = vadd.f32 %v4037, 1.4214138
        %v4054 = vadd.f32 %v4038, 1.4214138
        %v4055 = vadd.f32 %v4039, 1.4214138
        %v4056 = vadd.f32 %v4040, 1.4214138
        %v4057 = vmul.f32 %v4041, %v3962
        %v4058 = vmul.f32 %v4042, %v3964
        %v4059 = vmul.f32 %v4043, %v3966
        %v4060 = vmul.f32 %v4044, %v3968
        %v4061 = vmul.f32 %v4045, %v3970
        %v4062 = vmul.f32 %v4046, %v3972
        %v4063 = vmul.f32 %v4047, %v3974
        %v4064 = vmul.f32 %v4048, %v3976
        %v4065 = vmul.f32 %v4049, %v3978
        %v4066 = vmul.f32 %v4050, %v3980
        %v4067 = vmul.f32 %v4051, %v3982
        %v4068 = vmul.f32 %v4052, %v3984
        %v4069 = vmul.f32 %v4053, %v3986
        %v4070 = vmul.f32 %v4054, %v3988
        %v4071 = vmul.f32 %v4055, %v3990
        %v4072 = vmul.f32 %v4056, %v3992
        %v4073 = vadd.f32 %v4057, -0.28449672
        %v4074 = vadd.f32 %v4058, -0.28449672
        %v4075 = vadd.f32 %v4059, -0.28449672
        %v4076 = vadd.f32 %v4060, -0.28449672
        %v4077 = vadd.f32 %v4061, -0.28449672
        %v4078 = vadd.f32 %v4062, -0.28449672
        %v4079 = vadd.f32 %v4063, -0.28449672
        %v4080 = vadd.f32 %v4064, -0.28449672
        %v4081 = vadd.f32 %v4065, -0.28449672
        %v4082 = vadd.f32 %v4066, -0.28449672
        %v4083 = vadd.f32 %v4067, -0.28449672
        %v4084 = vadd.f32 %v4068, -0.28449672
        %v4085 = vadd.f32 %v4069, -0.28449672
        %v4086 = vadd.f32 %v4070, -0.28449672
        %v4087 = vadd.f32 %v4071, -0.28449672
        %v4088 = vadd.f32 %v4072, -0.28449672
        %v4089 = vmul.f32 %v4073, %v3962
        %v4090 = vmul.f32 %v4074, %v3964
        %v4091 = vmul.f32 %v4075, %v3966
        %v4092 = vmul.f32 %v4076, %v3968
        %v4093 = vmul.f32 %v4077, %v3970
        %v4094 = vmul.f32 %v4078, %v3972
        %v4095 = vmul.f32 %v4079, %v3974
        %v4096 = vmul.f32 %v4080, %v3976
        %v4097 = vmul.f32 %v4081, %v3978
        %v4098 = vmul.f32 %v4082, %v3980
        %v4099 = vmul.f32 %v4083, %v3982
        %v4100 = vmul.f32 %v4084, %v3984
        %v4101 = vmul.f32 %v4085, %v3986
        %v4102 = vmul.f32 %v4086, %v3988
        %v4103 = vmul.f32 %v4087, %v3990
        %v4104 = vmul.f32 %v4088, %v3992
        %v4105 = vadd.f32 %v4089, 0.2548296
        %v4106 = vadd.f32 %v4090, 0.2548296
        %v4107 = vadd.f32 %v4091, 0.2548296
        %v4108 = vadd.f32 %v4092, 0.2548296
        %v4109 = vadd.f32 %v4093, 0.2548296
        %v4110 = vadd.f32 %v4094, 0.2548296
        %v4111 = vadd.f32 %v4095, 0.2548296
        %v4112 = vadd.f32 %v4096, 0.2548296
        %v4113 = vadd.f32 %v4097, 0.2548296
        %v4114 = vadd.f32 %v4098, 0.2548296
        %v4115 = vadd.f32 %v4099, 0.2548296
        %v4116 = vadd.f32 %v4100, 0.2548296
        %v4117 = vadd.f32 %v4101, 0.2548296
        %v4118 = vadd.f32 %v4102, 0.2548296
        %v4119 = vadd.f32 %v4103, 0.2548296
        %v4120 = vadd.f32 %v4104, 0.2548296
        %v4121 = vmul.f32 %v4105, %v3962
        %v4122 = vmul.f32 %v4106, %v3964
        %v4123 = vmul.f32 %v4107, %v3966
        %v4124 = vmul.f32 %v4108, %v3968
        %v4125 = vmul.f32 %v4109, %v3970
        %v4126 = vmul.f32 %v4110, %v3972
        %v4127 = vmul.f32 %v4111, %v3974
        %v4128 = vmul.f32 %v4112, %v3976
        %v4129 = vmul.f32 %v4113, %v3978
        %v4130 = vmul.f32 %v4114, %v3980
        %v4131 = vmul.f32 %v4115, %v3982
        %v4132 = vmul.f32 %v4116, %v3984
        %v4133 = vmul.f32 %v4117, %v3986
        %v4134 = vmul.f32 %v4118, %v3988
        %v4135 = vmul.f32 %v4119, %v3990
        %v4136 = vmul.f32 %v4120, %v3992
        %v4137 = vsub.f32 0.0, %v3913
        %v4138 = vsub.f32 0.0, %v3914
        %v4139 = vsub.f32 0.0, %v3915
        %v4140 = vsub.f32 0.0, %v3916
        %v4141 = vsub.f32 0.0, %v3917
        %v4142 = vsub.f32 0.0, %v3918
        %v4143 = vsub.f32 0.0, %v3919
        %v4144 = vsub.f32 0.0, %v3920
        %v4145 = vsub.f32 0.0, %v3921
        %v4146 = vsub.f32 0.0, %v3922
        %v4147 = vsub.f32 0.0, %v3923
        %v4148 = vsub.f32 0.0, %v3924
        %v4149 = vsub.f32 0.0, %v3925
        %v4150 = vsub.f32 0.0, %v3926
        %v4151 = vsub.f32 0.0, %v3927
        %v4152 = vsub.f32 0.0, %v3928
        %v4153 = vmul.f32 %v4137, %v3913
        %v4154 = vmul.f32 %v4138, %v3914
        %v4155 = vmul.f32 %v4139, %v3915
        %v4156 = vmul.f32 %v4140, %v3916
        %v4157 = vmul.f32 %v4141, %v3917
        %v4158 = vmul.f32 %v4142, %v3918
        %v4159 = vmul.f32 %v4143, %v3919
        %v4160 = vmul.f32 %v4144, %v3920
        %v4161 = vmul.f32 %v4145, %v3921
        %v4162 = vmul.f32 %v4146, %v3922
        %v4163 = vmul.f32 %v4147, %v3923
        %v4164 = vmul.f32 %v4148, %v3924
        %v4165 = vmul.f32 %v4149, %v3925
        %v4166 = vmul.f32 %v4150, %v3926
        %v4167 = vmul.f32 %v4151, %v3927
        %v4168 = vmul.f32 %v4152, %v3928
        %v4169 = vmul.f32 %v4153, 1.442695
        %v4170 = vpow.pop %v4169
        %v4171 = vmul.f32 %v4154, 1.442695
        %v4172 = vpow.pop %v4171
        %v4173 = vmul.f32 %v4155, 1.442695
        %v4174 = vpow.pop %v4173
        %v4175 = vmul.f32 %v4156, 1.442695
        %v4176 = vpow.pop %v4175
        %v4177 = vmul.f32 %v4157, 1.442695
        %v4178 = vpow.pop %v4177
        %v4179 = vmul.f32 %v4158, 1.442695
        %v4180 = vpow.pop %v4179
        %v4181 = vmul.f32 %v4159, 1.442695
        %v4182 = vpow.pop %v4181
        %v4183 = vmul.f32 %v4160, 1.442695
        %v4184 = vpow.pop %v4183
        %v4185 = vmul.f32 %v4161, 1.442695
        %v4186 = vpow.pop %v4185
        %v4187 = vmul.f32 %v4162, 1.442695
        %v4188 = vpow.pop %v4187
        %v4189 = vmul.f32 %v4163, 1.442695
        %v4190 = vpow.pop %v4189
        %v4191 = vmul.f32 %v4164, 1.442695
        %v4192 = vpow.pop %v4191
        %v4193 = vmul.f32 %v4165, 1.442695
        %v4194 = vpow.pop %v4193
        %v4195 = vmul.f32 %v4166, 1.442695
        %v4196 = vpow.pop %v4195
        %v4197 = vmul.f32 %v4167, 1.442695
        %v4198 = vpow.pop %v4197
        %v4199 = vmul.f32 %v4168, 1.442695
        %v4200 = vpow.pop %v4199
        %v4201 = vmul.f32 %v4121, %v4170
        %v4202 = vmul.f32 %v4122, %v4172
        %v4203 = vmul.f32 %v4123, %v4174
        %v4204 = vmul.f32 %v4124, %v4176
        %v4205 = vmul.f32 %v4125, %v4178
        %v4206 = vmul.f32 %v4126, %v4180
        %v4207 = vmul.f32 %v4127, %v4182
        %v4208 = vmul.f32 %v4128, %v4184
        %v4209 = vmul.f32 %v4129, %v4186
        %v4210 = vmul.f32 %v4130, %v4188
        %v4211 = vmul.f32 %v4131, %v4190
        %v4212 = vmul.f32 %v4132, %v4192
        %v4213 = vmul.f32 %v4133, %v4194
        %v4214 = vmul.f32 %v4134, %v4196
        %v4215 = vmul.f32 %v4135, %v4198
        %v4216 = vmul.f32 %v4136, %v4200
        %v4217 = vsub.f32 1.0, %v4201
        %v4218 = vsub.f32 1.0, %v4202
        %v4219 = vsub.f32 1.0, %v4203
        %v4220 = vsub.f32 1.0, %v4204
        %v4221 = vsub.f32 1.0, %v4205
        %v4222 = vsub.f32 1.0, %v4206
        %v4223 = vsub.f32 1.0, %v4207
        %v4224 = vsub.f32 1.0, %v4208
        %v4225 = vsub.f32 1.0, %v4209
        %v4226 = vsub.f32 1.0, %v4210
        %v4227 = vsub.f32 1.0, %v4211
        %v4228 = vsub.f32 1.0, %v4212
        %v4229 = vsub.f32 1.0, %v4213
        %v4230 = vsub.f32 1.0, %v4214
        %v4231 = vsub.f32 1.0, %v4215
        %v4232 = vsub.f32 1.0, %v4216
        %vm4233 = vcmp.ge.f32.partialorder %v3897, 0.0
        %vm4234 = vcmp.ge.f32.partialorder %v3898, 0.0
        %vm4235 = vcmp.ge.f32.partialorder %v3899, 0.0
        %vm4236 = vcmp.ge.f32.partialorder %v3900, 0.0
        %vm4237 = vcmp.ge.f32.partialorder %v3901, 0.0
        %vm4238 = vcmp.ge.f32.partialorder %v3902, 0.0
        %vm4239 = vcmp.ge.f32.partialorder %v3903, 0.0
        %vm4240 = vcmp.ge.f32.partialorder %v3904, 0.0
        %vm4241 = vcmp.ge.f32.partialorder %v3905, 0.0
        %vm4242 = vcmp.ge.f32.partialorder %v3906, 0.0
        %vm4243 = vcmp.ge.f32.partialorder %v3907, 0.0
        %vm4244 = vcmp.ge.f32.partialorder %v3908, 0.0
        %vm4245 = vcmp.ge.f32.partialorder %v3909, 0.0
        %vm4246 = vcmp.ge.f32.partialorder %v3910, 0.0
        %vm4247 = vcmp.ge.f32.partialorder %v3911, 0.0
        %vm4248 = vcmp.ge.f32.partialorder %v3912, 0.0
        %v4249 = vsub.f32 0.0, %v4217
        %v4250 = vsub.f32 0.0, %v4218
        %v4251 = vsub.f32 0.0, %v4219
        %v4252 = vsub.f32 0.0, %v4220
        %v4253 = vsub.f32 0.0, %v4221
        %v4254 = vsub.f32 0.0, %v4222
        %v4255 = vsub.f32 0.0, %v4223
        %v4256 = vsub.f32 0.0, %v4224
        %v4257 = vsub.f32 0.0, %v4225
        %v4258 = vsub.f32 0.0, %v4226
        %v4259 = vsub.f32 0.0, %v4227
        %v4260 = vsub.f32 0.0, %v4228
        %v4261 = vsub.f32 0.0, %v4229
        %v4262 = vsub.f32 0.0, %v4230
        %v4263 = vsub.f32 0.0, %v4231
        %v4264 = vsub.f32 0.0, %v4232
        %v4265 = vsel %vm4233, %v4217, %v4249
        %v4266 = vsel %vm4234, %v4218, %v4250
        %v4267 = vsel %vm4235, %v4219, %v4251
        %v4268 = vsel %vm4236, %v4220, %v4252
        %v4269 = vsel %vm4237, %v4221, %v4253
        %v4270 = vsel %vm4238, %v4222, %v4254
        %v4271 = vsel %vm4239, %v4223, %v4255
        %v4272 = vsel %vm4240, %v4224, %v4256
        %v4273 = vsel %vm4241, %v4225, %v4257
        %v4274 = vsel %vm4242, %v4226, %v4258
        %v4275 = vsel %vm4243, %v4227, %v4259
        %v4276 = vsel %vm4244, %v4228, %v4260
        %v4277 = vsel %vm4245, %v4229, %v4261
        %v4278 = vsel %vm4246, %v4230, %v4262
        %v4279 = vsel %vm4247, %v4231, %v4263
        %v4280 = vsel %vm4248, %v4232, %v4264
        %v4281 = vadd.f32 %v4265, 1.0
        %v4282 = vadd.f32 %v4266, 1.0
        %v4283 = vadd.f32 %v4267, 1.0
        %v4284 = vadd.f32 %v4268, 1.0
        %v4285 = vadd.f32 %v4269, 1.0
        %v4286 = vadd.f32 %v4270, 1.0
        %v4287 = vadd.f32 %v4271, 1.0
        %v4288 = vadd.f32 %v4272, 1.0
        %v4289 = vadd.f32 %v4273, 1.0
        %v4290 = vadd.f32 %v4274, 1.0
        %v4291 = vadd.f32 %v4275, 1.0
        %v4292 = vadd.f32 %v4276, 1.0
        %v4293 = vadd.f32 %v4277, 1.0
        %v4294 = vadd.f32 %v4278, 1.0
        %v4295 = vadd.f32 %v4279, 1.0
        %v4296 = vadd.f32 %v4280, 1.0
        %v4297 = vmul.f32 %v3881, %v4281
        %v4298 = vmul.f32 %v3882, %v4282
        %v4299 = vmul.f32 %v3883, %v4283
        %v4300 = vmul.f32 %v3884, %v4284
        %v4301 = vmul.f32 %v3885, %v4285
        %v4302 = vmul.f32 %v3886, %v4286
        %v4303 = vmul.f32 %v3887, %v4287
        %v4304 = vmul.f32 %v3888, %v4288
        %v4305 = vmul.f32 %v3889, %v4289
        %v4306 = vmul.f32 %v3890, %v4290
        %v4307 = vmul.f32 %v3891, %v4291
        %v4308 = vmul.f32 %v3892, %v4292
        %v4309 = vmul.f32 %v3893, %v4293
        %v4310 = vmul.f32 %v3894, %v4294
        %v4311 = vmul.f32 %v3895, %v4295
        %v4312 = vmul.f32 %v3896, %v4296
        %v4313 = vld [vmem:[%s15] sm:$0xff]
        %v4314 = vld [vmem:[%s15 + $0x8] sm:$0xff]
        %v4315 = vld [vmem:[%s15 + $0x10] sm:$0xff]
        %v4316 = vld [vmem:[%s15 + $0x18] sm:$0xff]
        %v4317 = vld [vmem:[%s16] sm:$0xff]
        %v4318 = vld [vmem:[%s16 + $0x8] sm:$0xff]
        %v4319 = vld [vmem:[%s16 + $0x10] sm:$0xff]
        %v4320 = vld [vmem:[%s16 + $0x18] sm:$0xff]
        %4322 = vset.pattern.permute.xlu0 0
        %4323 = vperm.xlu0 %4322, %v4317
        %v4324 = vpop.permute.xlu0 %4323
        %4327 = vset.pattern.permute.xlu0 0
        %4328 = vperm.xlu0 %4327, %v4318
        %v4329 = vpop.permute.xlu0 %4328
        %4332 = vset.pattern.permute.xlu0 0
        %4333 = vperm.xlu0 %4332, %v4319
        %v4334 = vpop.permute.xlu0 %4333
        %4337 = vset.pattern.permute.xlu0 0
        %4338 = vperm.xlu0 %4337, %v4320
        %v4339 = vpop.permute.xlu0 %4338
        %4341 = vmatprep.subr.mxu0 0.0
        %4342 = vmatpush1.msra.mxu0 %v4297
        %4343 = vmatprep.subr.mxu0 0.0
        %4344 = vmatpush1.msra.mxu0 %v4298
        %4345 = vmatprep.subr.mxu0 0.0
        %4346 = vmatpush1.msra.mxu0 %v4299
        %4347 = vmatprep.subr.mxu0 0.0
        %4348 = vmatpush1.msra.mxu0 %v4300
        %4349 = vmatprep.subr.mxu0 0.0
        %4350 = vmatpush1.msra.mxu0 %v4301
        %4351 = vmatprep.subr.mxu0 0.0
        %4352 = vmatpush1.msra.mxu0 %v4302
        %4353 = vmatprep.subr.mxu0 0.0
        %4354 = vmatpush1.msra.mxu0 %v4303
        %4355 = vmatprep.subr.mxu0 0.0
        %4356 = vmatpush1.msra.mxu0 %v4304
        %4357 = vmatprep.subr.mxu0 0.0
        %4358 = vmatpush1.msra.mxu0 %v4305
        %4359 = vmatprep.subr.mxu0 0.0
        %4360 = vmatpush1.msra.mxu0 %v4306
        %4361 = vmatprep.subr.mxu0 0.0
        %4362 = vmatpush1.msra.mxu0 %v4307
        %4363 = vmatprep.subr.mxu0 0.0
        %4364 = vmatpush1.msra.mxu0 %v4308
        %4365 = vmatprep.subr.mxu0 0.0
        %4366 = vmatpush1.msra.mxu0 %v4309
        %4367 = vmatprep.subr.mxu0 0.0
        %4368 = vmatpush1.msra.mxu0 %v4310
        %4369 = vmatprep.subr.mxu0 0.0
        %4370 = vmatpush1.msra.mxu0 %v4311
        %4371 = vmatprep.subr.mxu0 0.0
        %4372 = vmatpush1.msra.mxu0 %v4312
        %4373 = vmatprep.subr.mxu0 0.0
        %4374 = vmatpush1.msra.mxu0 0.0
        %4375 = vmatprep.subr.mxu0 0.0
        %4376 = vmatpush1.msra.mxu0 0.0
        %4377 = vmatprep.subr.mxu0 0.0
        %4378 = vmatpush1.msra.mxu0 0.0
        %4379 = vmatprep.subr.mxu0 0.0
        %4380 = vmatpush1.msra.mxu0 0.0
        %4381 = vmatprep.subr.mxu0 0.0
        %4382 = vmatpush1.msra.mxu0 0.0
        %4383 = vmatprep.subr.mxu0 0.0
        %4384 = vmatpush1.msra.mxu0 0.0
        %4385 = vmatprep.subr.mxu0 0.0
        %4386 = vmatpush1.msra.mxu0 0.0
        %4387 = vmatprep.subr.mxu0 0.0
        %4388 = vmatpush1.msra.mxu0 0.0
        %4389 = vmatprep.subr.mxu0 0.0
        %4390 = vmatpush1.msra.mxu0 0.0
        %4391 = vmatprep.subr.mxu0 0.0
        %4392 = vmatpush1.msra.mxu0 0.0
        %4393 = vmatprep.subr.mxu0 0.0
        %4394 = vmatpush1.msra.mxu0 0.0
        %4395 = vmatprep.subr.mxu0 0.0
        %4396 = vmatpush1.msra.mxu0 0.0
        %4397 = vmatprep.subr.mxu0 0.0
        %4398 = vmatpush1.msra.mxu0 0.0
        %4399 = vmatprep.subr.mxu0 0.0
        %4400 = vmatpush1.msra.mxu0 0.0
        %4401 = vmatprep.subr.mxu0 0.0
        %4402 = vmatpush1.msra.mxu0 0.0
        %4403 = vmatprep.subr.mxu0 0.0
        %4404 = vmatpush1.msra.mxu0 0.0
        %4405 = vmatprep.mubr.f32.mxu0 0.0
        %4406 = vmatmul.mubr.f32.gmra.mrb[0].mxu0 %v4313
        %v4407 = vpop.f32.mrb[0].mxu0
        %v4408 = vadd.f32 %v4324, %v4407
        %v4409 = vpop.f32.mrb[0].mxu0
        %4410 = vmatprep.mubr.f32.mxu0 0.0
        %4411 = vmatmul.mubr.f32.gmra.mrb[0].mxu0 %v4314
        %v4412 = vpop.f32.mrb[0].mxu0
        %v4413 = vadd.f32 %v4329, %v4412
        %v4414 = vpop.f32.mrb[0].mxu0
        %4415 = vmatprep.mubr.f32.mxu0 0.0
        %4416 = vmatmul.mubr.f32.gmra.mrb[0].mxu0 %v4315
        %v4417 = vpop.f32.mrb[0].mxu0
        %v4418 = vadd.f32 %v4334, %v4417
        %v4419 = vpop.f32.mrb[0].mxu0
        %4420 = vmatprep.mubr.f32.mxu0 0.0
        %4421 = vmatmul.mubr.f32.gmra.mrb[0].mxu0 %v4316
        %v4422 = vpop.f32.mrb[0].mxu0
        %v4423 = vadd.f32 %v4339, %v4422
        %v4424 = vpop.f32.mrb[0].mxu0
        %4425 = vdwg.mxu0
        %v4426 = vmul.f32 %v4408, %v782
        %v4427 = vmul.f32 %v4413, %v782
        %v4428 = vmul.f32 %v4418, %v782
        %v4429 = vmul.f32 %v4423, %v782
        %v4430 = vadd.f32 %v3475, %v4426
        %v4431 = vadd.f32 %v3476, %v4427
        %v4432 = vadd.f32 %v3477, %v4428
        %v4433 = vadd.f32 %v3478, %v4429
        %4434 = vst [vmem:[%s552] sm:$0xff] %v4430
        %4435 = vst [vmem:[%s552 + $0x8] sm:$0xff] %v4431
        %4436 = vst [vmem:[%s552 + $0x10] sm:$0xff] %v4432
        %4437 = vst [vmem:[%s552 + $0x18] sm:$0xff] %v4433
        %s4438 = sand.u32 %s406, 1
        %s4439 = scalar_lea.sflag [#allocation3], %s4438
        %s4440 = sand.u32 %s406, 1
        %s4441 = smul.addr %s4440, 32
        %s4442 = scalar_lea.vmem [#allocation2], %s4441
        // Predicated region
        $region89: #{tpu_custom_call.1} parent=87 // pred_check
          %p4443 = pneg %p416
        $region90: #{tpu_custom_call.1} parent=87 // pred_check_branch
          %4445 = sbr.rel (%p4443) target = $region92
        $region91: #{tpu_custom_call.1} parent=87 // pred_region
          %s4447 = ssub.s32 512, 512
          %4448 = vsyncadd %s4439, %s4447
          %s4449 = smul.addr %s31, 4
          %s4450 = smul.addr %s4449, 128
          %s4451 = scalar_lea.hbm %s17, %s4450
          %s4452 = sshll.u32 %s4442, 4
          %s4453 = int_to_ptr.vmem [resolvable:$true] %s4452
          %4458 = dma.vmem_to_hbm [thread:$0]  %s4453, 512, %s4451, %s4439, 128, 128, 8
        $region92: #{tpu_custom_call.1} parent=87 // pred_fallthru
          _
      $region88: #{tpu_custom_call.1} parent=5 // pred_fallthru
        _
      %p4459 = scmp.le.s32.totalorder 2, %s26
      // Predicated region
      $region93: #{tpu_custom_call.1} parent=5 // pred_check
        %p4460 = pneg %p4459
      $region94: #{tpu_custom_call.1} parent=5 // pred_check_branch
        %4462 = sbr.rel (%p4460) target = $region96
      $region95: #{tpu_custom_call.1} parent=5 // pred_region
        %s4463 = ssub.s32 %s26, 2
        // Predicated region
        $region97: #{tpu_custom_call.1} parent=95 // pred_check
          %p4464 = pneg %p422
        $region98: #{tpu_custom_call.1} parent=95 // pred_check_branch
          %4466 = sbr.rel (%p4464) target = $region100
        $region99: #{tpu_custom_call.1} parent=95 // pred_region
          %s4467 = sand.u32 %s407, 1
          %s4468 = scalar_lea.sflag [#allocation3], %s4467
          %s4469 = sand.u32 %s407, 1
          %s4470 = smul.addr %s4469, 32
          %s4471 = scalar_lea.vmem [#allocation2], %s4470
          %4472 = dma.done %s4468, 512
        $region100: #{tpu_custom_call.1} parent=95 // pred_fallthru
          _
      $region96: #{tpu_custom_call.1} parent=5 // pred_fallthru
        _
    $region6: #{tpu_custom_call.1} parent=1 // loop_footer
      %s30 = sadd.s32 1, %s26
    $region7: #{tpu_custom_call.1} parent=1 // loop_footer_branch
      %25 = sbr.rel target = $region3
    $region8: #{tpu_custom_call.1} parent=1 // loop_exit
      _
    %4473 = vsyncpa [#allocation3], 1
    %s4474 = scalar_lea.sflag [#allocation3], 1
    %4475 = vsyncpa %s4474, 1

</llo_original>
